<compile_context>
chip_gen: v7x
topology: tpu7x:2x2x1
jax: 0.10.0
libtpu: 0.0.40
codegen_flags: <defaults>
</compile_context>

<pallas_src>
import jax
import jax.numpy as jnp
from jax import lax
from jax.experimental import pallas as pl
from jax.experimental.pallas import tpu as pltpu


# ------------------------------ kernel helpers ------------------------------ #

def _conv_relu_pool_stage(src_ref, wcat_ref, brow_ref, sel_ref, hout, wout):
    """3x3 conv (pad=1) + bias + ReLU + 2x2 max-pool for one sample.

    src_ref : (Cin, 2*hout+2, 2*wout+2) zero-padded, channel-major (NCHW-like).
    wcat_ref: (Cout*hout, 9*Cin*hout)  -- hstack over taps of kron(w_tap, I_hout).
    brow_ref: (Cout*hout, 1)           -- bias repeated over hout.
    sel_ref : (2*wout+2, 4*wout)       -- 0/1 W-parity selection matrix.
    Returns (Cout*hout, wout) with rows ordered (co, h), cols = w.
    """
    cin = src_ref.shape[0]
    wpad = src_ref.shape[2]
    ch = cin * hout

    # Four H-strided slabs (stride-2 on the sublane axis only), stacked by rows.
    slabs = [src_ref[:, pl.ds(p, hout, 2), :].reshape(ch, wpad) for p in range(4)]
    bf = jnp.concatenate(slabs, axis=0)                          # (4*ch, wpad)

    # One MXU matmul performs the W-direction stride-2 tap selection for all
    # four column parities at once (avoids lane-strided loads entirely).
    pp = jnp.dot(bf, sel_ref[...], preferred_element_type=jnp.float32)  # (4*ch, 4*wout)

    wcat = wcat_ref[...]
    pooled = None
    for dh in range(2):
        for dw in range(2):
            # Tap-accumulation folded into one contraction: stack the 9 tap
            # planes along the contraction axis (sublane concat of aligned
            # 32-row blocks -> cheap) and hit them with the kron'd weights.
            pieces = [pp[(dh + kh) * ch:(dh + kh + 1) * ch,
                         (dw + kw) * wout:(dw + kw + 1) * wout]
                      for kh in range(3) for kw in range(3)]
            rhs = jnp.concatenate(pieces, axis=0)                # (9*ch, wout)
            acc = jnp.dot(wcat, rhs, preferred_element_type=jnp.float32)
            pooled = acc if pooled is None else jnp.maximum(pooled, acc)
    # ReLU / +bias commute with the slot-max, so one elementwise tail suffices.
    return jnp.maximum(pooled + brow_ref[...], 0.0)


# ------------------------------- Pallas kernel ------------------------------- #

def qnet_duel_kernel(x_ref, w1_ref, b1_ref, s1_ref, w2_ref, b2_ref, s2_ref,
                     fw1_ref, fb1_ref, fw2_ref, fb2_ref, fw3_ref, fb3_ref,
                     out_ref, xpad_sc, ppad_sc):
    _, cin, h, w = x_ref.shape
    hp, wp = h // 2, w // 2
    hq, wq = hp // 2, wp // 2
    c1 = b1_ref.shape[0] // hp

    # Stage 1: zero-pad the raw NCHW sample inside VMEM (no host pad/transpose).
    xpad_sc[...] = jnp.zeros(xpad_sc.shape, xpad_sc.dtype)
    xpad_sc[:, 1:h + 1, 1:w + 1] = x_ref[0]
    pooled1 = _conv_relu_pool_stage(xpad_sc, w1_ref, b1_ref, s1_ref, hp, wp)

    # Stage 2: pooled1 never leaves VMEM -- re-pad it into the conv2 scratch.
    ppad_sc[...] = jnp.zeros(ppad_sc.shape, ppad_sc.dtype)
    ppad_sc[:, 1:hp + 1, 1:wp + 1] = pooled1.reshape(c1, hp, wp)
    pooled2 = _conv_relu_pool_stage(ppad_sc, w2_ref, b2_ref, s2_ref, hq, wq)

    # Stage 3: fc1 accumulated over the pool columns (no flatten gather/concat),
    # fc2/fc3 in transposed column-vector form.  pooled2 rows are already in
    # the torch NCHW flatten order (c, h), so the weight split is exact.
    hvec = fb1_ref[...]
    for q in range(wq):
        hvec = hvec + jnp.dot(fw1_ref[q], pooled2[:, q:q + 1],
                              preferred_element_type=jnp.float32)
    hvec = jnp.maximum(hvec, 0.0)
    hvec = jnp.maximum(
        jnp.dot(fw2_ref[...], hvec, preferred_element_type=jnp.float32)
        + fb2_ref[...], 0.0)
    ovec = (jnp.dot(fw3_ref[...], hvec, preferred_element_type=jnp.float32)
            + fb3_ref[...])
    out_ref[0] = ovec.astype(out_ref.dtype)


# ------------------------------- host wrapper -------------------------------- #

def qnet_duel_forward(kparams, state_nchw):
    """Forward pass: single fused pallas_call, batch-parallel grid."""
    n, cin, h, w = state_nchw.shape
    assert h % 4 == 0 and w % 4 == 0, "QNetDuel requires H, W divisible by 4"
    hp, wp = h // 2, w // 2
    hq, wq = h // 4, w // 4
    c1 = kparams["b1"].shape[0] // hp
    c2 = kparams["b2"].shape[0] // hq
    mid = kparams["fb1"].shape[0]
    out_dim = kparams["fb3"].shape[0]

    args = (state_nchw, kparams["w1"], kparams["b1"], kparams["s1"],
            kparams["w2"], kparams["b2"], kparams["s2"],
            kparams["fw1"], kparams["fb1"], kparams["fw2"], kparams["fb2"],
            kparams["fw3"], kparams["fb3"])

    def resident(arr):
        zeros = (0,) * arr.ndim      # same block every step -> stays resident
        return pl.BlockSpec(arr.shape, lambda b: zeros)

    in_specs = [pl.BlockSpec((1, cin, h, w), lambda b: (b, 0, 0, 0))]
    in_specs += [resident(a) for a in args[1:]]

    flops = n * 2 * (
        4 * cin * hp * (w + 2) * 4 * wp            # conv1 W-selection matmul
        + 4 * c1 * hp * 9 * cin * hp * wp          # conv1 tap matmuls (4 slots)
        + 4 * c1 * hq * (wp + 2) * 4 * wq          # conv2 W-selection matmul
        + 4 * c2 * hq * 9 * c1 * hq * wq           # conv2 tap matmuls (4 slots)
        + mid * c2 * hq * wq + mid * mid + mid * out_dim)
    bytes_accessed = 4 * (state_nchw.size
                          + sum(int(a.size) for a in args[1:]) + n * out_dim)

    out3 = pl.pallas_call(
        qnet_duel_kernel,
        out_shape=jax.ShapeDtypeStruct((n, out_dim, 1), state_nchw.dtype),
        grid=(n,),
        in_specs=in_specs,
        out_specs=pl.BlockSpec((1, out_dim, 1), lambda b: (b, 0, 0)),
        scratch_shapes=[pltpu.VMEM((cin, h + 2, w + 2), jnp.float32),
                        pltpu.VMEM((c1, hp + 2, wp + 2), jnp.float32)],
        compiler_params=pltpu.CompilerParams(
            dimension_semantics=("parallel",)),
        cost_estimate=pl.CostEstimate(flops=flops, transcendentals=0,
                                      bytes_accessed=bytes_accessed),
    )(*args)
    return out3.reshape(n, out_dim)      # (N, out_dim, 1) -> (N, out_dim): free


# -------------------------------- parameters --------------------------------- #

def init_params(key, in_dim, mid_dim, out_dim, H, W):
    """Torch-layout parameters (Conv2d OIHW, Linear (in, out))."""
    c1 = in_dim * 2
    c2 = in_dim * 2
    flat = c2 * (H // 4) * (W // 4)
    ks = jax.random.split(key, 10)

    def u(k, shape, fan_in):
        bound = 1.0 / jnp.sqrt(jnp.float32(fan_in))
        return jax.random.uniform(k, shape, jnp.float32, -bound, bound)

    return {
        "conv1_w": u(ks[0], (c1, in_dim, 3, 3), in_dim * 9),
        "conv1_b": u(ks[1], (c1,), in_dim * 9),
        "conv2_w": u(ks[2], (c2, c1, 3, 3), c1 * 9),
        "conv2_b": u(ks[3], (c2,), c1 * 9),
        "fc1_w": u(ks[4], (flat, mid_dim), flat),
        "fc1_b": u(ks[5], (mid_dim,), flat),
        "fc2_w": u(ks[6], (mid_dim, mid_dim), mid_dim),
        "fc2_b": u(ks[7], (mid_dim,), mid_dim),
        "fc3_w": u(ks[8], (mid_dim, out_dim), mid_dim),
        "fc3_b": u(ks[9], (out_dim,), mid_dim),
    }


def prepare_params(params, H, W):
    """One-time re-layout of the torch parameters into kernel form.

    * conv weights -> hstack over the 9 taps of kron(w_tap, I_Hout): lets the
      per-pool-slot conv be one contraction over (tap, cin, h).
    * conv biases repeated over Hout as a column (they add to (Cout*Hout, W)).
    * Sel matrices: 0/1 (Wpad, 4*Wout) matrices that do the stride-2 W
      subsampling for all four column parities via one MXU matmul.
    * fc1 weights split by pool column wq and transposed, (Wq, mid, C2*Hq),
      matching the kernel's (c, h)-ordered conv2 output rows (== torch NCHW
      flatten order, so the mapping is exact).
    """
    c1, in_dim = params["conv1_w"].shape[:2]
    c2 = params["conv2_w"].shape[0]
    mid = params["fc1_w"].shape[1]
    Hp, Wp = H // 2, W // 2
    Hq, Wq = H // 4, W // 4

    def conv_cat(wt, hout):                 # (Cout, Cin, 3, 3) -> (Cout*hout, 9*Cin*hout)
        eye = jnp.eye(hout, dtype=jnp.float32)
        blocks = [jnp.kron(wt[:, :, kh, kw], eye)
                  for kh in range(3) for kw in range(3)]
        return jnp.concatenate(blocks, axis=1)

    def sel_matrix(wpad, wout):             # Sel[w, q*wout + wp] = (w == q + 2*wp)
        rows = jnp.arange(wpad)[:, None]
        cols = jnp.arange(4 * wout)[None, :]
        target = cols // wout + 2 * (cols % wout)
        return (rows == target).astype(jnp.float32)

    fw1 = (params["fc1_w"].reshape(c2, Hq, Wq, mid)
           .transpose(2, 3, 0, 1)            # (Wq, mid, c2, Hq)
           .reshape(Wq, mid, c2 * Hq))
    return {
        "w1": conv_cat(params["conv1_w"], Hp),
        "b1": jnp.repeat(params["conv1_b"], Hp)[:, None],
        "s1": sel_matrix(W + 2, Wp),
        "w2": conv_cat(params["conv2_w"], Hq),
        "b2": jnp.repeat(params["conv2_b"], Hq)[:, None],
        "s2": sel_matrix(Wp + 2, Wq),
        "fw1": fw1, "fb1": params["fc1_b"][:, None],
        "fw2": params["fc2_w"].T, "fb2": params["fc2_b"][:, None],
        "fw3": params["fc3_w"].T, "fb3": params["fc3_b"][:, None],
    }


# --------------------------------- reference ---------------------------------- #

def reference_forward(params, state_nchw):
    """Pure-JAX reference mirroring the PyTorch forward semantics (NCHW)."""
    def conv_block(x, w, b):
        y = lax.conv_general_dilated(
            x, w, (1, 1), ((1, 1), (1, 1)),
            dimension_numbers=("NCHW", "OIHW", "NCHW"))
        y = jnp.maximum(y + b[None, :, None, None], 0.0)
        return lax.reduce_window(y, -jnp.inf, lax.max,
                                 (1, 1, 2, 2), (1, 1, 2, 2), "VALID")

    x = conv_block(state_nchw, params["conv1_w"], params["conv1_b"])
    x = conv_block(x, params["conv2_w"], params["conv2_b"])
    x = x.reshape(x.shape[0], -1)
    x = jnp.maximum(x @ params["fc1_w"] + params["fc1_b"], 0.0)
    x = jnp.maximum(x @ params["fc2_w"] + params["fc2_b"], 0.0)
    return x @ params["fc3_w"] + params["fc3_b"]


if __name__ == "__main__":
    in_dim, mid_dim, out_dim = 4, 32, 6
    n, h, w = 2, 16, 16

    key = jax.random.PRNGKey(0)
    kparam_key, kx = jax.random.split(key)
    params = init_params(kparam_key, in_dim, mid_dim, out_dim, h, w)
    kparams = prepare_params(params, h, w)        # one-time weight re-layout
    state = jax.random.normal(kx, (n, in_dim, h, w), jnp.float32)

    fwd = jax.jit(qnet_duel_forward)
    out = jax.block_until_ready(fwd(kparams, state))
    ref = jax.block_until_ready(reference_forward(params, state))

    assert out.shape == (n, out_dim), out.shape
    max_err = float(jnp.max(jnp.abs(out - ref)))
    assert jnp.allclose(out, ref, atol=1e-3, rtol=1e-3), max_err
    print("KERNEL_OK")
</pallas_src>

<mosaic_0001>
module attributes {stable_mosaic.version = 11 : i64} {
  func.func @qnet_duel_kernel(%arg0: i32, %arg1: memref<1x4x16x16xf32, #tpu.memory_space<vmem>>, %arg2: memref<64x288xf32, #tpu.memory_space<vmem>>, %arg3: memref<64x1xf32, #tpu.memory_space<vmem>>, %arg4: memref<18x32xf32, #tpu.memory_space<vmem>>, %arg5: memref<32x288xf32, #tpu.memory_space<vmem>>, %arg6: memref<32x1xf32, #tpu.memory_space<vmem>>, %arg7: memref<10x16xf32, #tpu.memory_space<vmem>>, %arg8: memref<4x32x32xf32, #tpu.memory_space<vmem>>, %arg9: memref<32x1xf32, #tpu.memory_space<vmem>>, %arg10: memref<32x32xf32, #tpu.memory_space<vmem>>, %arg11: memref<32x1xf32, #tpu.memory_space<vmem>>, %arg12: memref<6x32xf32, #tpu.memory_space<vmem>>, %arg13: memref<6x1xf32, #tpu.memory_space<vmem>>, %arg14: memref<1x6x1xf32, #tpu.memory_space<vmem>>, %arg15: memref<4x18x18xf32, #tpu.memory_space<vmem>>, %arg16: memref<8x10x10xf32, #tpu.memory_space<vmem>>) attributes {dimension_semantics = [#tpu.dimension_semantics<parallel>], iteration_bounds = array<i64: 2>, scalar_prefetch = 0 : i64, scratch_operands = 2 : i64, tpu.core_type = #tpu.core_type<tc>, window_params = [{transform_indices = @transform_0, window_bounds = array<i64: 1, 4, 16, 16>}, {pipeline_mode = #tpu.pipeline_mode<synchronous>, transform_indices = @transform_1, window_bounds = array<i64: 64, 288>}, {pipeline_mode = #tpu.pipeline_mode<synchronous>, transform_indices = @transform_2, window_bounds = array<i64: 64, 1>}, {pipeline_mode = #tpu.pipeline_mode<synchronous>, transform_indices = @transform_3, window_bounds = array<i64: 18, 32>}, {pipeline_mode = #tpu.pipeline_mode<synchronous>, transform_indices = @transform_4, window_bounds = array<i64: 32, 288>}, {pipeline_mode = #tpu.pipeline_mode<synchronous>, transform_indices = @transform_5, window_bounds = array<i64: 32, 1>}, {pipeline_mode = #tpu.pipeline_mode<synchronous>, transform_indices = @transform_6, window_bounds = array<i64: 10, 16>}, {pipeline_mode = #tpu.pipeline_mode<synchronous>, transform_indices = @transform_7, window_bounds = array<i64: 4, 32, 32>}, {pipeline_mode = #tpu.pipeline_mode<synchronous>, transform_indices = @transform_8, window_bounds = array<i64: 32, 1>}, {pipeline_mode = #tpu.pipeline_mode<synchronous>, transform_indices = @transform_9, window_bounds = array<i64: 32, 32>}, {pipeline_mode = #tpu.pipeline_mode<synchronous>, transform_indices = @transform_10, window_bounds = array<i64: 32, 1>}, {pipeline_mode = #tpu.pipeline_mode<synchronous>, transform_indices = @transform_11, window_bounds = array<i64: 6, 32>}, {pipeline_mode = #tpu.pipeline_mode<synchronous>, transform_indices = @transform_12, window_bounds = array<i64: 6, 1>}, {transform_indices = @transform_13, window_bounds = array<i64: 1, 6, 1>}]} {
    %cst = arith.constant 0.000000e+00 : f32
    %0 = vector.broadcast %cst : f32 to vector<4x18x18xf32>
    %c0 = arith.constant 0 : index
    %c0_0 = arith.constant 0 : index
    %c0_1 = arith.constant 0 : index
    %1 = vector.load %arg15[%c0, %c0_0, %c0_1] : memref<4x18x18xf32, #tpu.memory_space<vmem>>, vector<4x18x18xf32>
    tpu.vector_store %arg15[%c0, %c0_0, %c0_1], %0 {strides = array<i32>} : memref<4x18x18xf32, #tpu.memory_space<vmem>>, vector<4x18x18xf32>,
    %c0_2 = arith.constant 0 : index
    %c0_3 = arith.constant 0 : index
    %c0_4 = arith.constant 0 : index
    %c0_5 = arith.constant 0 : index
    %2 = vector.load %arg1[%c0_2, %c0_3, %c0_4, %c0_5] : memref<1x4x16x16xf32, #tpu.memory_space<vmem>>, vector<1x4x16x16xf32>
    %3 = vector.shape_cast %2 : vector<1x4x16x16xf32> to vector<4x16x16xf32>
    %c0_6 = arith.constant 0 : index
    %c1 = arith.constant 1 : index
    %c1_7 = arith.constant 1 : index
    %4 = vector.load %arg15[%c0_6, %c1, %c1_7] : memref<4x18x18xf32, #tpu.memory_space<vmem>>, vector<4x16x16xf32>
    tpu.vector_store %arg15[%c0_6, %c1, %c1_7], %3 {strides = array<i32>} : memref<4x18x18xf32, #tpu.memory_space<vmem>>, vector<4x16x16xf32>,
    %c0_8 = arith.constant 0 : index
    %c0_9 = arith.constant 0 : index
    %c0_10 = arith.constant 0 : index
    %5 = tpu.strided_load %arg15[%c0_8, %c0_9, %c0_10] {strides = array<i32: 1, 2, 1>} : memref<4x18x18xf32, #tpu.memory_space<vmem>>, vector<4x8x18xf32>
    %6 = vector.shape_cast %5 : vector<4x8x18xf32> to vector<32x18xf32>
    %c0_11 = arith.constant 0 : index
    %c1_12 = arith.constant 1 : index
    %c0_13 = arith.constant 0 : index
    %7 = tpu.strided_load %arg15[%c0_11, %c1_12, %c0_13] {strides = array<i32: 1, 2, 1>} : memref<4x18x18xf32, #tpu.memory_space<vmem>>, vector<4x8x18xf32>
    %8 = vector.shape_cast %7 : vector<4x8x18xf32> to vector<32x18xf32>
    %c0_14 = arith.constant 0 : index
    %c2 = arith.constant 2 : index
    %c0_15 = arith.constant 0 : index
    %9 = tpu.strided_load %arg15[%c0_14, %c2, %c0_15] {strides = array<i32: 1, 2, 1>} : memref<4x18x18xf32, #tpu.memory_space<vmem>>, vector<4x8x18xf32>
    %10 = vector.shape_cast %9 : vector<4x8x18xf32> to vector<32x18xf32>
    %c0_16 = arith.constant 0 : index
    %c3 = arith.constant 3 : index
    %c0_17 = arith.constant 0 : index
    %11 = tpu.strided_load %arg15[%c0_16, %c3, %c0_17] {strides = array<i32: 1, 2, 1>} : memref<4x18x18xf32, #tpu.memory_space<vmem>>, vector<4x8x18xf32>
    %12 = vector.shape_cast %11 : vector<4x8x18xf32> to vector<32x18xf32>
    %13 = tpu.concatenate %6, %8, %10, %12 in 0 : vector<32x18xf32>, vector<32x18xf32>, vector<32x18xf32>, vector<32x18xf32> -> vector<128x18xf32>
    %c0_18 = arith.constant 0 : index
    %c0_19 = arith.constant 0 : index
    %14 = vector.load %arg4[%c0_18, %c0_19] : memref<18x32xf32, #tpu.memory_space<vmem>>, vector<18x32xf32>
    %cst_20 = arith.constant dense<0.000000e+00> : vector<128x32xf32>
    %15 = tpu.matmul %13, %14, %cst_20 {dimension_numbers = #tpu.dot_dimension_numbers<[1], [0], [0], [1], [0, 0, 1, 1], [], []>} : vector<128x18xf32>, vector<18x32xf32>, vector<128x32xf32> -> vector<128x32xf32>
    %c0_21 = arith.constant 0 : index
    %c0_22 = arith.constant 0 : index
    %16 = vector.load %arg2[%c0_21, %c0_22] : memref<64x288xf32, #tpu.memory_space<vmem>>, vector<64x288xf32>
    %17 = vector.extract_strided_slice %15 {offsets = [0, 0], sizes = [32, 8], strides = [1, 1]} : vector<128x32xf32> to vector<32x8xf32>
    %18 = vector.extract_strided_slice %15 {offsets = [0, 8], sizes = [32, 8], strides = [1, 1]} : vector<128x32xf32> to vector<32x8xf32>
    %19 = vector.extract_strided_slice %15 {offsets = [0, 16], sizes = [32, 8], strides = [1, 1]} : vector<128x32xf32> to vector<32x8xf32>
    %20 = vector.extract_strided_slice %15 {offsets = [32, 0], sizes = [32, 8], strides = [1, 1]} : vector<128x32xf32> to vector<32x8xf32>
    %21 = vector.extract_strided_slice %15 {offsets = [32, 8], sizes = [32, 8], strides = [1, 1]} : vector<128x32xf32> to vector<32x8xf32>
    %22 = vector.extract_strided_slice %15 {offsets = [32, 16], sizes = [32, 8], strides = [1, 1]} : vector<128x32xf32> to vector<32x8xf32>
    %23 = vector.extract_strided_slice %15 {offsets = [64, 0], sizes = [32, 8], strides = [1, 1]} : vector<128x32xf32> to vector<32x8xf32>
    %24 = vector.extract_strided_slice %15 {offsets = [64, 8], sizes = [32, 8], strides = [1, 1]} : vector<128x32xf32> to vector<32x8xf32>
    %25 = vector.extract_strided_slice %15 {offsets = [64, 16], sizes = [32, 8], strides = [1, 1]} : vector<128x32xf32> to vector<32x8xf32>
    %26 = tpu.concatenate %17, %18, %19, %20, %21, %22, %23, %24, %25 in 0 : vector<32x8xf32>, vector<32x8xf32>, vector<32x8xf32>, vector<32x8xf32>, vector<32x8xf32>, vector<32x8xf32>, vector<32x8xf32>, vector<32x8xf32>, vector<32x8xf32> -> vector<288x8xf32>
    %cst_23 = arith.constant dense<0.000000e+00> : vector<64x8xf32>
    %27 = tpu.matmul %16, %26, %cst_23 {dimension_numbers = #tpu.dot_dimension_numbers<[1], [0], [0], [1], [0, 0, 1, 1], [], []>} : vector<64x288xf32>, vector<288x8xf32>, vector<64x8xf32> -> vector<64x8xf32>
    %28 = vector.extract_strided_slice %15 {offsets = [0, 8], sizes = [32, 8], strides = [1, 1]} : vector<128x32xf32> to vector<32x8xf32>
    %29 = vector.extract_strided_slice %15 {offsets = [0, 16], sizes = [32, 8], strides = [1, 1]} : vector<128x32xf32> to vector<32x8xf32>
    %30 = vector.extract_strided_slice %15 {offsets = [0, 24], sizes = [32, 8], strides = [1, 1]} : vector<128x32xf32> to vector<32x8xf32>
    %31 = vector.extract_strided_slice %15 {offsets = [32, 8], sizes = [32, 8], strides = [1, 1]} : vector<128x32xf32> to vector<32x8xf32>
    %32 = vector.extract_strided_slice %15 {offsets = [32, 16], sizes = [32, 8], strides = [1, 1]} : vector<128x32xf32> to vector<32x8xf32>
    %33 = vector.extract_strided_slice %15 {offsets = [32, 24], sizes = [32, 8], strides = [1, 1]} : vector<128x32xf32> to vector<32x8xf32>
    %34 = vector.extract_strided_slice %15 {offsets = [64, 8], sizes = [32, 8], strides = [1, 1]} : vector<128x32xf32> to vector<32x8xf32>
    %35 = vector.extract_strided_slice %15 {offsets = [64, 16], sizes = [32, 8], strides = [1, 1]} : vector<128x32xf32> to vector<32x8xf32>
    %36 = vector.extract_strided_slice %15 {offsets = [64, 24], sizes = [32, 8], strides = [1, 1]} : vector<128x32xf32> to vector<32x8xf32>
    %37 = tpu.concatenate %28, %29, %30, %31, %32, %33, %34, %35, %36 in 0 : vector<32x8xf32>, vector<32x8xf32>, vector<32x8xf32>, vector<32x8xf32>, vector<32x8xf32>, vector<32x8xf32>, vector<32x8xf32>, vector<32x8xf32>, vector<32x8xf32> -> vector<288x8xf32>
    %cst_24 = arith.constant dense<0.000000e+00> : vector<64x8xf32>
    %38 = tpu.matmul %16, %37, %cst_24 {dimension_numbers = #tpu.dot_dimension_numbers<[1], [0], [0], [1], [0, 0, 1, 1], [], []>} : vector<64x288xf32>, vector<288x8xf32>, vector<64x8xf32> -> vector<64x8xf32>
    %39 = arith.maximumf %27, %38 : vector<64x8xf32>
    %40 = vector.extract_strided_slice %15 {offsets = [32, 0], sizes = [32, 8], strides = [1, 1]} : vector<128x32xf32> to vector<32x8xf32>
    %41 = vector.extract_strided_slice %15 {offsets = [32, 8], sizes = [32, 8], strides = [1, 1]} : vector<128x32xf32> to vector<32x8xf32>
    %42 = vector.extract_strided_slice %15 {offsets = [32, 16], sizes = [32, 8], strides = [1, 1]} : vector<128x32xf32> to vector<32x8xf32>
    %43 = vector.extract_strided_slice %15 {offsets = [64, 0], sizes = [32, 8], strides = [1, 1]} : vector<128x32xf32> to vector<32x8xf32>
    %44 = vector.extract_strided_slice %15 {offsets = [64, 8], sizes = [32, 8], strides = [1, 1]} : vector<128x32xf32> to vector<32x8xf32>
    %45 = vector.extract_strided_slice %15 {offsets = [64, 16], sizes = [32, 8], strides = [1, 1]} : vector<128x32xf32> to vector<32x8xf32>
    %46 = vector.extract_strided_slice %15 {offsets = [96, 0], sizes = [32, 8], strides = [1, 1]} : vector<128x32xf32> to vector<32x8xf32>
    %47 = vector.extract_strided_slice %15 {offsets = [96, 8], sizes = [32, 8], strides = [1, 1]} : vector<128x32xf32> to vector<32x8xf32>
    %48 = vector.extract_strided_slice %15 {offsets = [96, 16], sizes = [32, 8], strides = [1, 1]} : vector<128x32xf32> to vector<32x8xf32>
    %49 = tpu.concatenate %40, %41, %42, %43, %44, %45, %46, %47, %48 in 0 : vector<32x8xf32>, vector<32x8xf32>, vector<32x8xf32>, vector<32x8xf32>, vector<32x8xf32>, vector<32x8xf32>, vector<32x8xf32>, vector<32x8xf32>, vector<32x8xf32> -> vector<288x8xf32>
    %cst_25 = arith.constant dense<0.000000e+00> : vector<64x8xf32>
    %50 = tpu.matmul %16, %49, %cst_25 {dimension_numbers = #tpu.dot_dimension_numbers<[1], [0], [0], [1], [0, 0, 1, 1], [], []>} : vector<64x288xf32>, vector<288x8xf32>, vector<64x8xf32> -> vector<64x8xf32>
    %51 = arith.maximumf %39, %50 : vector<64x8xf32>
    %52 = vector.extract_strided_slice %15 {offsets = [32, 8], sizes = [32, 8], strides = [1, 1]} : vector<128x32xf32> to vector<32x8xf32>
    %53 = vector.extract_strided_slice %15 {offsets = [32, 16], sizes = [32, 8], strides = [1, 1]} : vector<128x32xf32> to vector<32x8xf32>
    %54 = vector.extract_strided_slice %15 {offsets = [32, 24], sizes = [32, 8], strides = [1, 1]} : vector<128x32xf32> to vector<32x8xf32>
    %55 = vector.extract_strided_slice %15 {offsets = [64, 8], sizes = [32, 8], strides = [1, 1]} : vector<128x32xf32> to vector<32x8xf32>
    %56 = vector.extract_strided_slice %15 {offsets = [64, 16], sizes = [32, 8], strides = [1, 1]} : vector<128x32xf32> to vector<32x8xf32>
    %57 = vector.extract_strided_slice %15 {offsets = [64, 24], sizes = [32, 8], strides = [1, 1]} : vector<128x32xf32> to vector<32x8xf32>
    %58 = vector.extract_strided_slice %15 {offsets = [96, 8], sizes = [32, 8], strides = [1, 1]} : vector<128x32xf32> to vector<32x8xf32>
    %59 = vector.extract_strided_slice %15 {offsets = [96, 16], sizes = [32, 8], strides = [1, 1]} : vector<128x32xf32> to vector<32x8xf32>
    %60 = vector.extract_strided_slice %15 {offsets = [96, 24], sizes = [32, 8], strides = [1, 1]} : vector<128x32xf32> to vector<32x8xf32>
    %61 = tpu.concatenate %52, %53, %54, %55, %56, %57, %58, %59, %60 in 0 : vector<32x8xf32>, vector<32x8xf32>, vector<32x8xf32>, vector<32x8xf32>, vector<32x8xf32>, vector<32x8xf32>, vector<32x8xf32>, vector<32x8xf32>, vector<32x8xf32> -> vector<288x8xf32>
    %cst_26 = arith.constant dense<0.000000e+00> : vector<64x8xf32>
    %62 = tpu.matmul %16, %61, %cst_26 {dimension_numbers = #tpu.dot_dimension_numbers<[1], [0], [0], [1], [0, 0, 1, 1], [], []>} : vector<64x288xf32>, vector<288x8xf32>, vector<64x8xf32> -> vector<64x8xf32>
    %63 = arith.maximumf %51, %62 : vector<64x8xf32>
    %c0_27 = arith.constant 0 : index
    %c0_28 = arith.constant 0 : index
    %64 = vector.load %arg3[%c0_27, %c0_28] : memref<64x1xf32, #tpu.memory_space<vmem>>, vector<64x1xf32>
    %65 = vector.broadcast %64 : vector<64x1xf32> to vector<64x8xf32>
    %66 = arith.addf %63, %65 : vector<64x8xf32>
    %cst_29 = arith.constant 0.000000e+00 : f32
    %67 = vector.broadcast %cst_29 : f32 to vector<64x8xf32>
    %68 = arith.maximumf %66, %67 : vector<64x8xf32>
    %cst_30 = arith.constant 0.000000e+00 : f32
    %69 = vector.broadcast %cst_30 : f32 to vector<8x10x10xf32>
    %c0_31 = arith.constant 0 : index
    %c0_32 = arith.constant 0 : index
    %c0_33 = arith.constant 0 : index
    %70 = vector.load %arg16[%c0_31, %c0_32, %c0_33] : memref<8x10x10xf32, #tpu.memory_space<vmem>>, vector<8x10x10xf32>
    tpu.vector_store %arg16[%c0_31, %c0_32, %c0_33], %69 {strides = array<i32>} : memref<8x10x10xf32, #tpu.memory_space<vmem>>, vector<8x10x10xf32>,
    %71 = vector.shape_cast %68 : vector<64x8xf32> to vector<8x8x8xf32>
    %c0_34 = arith.constant 0 : index
    %c1_35 = arith.constant 1 : index
    %c1_36 = arith.constant 1 : index
    %72 = vector.load %arg16[%c0_34, %c1_35, %c1_36] : memref<8x10x10xf32, #tpu.memory_space<vmem>>, vector<8x8x8xf32>
    tpu.vector_store %arg16[%c0_34, %c1_35, %c1_36], %71 {strides = array<i32>} : memref<8x10x10xf32, #tpu.memory_space<vmem>>, vector<8x8x8xf32>,
    %c0_37 = arith.constant 0 : index
    %c0_38 = arith.constant 0 : index
    %c0_39 = arith.constant 0 : index
    %73 = tpu.strided_load %arg16[%c0_37, %c0_38, %c0_39] {strides = array<i32: 1, 2, 1>} : memref<8x10x10xf32, #tpu.memory_space<vmem>>, vector<8x4x10xf32>
    %74 = vector.shape_cast %73 : vector<8x4x10xf32> to vector<32x10xf32>
    %c0_40 = arith.constant 0 : index
    %c1_41 = arith.constant 1 : index
    %c0_42 = arith.constant 0 : index
    %75 = tpu.strided_load %arg16[%c0_40, %c1_41, %c0_42] {strides = array<i32: 1, 2, 1>} : memref<8x10x10xf32, #tpu.memory_space<vmem>>, vector<8x4x10xf32>
    %76 = vector.shape_cast %75 : vector<8x4x10xf32> to vector<32x10xf32>
    %c0_43 = arith.constant 0 : index
    %c2_44 = arith.constant 2 : index
    %c0_45 = arith.constant 0 : index
    %77 = tpu.strided_load %arg16[%c0_43, %c2_44, %c0_45] {strides = array<i32: 1, 2, 1>} : memref<8x10x10xf32, #tpu.memory_space<vmem>>, vector<8x4x10xf32>
    %78 = vector.shape_cast %77 : vector<8x4x10xf32> to vector<32x10xf32>
    %c0_46 = arith.constant 0 : index
    %c3_47 = arith.constant 3 : index
    %c0_48 = arith.constant 0 : index
    %79 = tpu.strided_load %arg16[%c0_46, %c3_47, %c0_48] {strides = array<i32: 1, 2, 1>} : memref<8x10x10xf32, #tpu.memory_space<vmem>>, vector<8x4x10xf32>
    %80 = vector.shape_cast %79 : vector<8x4x10xf32> to vector<32x10xf32>
    %81 = tpu.concatenate %74, %76, %78, %80 in 0 : vector<32x10xf32>, vector<32x10xf32>, vector<32x10xf32>, vector<32x10xf32> -> vector<128x10xf32>
    %c0_49 = arith.constant 0 : index
    %c0_50 = arith.constant 0 : index
    %82 = vector.load %arg7[%c0_49, %c0_50] : memref<10x16xf32, #tpu.memory_space<vmem>>, vector<10x16xf32>
    %cst_51 = arith.constant dense<0.000000e+00> : vector<128x16xf32>
    %83 = tpu.matmul %81, %82, %cst_51 {dimension_numbers = #tpu.dot_dimension_numbers<[1], [0], [0], [1], [0, 0, 1, 1], [], []>} : vector<128x10xf32>, vector<10x16xf32>, vector<128x16xf32> -> vector<128x16xf32>
    %c0_52 = arith.constant 0 : index
    %c0_53 = arith.constant 0 : index
    %84 = vector.load %arg5[%c0_52, %c0_53] : memref<32x288xf32, #tpu.memory_space<vmem>>, vector<32x288xf32>
    %85 = vector.extract_strided_slice %83 {offsets = [0, 0], sizes = [32, 4], strides = [1, 1]} : vector<128x16xf32> to vector<32x4xf32>
    %86 = vector.extract_strided_slice %83 {offsets = [0, 4], sizes = [32, 4], strides = [1, 1]} : vector<128x16xf32> to vector<32x4xf32>
    %87 = vector.extract_strided_slice %83 {offsets = [0, 8], sizes = [32, 4], strides = [1, 1]} : vector<128x16xf32> to vector<32x4xf32>
    %88 = vector.extract_strided_slice %83 {offsets = [32, 0], sizes = [32, 4], strides = [1, 1]} : vector<128x16xf32> to vector<32x4xf32>
    %89 = vector.extract_strided_slice %83 {offsets = [32, 4], sizes = [32, 4], strides = [1, 1]} : vector<128x16xf32> to vector<32x4xf32>
    %90 = vector.extract_strided_slice %83 {offsets = [32, 8], sizes = [32, 4], strides = [1, 1]} : vector<128x16xf32> to vector<32x4xf32>
    %91 = vector.extract_strided_slice %83 {offsets = [64, 0], sizes = [32, 4], strides = [1, 1]} : vector<128x16xf32> to vector<32x4xf32>
    %92 = vector.extract_strided_slice %83 {offsets = [64, 4], sizes = [32, 4], strides = [1, 1]} : vector<128x16xf32> to vector<32x4xf32>
    %93 = vector.extract_strided_slice %83 {offsets = [64, 8], sizes = [32, 4], strides = [1, 1]} : vector<128x16xf32> to vector<32x4xf32>
    %94 = tpu.concatenate %85, %86, %87, %88, %89, %90, %91, %92, %93 in 0 : vector<32x4xf32>, vector<32x4xf32>, vector<32x4xf32>, vector<32x4xf32>, vector<32x4xf32>, vector<32x4xf32>, vector<32x4xf32>, vector<32x4xf32>, vector<32x4xf32> -> vector<288x4xf32>
    %cst_54 = arith.constant dense<0.000000e+00> : vector<32x4xf32>
    %95 = tpu.matmul %84, %94, %cst_54 {dimension_numbers = #tpu.dot_dimension_numbers<[1], [0], [0], [1], [0, 0, 1, 1], [], []>} : vector<32x288xf32>, vector<288x4xf32>, vector<32x4xf32> -> vector<32x4xf32>
    %96 = vector.extract_strided_slice %83 {offsets = [0, 4], sizes = [32, 4], strides = [1, 1]} : vector<128x16xf32> to vector<32x4xf32>
    %97 = vector.extract_strided_slice %83 {offsets = [0, 8], sizes = [32, 4], strides = [1, 1]} : vector<128x16xf32> to vector<32x4xf32>
    %98 = vector.extract_strided_slice %83 {offsets = [0, 12], sizes = [32, 4], strides = [1, 1]} : vector<128x16xf32> to vector<32x4xf32>
    %99 = vector.extract_strided_slice %83 {offsets = [32, 4], sizes = [32, 4], strides = [1, 1]} : vector<128x16xf32> to vector<32x4xf32>
    %100 = vector.extract_strided_slice %83 {offsets = [32, 8], sizes = [32, 4], strides = [1, 1]} : vector<128x16xf32> to vector<32x4xf32>
    %101 = vector.extract_strided_slice %83 {offsets = [32, 12], sizes = [32, 4], strides = [1, 1]} : vector<128x16xf32> to vector<32x4xf32>
    %102 = vector.extract_strided_slice %83 {offsets = [64, 4], sizes = [32, 4], strides = [1, 1]} : vector<128x16xf32> to vector<32x4xf32>
    %103 = vector.extract_strided_slice %83 {offsets = [64, 8], sizes = [32, 4], strides = [1, 1]} : vector<128x16xf32> to vector<32x4xf32>
    %104 = vector.extract_strided_slice %83 {offsets = [64, 12], sizes = [32, 4], strides = [1, 1]} : vector<128x16xf32> to vector<32x4xf32>
    %105 = tpu.concatenate %96, %97, %98, %99, %100, %101, %102, %103, %104 in 0 : vector<32x4xf32>, vector<32x4xf32>, vector<32x4xf32>, vector<32x4xf32>, vector<32x4xf32>, vector<32x4xf32>, vector<32x4xf32>, vector<32x4xf32>, vector<32x4xf32> -> vector<288x4xf32>
    %cst_55 = arith.constant dense<0.000000e+00> : vector<32x4xf32>
    %106 = tpu.matmul %84, %105, %cst_55 {dimension_numbers = #tpu.dot_dimension_numbers<[1], [0], [0], [1], [0, 0, 1, 1], [], []>} : vector<32x288xf32>, vector<288x4xf32>, vector<32x4xf32> -> vector<32x4xf32>
    %107 = arith.maximumf %95, %106 : vector<32x4xf32>
    %108 = vector.extract_strided_slice %83 {offsets = [32, 0], sizes = [32, 4], strides = [1, 1]} : vector<128x16xf32> to vector<32x4xf32>
    %109 = vector.extract_strided_slice %83 {offsets = [32, 4], sizes = [32, 4], strides = [1, 1]} : vector<128x16xf32> to vector<32x4xf32>
    %110 = vector.extract_strided_slice %83 {offsets = [32, 8], sizes = [32, 4], strides = [1, 1]} : vector<128x16xf32> to vector<32x4xf32>
    %111 = vector.extract_strided_slice %83 {offsets = [64, 0], sizes = [32, 4], strides = [1, 1]} : vector<128x16xf32> to vector<32x4xf32>
    %112 = vector.extract_strided_slice %83 {offsets = [64, 4], sizes = [32, 4], strides = [1, 1]} : vector<128x16xf32> to vector<32x4xf32>
    %113 = vector.extract_strided_slice %83 {offsets = [64, 8], sizes = [32, 4], strides = [1, 1]} : vector<128x16xf32> to vector<32x4xf32>
    %114 = vector.extract_strided_slice %83 {offsets = [96, 0], sizes = [32, 4], strides = [1, 1]} : vector<128x16xf32> to vector<32x4xf32>
    %115 = vector.extract_strided_slice %83 {offsets = [96, 4], sizes = [32, 4], strides = [1, 1]} : vector<128x16xf32> to vector<32x4xf32>
    %116 = vector.extract_strided_slice %83 {offsets = [96, 8], sizes = [32, 4], strides = [1, 1]} : vector<128x16xf32> to vector<32x4xf32>
    %117 = tpu.concatenate %108, %109, %110, %111, %112, %113, %114, %115, %116 in 0 : vector<32x4xf32>, vector<32x4xf32>, vector<32x4xf32>, vector<32x4xf32>, vector<32x4xf32>, vector<32x4xf32>, vector<32x4xf32>, vector<32x4xf32>, vector<32x4xf32> -> vector<288x4xf32>
    %cst_56 = arith.constant dense<0.000000e+00> : vector<32x4xf32>
    %118 = tpu.matmul %84, %117, %cst_56 {dimension_numbers = #tpu.dot_dimension_numbers<[1], [0], [0], [1], [0, 0, 1, 1], [], []>} : vector<32x288xf32>, vector<288x4xf32>, vector<32x4xf32> -> vector<32x4xf32>
    %119 = arith.maximumf %107, %118 : vector<32x4xf32>
    %120 = vector.extract_strided_slice %83 {offsets = [32, 4], sizes = [32, 4], strides = [1, 1]} : vector<128x16xf32> to vector<32x4xf32>
    %121 = vector.extract_strided_slice %83 {offsets = [32, 8], sizes = [32, 4], strides = [1, 1]} : vector<128x16xf32> to vector<32x4xf32>
    %122 = vector.extract_strided_slice %83 {offsets = [32, 12], sizes = [32, 4], strides = [1, 1]} : vector<128x16xf32> to vector<32x4xf32>
    %123 = vector.extract_strided_slice %83 {offsets = [64, 4], sizes = [32, 4], strides = [1, 1]} : vector<128x16xf32> to vector<32x4xf32>
    %124 = vector.extract_strided_slice %83 {offsets = [64, 8], sizes = [32, 4], strides = [1, 1]} : vector<128x16xf32> to vector<32x4xf32>
    %125 = vector.extract_strided_slice %83 {offsets = [64, 12], sizes = [32, 4], strides = [1, 1]} : vector<128x16xf32> to vector<32x4xf32>
    %126 = vector.extract_strided_slice %83 {offsets = [96, 4], sizes = [32, 4], strides = [1, 1]} : vector<128x16xf32> to vector<32x4xf32>
    %127 = vector.extract_strided_slice %83 {offsets = [96, 8], sizes = [32, 4], strides = [1, 1]} : vector<128x16xf32> to vector<32x4xf32>
    %128 = vector.extract_strided_slice %83 {offsets = [96, 12], sizes = [32, 4], strides = [1, 1]} : vector<128x16xf32> to vector<32x4xf32>
    %129 = tpu.concatenate %120, %121, %122, %123, %124, %125, %126, %127, %128 in 0 : vector<32x4xf32>, vector<32x4xf32>, vector<32x4xf32>, vector<32x4xf32>, vector<32x4xf32>, vector<32x4xf32>, vector<32x4xf32>, vector<32x4xf32>, vector<32x4xf32> -> vector<288x4xf32>
    %cst_57 = arith.constant dense<0.000000e+00> : vector<32x4xf32>
    %130 = tpu.matmul %84, %129, %cst_57 {dimension_numbers = #tpu.dot_dimension_numbers<[1], [0], [0], [1], [0, 0, 1, 1], [], []>} : vector<32x288xf32>, vector<288x4xf32>, vector<32x4xf32> -> vector<32x4xf32>
    %131 = arith.maximumf %119, %130 : vector<32x4xf32>
    %c0_58 = arith.constant 0 : index
    %c0_59 = arith.constant 0 : index
    %132 = vector.load %arg6[%c0_58, %c0_59] : memref<32x1xf32, #tpu.memory_space<vmem>>, vector<32x1xf32>
    %133 = vector.broadcast %132 : vector<32x1xf32> to vector<32x4xf32>
    %134 = arith.addf %131, %133 : vector<32x4xf32>
    %cst_60 = arith.constant 0.000000e+00 : f32
    %135 = vector.broadcast %cst_60 : f32 to vector<32x4xf32>
    %136 = arith.maximumf %134, %135 : vector<32x4xf32>
    %c0_61 = arith.constant 0 : index
    %c0_62 = arith.constant 0 : index
    %137 = vector.load %arg9[%c0_61, %c0_62] : memref<32x1xf32, #tpu.memory_space<vmem>>, vector<32x1xf32>
    %c0_63 = arith.constant 0 : index
    %c0_64 = arith.constant 0 : index
    %c0_65 = arith.constant 0 : index
    %138 = vector.load %arg8[%c0_63, %c0_64, %c0_65] : memref<4x32x32xf32, #tpu.memory_space<vmem>>, vector<1x32x32xf32>
    %139 = vector.shape_cast %138 : vector<1x32x32xf32> to vector<32x32xf32>
    %140 = vector.extract_strided_slice %136 {offsets = [0, 0], sizes = [32, 1], strides = [1, 1]} : vector<32x4xf32> to vector<32x1xf32>
    %cst_66 = arith.constant dense<0.000000e+00> : vector<32x1xf32>
    %141 = tpu.matmul %139, %140, %cst_66 {dimension_numbers = #tpu.dot_dimension_numbers<[1], [0], [0], [1], [0, 0, 1, 1], [], []>} : vector<32x32xf32>, vector<32x1xf32>, vector<32x1xf32> -> vector<32x1xf32>
    %142 = arith.addf %137, %141 : vector<32x1xf32>
    %c1_67 = arith.constant 1 : index
    %c0_68 = arith.constant 0 : index
    %c0_69 = arith.constant 0 : index
    %143 = vector.load %arg8[%c1_67, %c0_68, %c0_69] : memref<4x32x32xf32, #tpu.memory_space<vmem>>, vector<1x32x32xf32>
    %144 = vector.shape_cast %143 : vector<1x32x32xf32> to vector<32x32xf32>
    %145 = vector.extract_strided_slice %136 {offsets = [0, 1], sizes = [32, 1], strides = [1, 1]} : vector<32x4xf32> to vector<32x1xf32>
    %cst_70 = arith.constant dense<0.000000e+00> : vector<32x1xf32>
    %146 = tpu.matmul %144, %145, %cst_70 {dimension_numbers = #tpu.dot_dimension_numbers<[1], [0], [0], [1], [0, 0, 1, 1], [], []>} : vector<32x32xf32>, vector<32x1xf32>, vector<32x1xf32> -> vector<32x1xf32>
    %147 = arith.addf %142, %146 : vector<32x1xf32>
    %c2_71 = arith.constant 2 : index
    %c0_72 = arith.constant 0 : index
    %c0_73 = arith.constant 0 : index
    %148 = vector.load %arg8[%c2_71, %c0_72, %c0_73] : memref<4x32x32xf32, #tpu.memory_space<vmem>>, vector<1x32x32xf32>
    %149 = vector.shape_cast %148 : vector<1x32x32xf32> to vector<32x32xf32>
    %150 = vector.extract_strided_slice %136 {offsets = [0, 2], sizes = [32, 1], strides = [1, 1]} : vector<32x4xf32> to vector<32x1xf32>
    %cst_74 = arith.constant dense<0.000000e+00> : vector<32x1xf32>
    %151 = tpu.matmul %149, %150, %cst_74 {dimension_numbers = #tpu.dot_dimension_numbers<[1], [0], [0], [1], [0, 0, 1, 1], [], []>} : vector<32x32xf32>, vector<32x1xf32>, vector<32x1xf32> -> vector<32x1xf32>
    %152 = arith.addf %147, %151 : vector<32x1xf32>
    %c3_75 = arith.constant 3 : index
    %c0_76 = arith.constant 0 : index
    %c0_77 = arith.constant 0 : index
    %153 = vector.load %arg8[%c3_75, %c0_76, %c0_77] : memref<4x32x32xf32, #tpu.memory_space<vmem>>, vector<1x32x32xf32>
    %154 = vector.shape_cast %153 : vector<1x32x32xf32> to vector<32x32xf32>
    %155 = vector.extract_strided_slice %136 {offsets = [0, 3], sizes = [32, 1], strides = [1, 1]} : vector<32x4xf32> to vector<32x1xf32>
    %cst_78 = arith.constant dense<0.000000e+00> : vector<32x1xf32>
    %156 = tpu.matmul %154, %155, %cst_78 {dimension_numbers = #tpu.dot_dimension_numbers<[1], [0], [0], [1], [0, 0, 1, 1], [], []>} : vector<32x32xf32>, vector<32x1xf32>, vector<32x1xf32> -> vector<32x1xf32>
    %157 = arith.addf %152, %156 : vector<32x1xf32>
    %cst_79 = arith.constant 0.000000e+00 : f32
    %158 = vector.broadcast %cst_79 : f32 to vector<32x1xf32>
    %159 = arith.maximumf %157, %158 : vector<32x1xf32>
    %c0_80 = arith.constant 0 : index
    %c0_81 = arith.constant 0 : index
    %160 = vector.load %arg10[%c0_80, %c0_81] : memref<32x32xf32, #tpu.memory_space<vmem>>, vector<32x32xf32>
    %cst_82 = arith.constant dense<0.000000e+00> : vector<32x1xf32>
    %161 = tpu.matmul %160, %159, %cst_82 {dimension_numbers = #tpu.dot_dimension_numbers<[1], [0], [0], [1], [0, 0, 1, 1], [], []>} : vector<32x32xf32>, vector<32x1xf32>, vector<32x1xf32> -> vector<32x1xf32>
    %c0_83 = arith.constant 0 : index
    %c0_84 = arith.constant 0 : index
    %162 = vector.load %arg11[%c0_83, %c0_84] : memref<32x1xf32, #tpu.memory_space<vmem>>, vector<32x1xf32>
    %163 = arith.addf %161, %162 : vector<32x1xf32>
    %cst_85 = arith.constant 0.000000e+00 : f32
    %164 = vector.broadcast %cst_85 : f32 to vector<32x1xf32>
    %165 = arith.maximumf %163, %164 : vector<32x1xf32>
    %c0_86 = arith.constant 0 : index
    %c0_87 = arith.constant 0 : index
    %166 = vector.load %arg12[%c0_86, %c0_87] : memref<6x32xf32, #tpu.memory_space<vmem>>, vector<6x32xf32>
    %cst_88 = arith.constant dense<0.000000e+00> : vector<6x1xf32>
    %167 = tpu.matmul %166, %165, %cst_88 {dimension_numbers = #tpu.dot_dimension_numbers<[1], [0], [0], [1], [0, 0, 1, 1], [], []>} : vector<6x32xf32>, vector<32x1xf32>, vector<6x1xf32> -> vector<6x1xf32>
    %c0_89 = arith.constant 0 : index
    %c0_90 = arith.constant 0 : index
    %168 = vector.load %arg13[%c0_89, %c0_90] : memref<6x1xf32, #tpu.memory_space<vmem>>, vector<6x1xf32>
    %169 = arith.addf %167, %168 : vector<6x1xf32>
    %c0_91 = arith.constant 0 : index
    %c0_92 = arith.constant 0 : index
    %c0_93 = arith.constant 0 : index
    %170 = vector.load %arg14[%c0_91, %c0_92, %c0_93] : memref<1x6x1xf32, #tpu.memory_space<vmem>>, vector<1x6x1xf32>
    %171 = vector.shape_cast %170 : vector<1x6x1xf32> to vector<6x1xf32>
    %172 = vector.shape_cast %169 : vector<6x1xf32> to vector<1x6x1xf32>
    tpu.vector_store %arg14[%c0_91, %c0_92, %c0_93], %172 {strides = array<i32>} : memref<1x6x1xf32, #tpu.memory_space<vmem>>, vector<1x6x1xf32>,
    return
  }
  func.func @transform_0(%arg0: i32) -> (i32, i32, i32, i32) {
    %c0_i32 = arith.constant 0 : i32
    %c0_i32_0 = arith.constant 0 : i32
    %c0_i32_1 = arith.constant 0 : i32
    %c0_i32_2 = arith.constant 0 : i32
    return %arg0, %c0_i32, %c0_i32_0, %c0_i32_1 : i32, i32, i32, i32
  }
  func.func @transform_1(%arg0: i32) -> (i32, i32) {
    %c0_i32 = arith.constant 0 : i32
    %c0_i32_0 = arith.constant 0 : i32
    %c0_i32_1 = arith.constant 0 : i32
    return %c0_i32, %c0_i32_0 : i32, i32
  }
  func.func @transform_2(%arg0: i32) -> (i32, i32) {
    %c0_i32 = arith.constant 0 : i32
    %c0_i32_0 = arith.constant 0 : i32
    %c0_i32_1 = arith.constant 0 : i32
    return %c0_i32, %c0_i32_0 : i32, i32
  }
  func.func @transform_3(%arg0: i32) -> (i32, i32) {
    %c0_i32 = arith.constant 0 : i32
    %c0_i32_0 = arith.constant 0 : i32
    %c0_i32_1 = arith.constant 0 : i32
    return %c0_i32, %c0_i32_0 : i32, i32
  }
  func.func @transform_4(%arg0: i32) -> (i32, i32) {
    %c0_i32 = arith.constant 0 : i32
    %c0_i32_0 = arith.constant 0 : i32
    %c0_i32_1 = arith.constant 0 : i32
    return %c0_i32, %c0_i32_0 : i32, i32
  }
  func.func @transform_5(%arg0: i32) -> (i32, i32) {
    %c0_i32 = arith.constant 0 : i32
    %c0_i32_0 = arith.constant 0 : i32
    %c0_i32_1 = arith.constant 0 : i32
    return %c0_i32, %c0_i32_0 : i32, i32
  }
  func.func @transform_6(%arg0: i32) -> (i32, i32) {
    %c0_i32 = arith.constant 0 : i32
    %c0_i32_0 = arith.constant 0 : i32
    %c0_i32_1 = arith.constant 0 : i32
    return %c0_i32, %c0_i32_0 : i32, i32
  }
  func.func @transform_7(%arg0: i32) -> (i32, i32, i32) {
    %c0_i32 = arith.constant 0 : i32
    %c0_i32_0 = arith.constant 0 : i32
    %c0_i32_1 = arith.constant 0 : i32
    %c0_i32_2 = arith.constant 0 : i32
    return %c0_i32, %c0_i32_0, %c0_i32_1 : i32, i32, i32
  }
  func.func @transform_8(%arg0: i32) -> (i32, i32) {
    %c0_i32 = arith.constant 0 : i32
    %c0_i32_0 = arith.constant 0 : i32
    %c0_i32_1 = arith.constant 0 : i32
    return %c0_i32, %c0_i32_0 : i32, i32
  }
  func.func @transform_9(%arg0: i32) -> (i32, i32) {
    %c0_i32 = arith.constant 0 : i32
    %c0_i32_0 = arith.constant 0 : i32
    %c0_i32_1 = arith.constant 0 : i32
    return %c0_i32, %c0_i32_0 : i32, i32
  }
  func.func @transform_10(%arg0: i32) -> (i32, i32) {
    %c0_i32 = arith.constant 0 : i32
    %c0_i32_0 = arith.constant 0 : i32
    %c0_i32_1 = arith.constant 0 : i32
    return %c0_i32, %c0_i32_0 : i32, i32
  }
  func.func @transform_11(%arg0: i32) -> (i32, i32) {
    %c0_i32 = arith.constant 0 : i32
    %c0_i32_0 = arith.constant 0 : i32
    %c0_i32_1 = arith.constant 0 : i32
    return %c0_i32, %c0_i32_0 : i32, i32
  }
  func.func @transform_12(%arg0: i32) -> (i32, i32) {
    %c0_i32 = arith.constant 0 : i32
    %c0_i32_0 = arith.constant 0 : i32
    %c0_i32_1 = arith.constant 0 : i32
    return %c0_i32, %c0_i32_0 : i32, i32
  }
  func.func @transform_13(%arg0: i32) -> (i32, i32, i32) {
    %c0_i32 = arith.constant 0 : i32
    %c0_i32_0 = arith.constant 0 : i32
    %c0_i32_1 = arith.constant 0 : i32
    return %arg0, %c0_i32, %c0_i32_0 : i32, i32, i32
  }
}

</mosaic_0001>

<llo_original>
// kernel: qnet_duel_forward.1
$region0: #{qnet_duel_forward.1}
  #allocation0 [shape = 'u32[]', space=smem, size = 0x4, offset = 0x4, fixed_abs, tag = 'smem constant byte address 0x4 - core index']
  #allocation1 [shape = 'u32[144,128]{1,0:T(1,128)}', space=vmem, size = 0x12000, scoped, tag = 'internal scratch']
  #allocation2 [shape = 'f32[4,18,18]{2,1,0:T(8,128)}', space=vmem, size = 0xc000, scoped, tag = 'scratch operand']
  #allocation3 [shape = 'f32[8,10,10]{2,1,0:T(8,128)}', space=vmem, size = 0x10000, scoped, tag = 'scratch operand']
  %s0 = inlined_call_operand.hbm [shape: f32[2,4,16,16], index: 0, kind: input, shape index: {}]
  %s1 = inlined_call_operand.vmem [shape: f32[64,288], index: 1, kind: input, shape index: {}]
  %s2 = inlined_call_operand.vmem [shape: f32[64,1], index: 2, kind: input, shape index: {}]
  %s3 = inlined_call_operand.hbm [shape: f32[18,32], index: 3, kind: input, shape index: {}]
  %s4 = inlined_call_operand.hbm [shape: f32[32,288], index: 4, kind: input, shape index: {}]
  %s5 = inlined_call_operand.vmem [shape: f32[32,1], index: 5, kind: input, shape index: {}]
  %s6 = inlined_call_operand.vmem [shape: f32[10,16], index: 6, kind: input, shape index: {}]
  %s7 = inlined_call_operand.hbm [shape: f32[4,32,32], index: 7, kind: input, shape index: {}]
  %s8 = inlined_call_operand.vmem [shape: f32[32,1], index: 8, kind: input, shape index: {}]
  %s9 = inlined_call_operand.hbm [shape: f32[32,32], index: 9, kind: input, shape index: {}]
  %s10 = inlined_call_operand.vmem [shape: f32[32,1], index: 10, kind: input, shape index: {}]
  %s11 = inlined_call_operand.hbm [shape: f32[6,32], index: 11, kind: input, shape index: {}]
  %s12 = inlined_call_operand.vmem [shape: f32[6,1], index: 12, kind: input, shape index: {}]
  %s13 = inlined_call_operand.vmem [shape: f32[2,6,1], index: 13, kind: output, shape index: {}]
  %s14 = sld [smem:[#allocation0]]
  $region109: #{qnet_duel_forward.1} parent=0
    _
  %s16 = ssub.s32 1, %s14
  %s17 = scalar_select 0, %s16, %s14
  $region1: #{qnet_duel_forward.1} parent=0
    #allocation4 [shape = 'u8[65536]{0}', space=vmem, size = 0x10000, scoped, tag = 'input window, operand 0']
    #allocation5 [shape = 's32[2]{0}', space=sflag, size = 0x8, scoped, tag = 'scoped memory for qnet_duel_forward.1']
    #allocation6 [shape = 'u8[12288]{0}', space=vmem, size = 0x3000, scoped, tag = 'input window, operand 3, single buffered']
    #allocation7 [shape = 's32[1]{0}', space=sflag, size = 0x4, scoped, tag = 'scoped memory for qnet_duel_forward.1']
    #allocation8 [shape = 'u8[49152]{0}', space=vmem, size = 0xc000, scoped, tag = 'input window, operand 4, single buffered']
    #allocation9 [shape = 'u8[65536]{0}', space=vmem, size = 0x10000, scoped, tag = 'input window, operand 7, single buffered']
    #allocation10 [shape = 's32[1]{0}', space=sflag, size = 0x4, scoped, tag = 'scoped memory for qnet_duel_forward.1']
    #allocation11 [shape = 'u8[16384]{0}', space=vmem, size = 0x4000, scoped, tag = 'input window, operand 9, single buffered']
    #allocation12 [shape = 'u8[4096]{0}', space=vmem, size = 0x1000, scoped, tag = 'input window, operand 11, single buffered']
    #allocation13 [shape = 's32[1]{0}', space=sflag, size = 0x4, scoped, tag = 'scoped memory for qnet_duel_forward.1']
    %18 = vsyncpa [#allocation5], 0
    %s19 = scalar_lea.sflag [#allocation5], 1
    %20 = vsyncpa %s19, 0
    %21 = vsyncpa [#allocation7], 0
    %22 = vsyncpa [#allocation10], 0
    %23 = vsyncpa [#allocation13], 0
    loop: start=0, step=1, limit=4
    $region2: #{qnet_duel_forward.1} parent=1 // loop_pre_header
      _
    $region3: #{qnet_duel_forward.1} parent=1 // loop_header
      %s25 = sphi 0, %s29
      %p26 = scmp.ge.s32.totalorder %s25, 4
      %s35 = sphi 0, %s37
      %s38 = sphi 0, %s35
      %s39 = sphi 0, %s38
      %s55 = sphi 0, %s39
      %s59 = sphi 0, %s59
      %s61 = sphi 0, %s59
      %s62 = sphi 0, %s61
      %s76 = sphi 0, %s62
      %s80 = sphi 0, %s80
      %s82 = sphi 0, %s80
      %s83 = sphi 0, %s82
      %s97 = sphi 0, %s83
      %s101 = sphi 0, %s101
      %s103 = sphi 0, %s101
      %s104 = sphi 0, %s103
      %s118 = sphi 0, %s104
      %s122 = sphi 0, %s122
      %s124 = sphi 0, %s122
      %s125 = sphi 0, %s124
      %s139 = sphi 0, %s125
      %s143 = sphi 0, %s143
      %s145 = sphi 0, %s143
      %s146 = sphi 0, %s145
      %s160 = sphi 0, %s146
      %s164 = sphi 0, %s164
      %s166 = sphi 0, %s164
      %s167 = sphi 0, %s166
      %s181 = sphi 0, %s167
      %s185 = sphi 0, %s185
      %s187 = sphi 0, %s185
      %s188 = sphi 0, %s187
      %s202 = sphi 0, %s188
      %s206 = sphi 0, %s206
      %s208 = sphi 0, %s206
      %s209 = sphi 0, %s208
      %s223 = sphi 0, %s209
      %s227 = sphi 0, %s227
      %s229 = sphi 0, %s227
      %s230 = sphi 0, %s229
      %s244 = sphi 0, %s230
      %s248 = sphi 0, %s248
      %s250 = sphi 0, %s248
      %s251 = sphi 0, %s250
      %s265 = sphi 0, %s251
      %s269 = sphi 0, %s269
      %s271 = sphi 0, %s269
      %s272 = sphi 0, %s271
      %s286 = sphi 0, %s272
      %s290 = sphi 0, %s290
      %s292 = sphi 0, %s290
      %s293 = sphi 0, %s292
      %s307 = sphi 0, %s293
      %s313 = sphi 0, %s315
      %s316 = sphi 0, %s313
      %s317 = sphi 0, %s316
      %s333 = sphi 0, %s317
    $region4: #{qnet_duel_forward.1} parent=1 // loop_header_branch
      %28 = sbr.rel (%p26) target = $region8
    $region5: #{qnet_duel_forward.1} parent=1 // loop_body
      %s30 = ssub.s32 %s25, 1
      %s31 = ssub.s32 %s25, 2
      %s32 = sadd.s32 %s25, 1
      %s33 = ssub.s32 %s25, %s32
      %p34 = scmp.eq.s32.totalorder %s33, 0
      %s36 = sadd.s32 %s35, 1
      %s37 = scalar_select %p34, %s35, %s36
      %p40 = pneg %p34
      %p41 = scmp.eq.s32.totalorder %s25, 1
      %p42 = por %p40, %p41
      %p43 = scmp.ne.s32.totalorder %s35, %s38
      %p44 = scmp.eq.s32.totalorder %s25, 0
      %p45 = por %p43, %p44
      %p46 = scmp.ne.s32.totalorder %s35, %s38
      %p47 = scmp.eq.s32.totalorder %s30, 1
      %p48 = por %p46, %p47
      %p49 = scmp.ne.s32.totalorder %s38, %s39
      %p50 = scmp.eq.s32.totalorder %s30, 0
      %p51 = por %p49, %p50
      %p52 = scmp.ne.s32.totalorder %s38, %s39
      %p53 = scmp.eq.s32.totalorder %s31, 1
      %p54 = por %p52, %p53
      %p56 = scmp.ne.s32.totalorder %s39, %s55
      %p57 = scmp.eq.s32.totalorder %s31, 0
      %p58 = por %p56, %p57
      %s60 = sadd.s32 %s59, 1
      %p63 = scmp.eq.s32.totalorder %s25, 1
      %p64 = scmp.ne.s32.totalorder %s59, %s61
      %p65 = scmp.eq.s32.totalorder %s25, 0
      %p66 = por %p64, %p65
      %p67 = scmp.ne.s32.totalorder %s59, %s61
      %p68 = scmp.eq.s32.totalorder %s30, 1
      %p69 = por %p67, %p68
      %p70 = scmp.ne.s32.totalorder %s61, %s62
      %p71 = scmp.eq.s32.totalorder %s30, 0
      %p72 = por %p70, %p71
      %p73 = scmp.ne.s32.totalorder %s61, %s62
      %p74 = scmp.eq.s32.totalorder %s31, 1
      %p75 = por %p73, %p74
      %p77 = scmp.ne.s32.totalorder %s62, %s76
      %p78 = scmp.eq.s32.totalorder %s31, 0
      %p79 = por %p77, %p78
      %s81 = sadd.s32 %s80, 1
      %p84 = scmp.eq.s32.totalorder %s25, 1
      %p85 = scmp.ne.s32.totalorder %s80, %s82
      %p86 = scmp.eq.s32.totalorder %s25, 0
      %p87 = por %p85, %p86
      %p88 = scmp.ne.s32.totalorder %s80, %s82
      %p89 = scmp.eq.s32.totalorder %s30, 1
      %p90 = por %p88, %p89
      %p91 = scmp.ne.s32.totalorder %s82, %s83
      %p92 = scmp.eq.s32.totalorder %s30, 0
      %p93 = por %p91, %p92
      %p94 = scmp.ne.s32.totalorder %s82, %s83
      %p95 = scmp.eq.s32.totalorder %s31, 1
      %p96 = por %p94, %p95
      %p98 = scmp.ne.s32.totalorder %s83, %s97
      %p99 = scmp.eq.s32.totalorder %s31, 0
      %p100 = por %p98, %p99
      %s102 = sadd.s32 %s101, 1
      %p105 = scmp.eq.s32.totalorder %s25, 1
      %p106 = scmp.ne.s32.totalorder %s101, %s103
      %p107 = scmp.eq.s32.totalorder %s25, 0
      %p108 = por %p106, %p107
      %p109 = scmp.ne.s32.totalorder %s101, %s103
      %p110 = scmp.eq.s32.totalorder %s30, 1
      %p111 = por %p109, %p110
      %p112 = scmp.ne.s32.totalorder %s103, %s104
      %p113 = scmp.eq.s32.totalorder %s30, 0
      %p114 = por %p112, %p113
      %p115 = scmp.ne.s32.totalorder %s103, %s104
      %p116 = scmp.eq.s32.totalorder %s31, 1
      %p117 = por %p115, %p116
      %p119 = scmp.ne.s32.totalorder %s104, %s118
      %p120 = scmp.eq.s32.totalorder %s31, 0
      %p121 = por %p119, %p120
      %s123 = sadd.s32 %s122, 1
      %p126 = scmp.eq.s32.totalorder %s25, 1
      %p127 = scmp.ne.s32.totalorder %s122, %s124
      %p128 = scmp.eq.s32.totalorder %s25, 0
      %p129 = por %p127, %p128
      %p130 = scmp.ne.s32.totalorder %s122, %s124
      %p131 = scmp.eq.s32.totalorder %s30, 1
      %p132 = por %p130, %p131
      %p133 = scmp.ne.s32.totalorder %s124, %s125
      %p134 = scmp.eq.s32.totalorder %s30, 0
      %p135 = por %p133, %p134
      %p136 = scmp.ne.s32.totalorder %s124, %s125
      %p137 = scmp.eq.s32.totalorder %s31, 1
      %p138 = por %p136, %p137
      %p140 = scmp.ne.s32.totalorder %s125, %s139
      %p141 = scmp.eq.s32.totalorder %s31, 0
      %p142 = por %p140, %p141
      %s144 = sadd.s32 %s143, 1
      %p147 = scmp.eq.s32.totalorder %s25, 1
      %p148 = scmp.ne.s32.totalorder %s143, %s145
      %p149 = scmp.eq.s32.totalorder %s25, 0
      %p150 = por %p148, %p149
      %p151 = scmp.ne.s32.totalorder %s143, %s145
      %p152 = scmp.eq.s32.totalorder %s30, 1
      %p153 = por %p151, %p152
      %p154 = scmp.ne.s32.totalorder %s145, %s146
      %p155 = scmp.eq.s32.totalorder %s30, 0
      %p156 = por %p154, %p155
      %p157 = scmp.ne.s32.totalorder %s145, %s146
      %p158 = scmp.eq.s32.totalorder %s31, 1
      %p159 = por %p157, %p158
      %p161 = scmp.ne.s32.totalorder %s146, %s160
      %p162 = scmp.eq.s32.totalorder %s31, 0
      %p163 = por %p161, %p162
      %s165 = sadd.s32 %s164, 1
      %p168 = scmp.eq.s32.totalorder %s25, 1
      %p169 = scmp.ne.s32.totalorder %s164, %s166
      %p170 = scmp.eq.s32.totalorder %s25, 0
      %p171 = por %p169, %p170
      %p172 = scmp.ne.s32.totalorder %s164, %s166
      %p173 = scmp.eq.s32.totalorder %s30, 1
      %p174 = por %p172, %p173
      %p175 = scmp.ne.s32.totalorder %s166, %s167
      %p176 = scmp.eq.s32.totalorder %s30, 0
      %p177 = por %p175, %p176
      %p178 = scmp.ne.s32.totalorder %s166, %s167
      %p179 = scmp.eq.s32.totalorder %s31, 1
      %p180 = por %p178, %p179
      %p182 = scmp.ne.s32.totalorder %s167, %s181
      %p183 = scmp.eq.s32.totalorder %s31, 0
      %p184 = por %p182, %p183
      %s186 = sadd.s32 %s185, 1
      %p189 = scmp.eq.s32.totalorder %s25, 1
      %p190 = scmp.ne.s32.totalorder %s185, %s187
      %p191 = scmp.eq.s32.totalorder %s25, 0
      %p192 = por %p190, %p191
      %p193 = scmp.ne.s32.totalorder %s185, %s187
      %p194 = scmp.eq.s32.totalorder %s30, 1
      %p195 = por %p193, %p194
      %p196 = scmp.ne.s32.totalorder %s187, %s188
      %p197 = scmp.eq.s32.totalorder %s30, 0
      %p198 = por %p196, %p197
      %p199 = scmp.ne.s32.totalorder %s187, %s188
      %p200 = scmp.eq.s32.totalorder %s31, 1
      %p201 = por %p199, %p200
      %p203 = scmp.ne.s32.totalorder %s188, %s202
      %p204 = scmp.eq.s32.totalorder %s31, 0
      %p205 = por %p203, %p204
      %s207 = sadd.s32 %s206, 1
      %p210 = scmp.eq.s32.totalorder %s25, 1
      %p211 = scmp.ne.s32.totalorder %s206, %s208
      %p212 = scmp.eq.s32.totalorder %s25, 0
      %p213 = por %p211, %p212
      %p214 = scmp.ne.s32.totalorder %s206, %s208
      %p215 = scmp.eq.s32.totalorder %s30, 1
      %p216 = por %p214, %p215
      %p217 = scmp.ne.s32.totalorder %s208, %s209
      %p218 = scmp.eq.s32.totalorder %s30, 0
      %p219 = por %p217, %p218
      %p220 = scmp.ne.s32.totalorder %s208, %s209
      %p221 = scmp.eq.s32.totalorder %s31, 1
      %p222 = por %p220, %p221
      %p224 = scmp.ne.s32.totalorder %s209, %s223
      %p225 = scmp.eq.s32.totalorder %s31, 0
      %p226 = por %p224, %p225
      %s228 = sadd.s32 %s227, 1
      %p231 = scmp.eq.s32.totalorder %s25, 1
      %p232 = scmp.ne.s32.totalorder %s227, %s229
      %p233 = scmp.eq.s32.totalorder %s25, 0
      %p234 = por %p232, %p233
      %p235 = scmp.ne.s32.totalorder %s227, %s229
      %p236 = scmp.eq.s32.totalorder %s30, 1
      %p237 = por %p235, %p236
      %p238 = scmp.ne.s32.totalorder %s229, %s230
      %p239 = scmp.eq.s32.totalorder %s30, 0
      %p240 = por %p238, %p239
      %p241 = scmp.ne.s32.totalorder %s229, %s230
      %p242 = scmp.eq.s32.totalorder %s31, 1
      %p243 = por %p241, %p242
      %p245 = scmp.ne.s32.totalorder %s230, %s244
      %p246 = scmp.eq.s32.totalorder %s31, 0
      %p247 = por %p245, %p246
      %s249 = sadd.s32 %s248, 1
      %p252 = scmp.eq.s32.totalorder %s25, 1
      %p253 = scmp.ne.s32.totalorder %s248, %s250
      %p254 = scmp.eq.s32.totalorder %s25, 0
      %p255 = por %p253, %p254
      %p256 = scmp.ne.s32.totalorder %s248, %s250
      %p257 = scmp.eq.s32.totalorder %s30, 1
      %p258 = por %p256, %p257
      %p259 = scmp.ne.s32.totalorder %s250, %s251
      %p260 = scmp.eq.s32.totalorder %s30, 0
      %p261 = por %p259, %p260
      %p262 = scmp.ne.s32.totalorder %s250, %s251
      %p263 = scmp.eq.s32.totalorder %s31, 1
      %p264 = por %p262, %p263
      %p266 = scmp.ne.s32.totalorder %s251, %s265
      %p267 = scmp.eq.s32.totalorder %s31, 0
      %p268 = por %p266, %p267
      %s270 = sadd.s32 %s269, 1
      %p273 = scmp.eq.s32.totalorder %s25, 1
      %p274 = scmp.ne.s32.totalorder %s269, %s271
      %p275 = scmp.eq.s32.totalorder %s25, 0
      %p276 = por %p274, %p275
      %p277 = scmp.ne.s32.totalorder %s269, %s271
      %p278 = scmp.eq.s32.totalorder %s30, 1
      %p279 = por %p277, %p278
      %p280 = scmp.ne.s32.totalorder %s271, %s272
      %p281 = scmp.eq.s32.totalorder %s30, 0
      %p282 = por %p280, %p281
      %p283 = scmp.ne.s32.totalorder %s271, %s272
      %p284 = scmp.eq.s32.totalorder %s31, 1
      %p285 = por %p283, %p284
      %p287 = scmp.ne.s32.totalorder %s272, %s286
      %p288 = scmp.eq.s32.totalorder %s31, 0
      %p289 = por %p287, %p288
      %s291 = sadd.s32 %s290, 1
      %p294 = scmp.eq.s32.totalorder %s25, 1
      %p295 = scmp.ne.s32.totalorder %s290, %s292
      %p296 = scmp.eq.s32.totalorder %s25, 0
      %p297 = por %p295, %p296
      %p298 = scmp.ne.s32.totalorder %s290, %s292
      %p299 = scmp.eq.s32.totalorder %s30, 1
      %p300 = por %p298, %p299
      %p301 = scmp.ne.s32.totalorder %s292, %s293
      %p302 = scmp.eq.s32.totalorder %s30, 0
      %p303 = por %p301, %p302
      %p304 = scmp.ne.s32.totalorder %s292, %s293
      %p305 = scmp.eq.s32.totalorder %s31, 1
      %p306 = por %p304, %p305
      %p308 = scmp.ne.s32.totalorder %s293, %s307
      %p309 = scmp.eq.s32.totalorder %s31, 0
      %p310 = por %p308, %p309
      %s311 = ssub.s32 %s25, %s32
      %p312 = scmp.eq.s32.totalorder %s311, 0
      %s314 = sadd.s32 %s313, 1
      %s315 = scalar_select %p312, %s313, %s314
      %p318 = pneg %p312
      %p319 = scmp.eq.s32.totalorder %s25, 1
      %p320 = por %p318, %p319
      %p321 = scmp.ne.s32.totalorder %s313, %s316
      %p322 = scmp.eq.s32.totalorder %s25, 0
      %p323 = por %p321, %p322
      %p324 = scmp.ne.s32.totalorder %s313, %s316
      %p325 = scmp.eq.s32.totalorder %s30, 1
      %p326 = por %p324, %p325
      %p327 = scmp.ne.s32.totalorder %s316, %s317
      %p328 = scmp.eq.s32.totalorder %s30, 0
      %p329 = por %p327, %p328
      %p330 = scmp.ne.s32.totalorder %s316, %s317
      %p331 = scmp.eq.s32.totalorder %s31, 1
      %p332 = por %p330, %p331
      %p334 = scmp.ne.s32.totalorder %s317, %s333
      %p335 = scmp.eq.s32.totalorder %s31, 0
      %p336 = por %p334, %p335
      %p337 = scmp.le.s32.totalorder 1, %s25
      %p338 = scmp.lt.s32.totalorder %s25, 3
      %p339 = pnand %p337, %p338
      %p340 = pneg %p339
      // Predicated region
      $region9: #{qnet_duel_forward.1} parent=5 // pred_check
        _
      $region10: #{qnet_duel_forward.1} parent=5 // pred_check_branch
        %342 = sbr.rel (%p339) target = $region12
      $region11: #{qnet_duel_forward.1} parent=5 // pred_region
        %s343 = ssub.s32 %s25, 1
        // Predicated region
        $region13: #{qnet_duel_forward.1} parent=11 // pred_check
          %p344 = pneg %p72
        $region14: #{qnet_duel_forward.1} parent=11 // pred_check_branch
          %346 = sbr.rel (%p344) target = $region16
        $region15: #{qnet_duel_forward.1} parent=11 // pred_region
          _
        $region16: #{qnet_duel_forward.1} parent=11 // pred_fallthru
          _
        // Predicated region
        $region17: #{qnet_duel_forward.1} parent=11 // pred_check
          %p347 = pneg %p93
        $region18: #{qnet_duel_forward.1} parent=11 // pred_check_branch
          %349 = sbr.rel (%p347) target = $region20
        $region19: #{qnet_duel_forward.1} parent=11 // pred_region
          _
        $region20: #{qnet_duel_forward.1} parent=11 // pred_fallthru
          _
        // Predicated region
        $region21: #{qnet_duel_forward.1} parent=11 // pred_check
          %p350 = pneg %p114
        $region22: #{qnet_duel_forward.1} parent=11 // pred_check_branch
          %352 = sbr.rel (%p350) target = $region24
        $region23: #{qnet_duel_forward.1} parent=11 // pred_region
          %s354 = ssub.s32 384, 384
          %355 = vsyncadd [#allocation7], %s354
          %s356 = sshll.u32 [#allocation6], 4
          %s357 = int_to_ptr.vmem [resolvable:$true] %s356
          %362 = dma.hbm_to_vmem [thread:$0]  %s3, 384, %s357, [#allocation7], 128, 128, 8
        $region24: #{qnet_duel_forward.1} parent=11 // pred_fallthru
          _
        // Predicated region
        $region25: #{qnet_duel_forward.1} parent=11 // pred_check
          %p363 = pneg %p135
        $region26: #{qnet_duel_forward.1} parent=11 // pred_check_branch
          %365 = sbr.rel (%p363) target = $region28
        $region27: #{qnet_duel_forward.1} parent=11 // pred_region
          %s367 = ssub.s32 1536, 1536
          %368 = vsyncadd [#allocation7], %s367
          %s369 = sshll.u32 [#allocation8], 4
          %s370 = int_to_ptr.vmem [resolvable:$true] %s369
          %375 = dma.hbm_to_vmem [thread:$0]  %s4, 1536, %s370, [#allocation7], 384, 384, 24
        $region28: #{qnet_duel_forward.1} parent=11 // pred_fallthru
          _
        // Predicated region
        $region29: #{qnet_duel_forward.1} parent=11 // pred_check
          %p376 = pneg %p156
        $region30: #{qnet_duel_forward.1} parent=11 // pred_check_branch
          %378 = sbr.rel (%p376) target = $region32
        $region31: #{qnet_duel_forward.1} parent=11 // pred_region
          _
        $region32: #{qnet_duel_forward.1} parent=11 // pred_fallthru
          _
        // Predicated region
        $region33: #{qnet_duel_forward.1} parent=11 // pred_check
          %p379 = pneg %p177
        $region34: #{qnet_duel_forward.1} parent=11 // pred_check_branch
          %381 = sbr.rel (%p379) target = $region36
        $region35: #{qnet_duel_forward.1} parent=11 // pred_region
          _
        $region36: #{qnet_duel_forward.1} parent=11 // pred_fallthru
          _
        // Predicated region
        $region37: #{qnet_duel_forward.1} parent=11 // pred_check
          %p382 = pneg %p198
        $region38: #{qnet_duel_forward.1} parent=11 // pred_check_branch
          %384 = sbr.rel (%p382) target = $region40
        $region39: #{qnet_duel_forward.1} parent=11 // pred_region
          %s386 = ssub.s32 2048, 2048
          %387 = vsyncadd [#allocation10], %s386
          %s388 = sshll.u32 [#allocation9], 4
          %s389 = int_to_ptr.vmem [resolvable:$true] %s388
          %394 = dma.hbm_to_vmem [thread:$0]  %s7, 2048, %s389, [#allocation10], 128, 128, 8
        $region40: #{qnet_duel_forward.1} parent=11 // pred_fallthru
          _
        // Predicated region
        $region41: #{qnet_duel_forward.1} parent=11 // pred_check
          %p395 = pneg %p219
        $region42: #{qnet_duel_forward.1} parent=11 // pred_check_branch
          %397 = sbr.rel (%p395) target = $region44
        $region43: #{qnet_duel_forward.1} parent=11 // pred_region
          _
        $region44: #{qnet_duel_forward.1} parent=11 // pred_fallthru
          _
        // Predicated region
        $region45: #{qnet_duel_forward.1} parent=11 // pred_check
          %p398 = pneg %p240
        $region46: #{qnet_duel_forward.1} parent=11 // pred_check_branch
          %400 = sbr.rel (%p398) target = $region48
        $region47: #{qnet_duel_forward.1} parent=11 // pred_region
          %s402 = ssub.s32 512, 512
          %403 = vsyncadd [#allocation10], %s402
          %s404 = sshll.u32 [#allocation11], 4
          %s405 = int_to_ptr.vmem [resolvable:$true] %s404
          %410 = dma.hbm_to_vmem [thread:$0]  %s9, 512, %s405, [#allocation10], 128, 128, 8
        $region48: #{qnet_duel_forward.1} parent=11 // pred_fallthru
          _
        // Predicated region
        $region49: #{qnet_duel_forward.1} parent=11 // pred_check
          %p411 = pneg %p261
        $region50: #{qnet_duel_forward.1} parent=11 // pred_check_branch
          %413 = sbr.rel (%p411) target = $region52
        $region51: #{qnet_duel_forward.1} parent=11 // pred_region
          _
        $region52: #{qnet_duel_forward.1} parent=11 // pred_fallthru
          _
        // Predicated region
        $region53: #{qnet_duel_forward.1} parent=11 // pred_check
          %p414 = pneg %p282
        $region54: #{qnet_duel_forward.1} parent=11 // pred_check_branch
          %416 = sbr.rel (%p414) target = $region56
        $region55: #{qnet_duel_forward.1} parent=11 // pred_region
          %s418 = ssub.s32 128, 128
          %419 = vsyncadd [#allocation13], %s418
          %s421 = sshll.u32 [#allocation12], 4
          %s422 = int_to_ptr.vmem [resolvable:$true] %s421
          %424 = dma.hbm_to_vmem [thread:$0]  %s11, 128, %s422, [#allocation13]
        $region56: #{qnet_duel_forward.1} parent=11 // pred_fallthru
          _
        // Predicated region
        $region57: #{qnet_duel_forward.1} parent=11 // pred_check
          %p425 = pneg %p303
        $region58: #{qnet_duel_forward.1} parent=11 // pred_check_branch
          %427 = sbr.rel (%p425) target = $region60
        $region59: #{qnet_duel_forward.1} parent=11 // pred_region
          _
        $region60: #{qnet_duel_forward.1} parent=11 // pred_fallthru
          _
      $region12: #{qnet_duel_forward.1} parent=5 // pred_fallthru
        _
      %p428 = scmp.lt.s32.totalorder %s25, 2
      // Predicated region
      $region61: #{qnet_duel_forward.1} parent=5 // pred_check
        %p429 = pneg %p428
      $region62: #{qnet_duel_forward.1} parent=5 // pred_check_branch
        %431 = sbr.rel (%p429) target = $region64
      $region63: #{qnet_duel_forward.1} parent=5 // pred_region
        // Predicated region
        $region65: #{qnet_duel_forward.1} parent=63 // pred_check
          %p432 = pneg %p45
        $region66: #{qnet_duel_forward.1} parent=63 // pred_check_branch
          %434 = sbr.rel (%p432) target = $region68
        $region67: #{qnet_duel_forward.1} parent=63 // pred_region
          %s435 = sand.u32 %s35, 1
          %s436 = scalar_lea.sflag [#allocation5], %s435
          %s437 = sand.u32 %s35, 1
          %s438 = smul.addr %s437, 64
          %s439 = scalar_lea.vmem [#allocation4], %s438
          %s441 = ssub.s32 1024, 1024
          %442 = vsyncadd %s436, %s441
          %s443 = smul.addr %s25, 8
          %s444 = smul.addr %s443, 128
          %s445 = scalar_lea.hbm %s0, %s444
          %s446 = sshll.u32 %s439, 4
          %s447 = int_to_ptr.vmem [resolvable:$true] %s446
          %452 = dma.hbm_to_vmem [thread:$0]  %s445, 1024, %s447, %s436, 128, 128, 8
        $region68: #{qnet_duel_forward.1} parent=63 // pred_fallthru
          _
      $region64: #{qnet_duel_forward.1} parent=5 // pred_fallthru
        _
      %p453 = scmp.le.s32.totalorder 1, %s25
      %p454 = scmp.lt.s32.totalorder %s25, 3
      %p455 = pnand %p453, %p454
      %p456 = pneg %p455
      // Predicated region
      $region69: #{qnet_duel_forward.1} parent=5 // pred_check
        _
      $region70: #{qnet_duel_forward.1} parent=5 // pred_check_branch
        %458 = sbr.rel (%p455) target = $region72
      $region71: #{qnet_duel_forward.1} parent=5 // pred_region
        %s459 = ssub.s32 %s25, 1
        %s460 = sand.u32 %s38, 1
        %s461 = scalar_lea.sflag [#allocation5], %s460
        %s462 = sand.u32 %s38, 1
        %s463 = smul.addr %s462, 64
        %s464 = scalar_lea.vmem [#allocation4], %s463
        // Predicated region
        $region73: #{qnet_duel_forward.1} parent=71 // pred_check
          %p465 = pneg %p51
        $region74: #{qnet_duel_forward.1} parent=71 // pred_check_branch
          %467 = sbr.rel (%p465) target = $region76
        $region75: #{qnet_duel_forward.1} parent=71 // pred_region
          %468 = dma.done %s461, 1024
        $region76: #{qnet_duel_forward.1} parent=71 // pred_fallthru
          _
        // Predicated region
        $region77: #{qnet_duel_forward.1} parent=71 // pred_check
          %p469 = pneg %p114
        $region78: #{qnet_duel_forward.1} parent=71 // pred_check_branch
          %471 = sbr.rel (%p469) target = $region80
        $region79: #{qnet_duel_forward.1} parent=71 // pred_region
          %472 = dma.done [#allocation7], 384
        $region80: #{qnet_duel_forward.1} parent=71 // pred_fallthru
          _
        // Predicated region
        $region81: #{qnet_duel_forward.1} parent=71 // pred_check
          %p473 = pneg %p135
        $region82: #{qnet_duel_forward.1} parent=71 // pred_check_branch
          %475 = sbr.rel (%p473) target = $region84
        $region83: #{qnet_duel_forward.1} parent=71 // pred_region
          %476 = dma.done [#allocation7], 1536
        $region84: #{qnet_duel_forward.1} parent=71 // pred_fallthru
          _
        // Predicated region
        $region85: #{qnet_duel_forward.1} parent=71 // pred_check
          %p477 = pneg %p198
        $region86: #{qnet_duel_forward.1} parent=71 // pred_check_branch
          %479 = sbr.rel (%p477) target = $region88
        $region87: #{qnet_duel_forward.1} parent=71 // pred_region
          %480 = dma.done [#allocation10], 2048
        $region88: #{qnet_duel_forward.1} parent=71 // pred_fallthru
          _
        // Predicated region
        $region89: #{qnet_duel_forward.1} parent=71 // pred_check
          %p481 = pneg %p240
        $region90: #{qnet_duel_forward.1} parent=71 // pred_check_branch
          %483 = sbr.rel (%p481) target = $region92
        $region91: #{qnet_duel_forward.1} parent=71 // pred_region
          %484 = dma.done [#allocation10], 512
        $region92: #{qnet_duel_forward.1} parent=71 // pred_fallthru
          _
        // Predicated region
        $region93: #{qnet_duel_forward.1} parent=71 // pred_check
          %p485 = pneg %p282
        $region94: #{qnet_duel_forward.1} parent=71 // pred_check_branch
          %487 = sbr.rel (%p485) target = $region96
        $region95: #{qnet_duel_forward.1} parent=71 // pred_region
          %488 = dma.done [#allocation13], 128
        $region96: #{qnet_duel_forward.1} parent=71 // pred_fallthru
          _
        %s489 = sand.u32 %s38, 1
        %s490 = scalar_lea.sflag [#allocation5], %s489
        %s491 = sand.u32 %s38, 1
        %s492 = smul.addr %s491, 64
        %s493 = scalar_lea.vmem [#allocation4], %s492
        %p494 = pneg %p51
        %p495 = pneg %p48
        %p496 = pneg %p72
        %p497 = pneg %p69
        %p498 = pneg %p93
        %p499 = pneg %p90
        %p500 = pneg %p114
        %p501 = pneg %p111
        %p502 = pneg %p135
        %p503 = pneg %p132
        %p504 = pneg %p156
        %p505 = pneg %p153
        %p506 = pneg %p177
        %p507 = pneg %p174
        %p508 = pneg %p198
        %p509 = pneg %p195
        %p510 = pneg %p219
        %p511 = pneg %p216
        %p512 = pneg %p240
        %p513 = pneg %p237
        %p514 = pneg %p261
        %p515 = pneg %p258
        %p516 = pneg %p282
        %p517 = pneg %p279
        %p518 = pneg %p303
        %p519 = pneg %p300
        %p520 = pneg %p329
        %p521 = pneg %p326
        %p522 = scmp.lt.s32.totalorder %s30, 1
        %s523 = scalar_select %p522, %s30, 1
        %s524 = smul.addr %s523, 8
        %s525 = scalar_lea.vmem %s13, %s524
        %p526 = scmp.lt.s32.totalorder %s30, 1
        %s527 = scalar_select %p526, %s30, 1
        %s528 = smul.addr %s527, 8
        %s529 = scalar_lea.vmem %s13, %s528
        %vm530 = vcmask 146432
        %531 = vst.msk [vmem:[#allocation2] sm:$0xff] %vm530, 0.0
        %532 = vst.msk [vmem:[#allocation2 + $0x8] sm:$0xff] %vm530, 0.0
        %vm533 = vcmask 140288
        %534 = vst.msk [vmem:[#allocation2 + $0x10] sm:$0x3] %vm533, 0.0
        %535 = vst.msk [vmem:[#allocation2 + $0x18] sm:$0xff] %vm530, 0.0
        %536 = vst.msk [vmem:[#allocation2 + $0x20] sm:$0xff] %vm530, 0.0
        %537 = vst.msk [vmem:[#allocation2 + $0x28] sm:$0x3] %vm533, 0.0
        %538 = vst.msk [vmem:[#allocation2 + $0x30] sm:$0xff] %vm530, 0.0
        %539 = vst.msk [vmem:[#allocation2 + $0x38] sm:$0xff] %vm530, 0.0
        %540 = vst.msk [vmem:[#allocation2 + $0x40] sm:$0x3] %vm533, 0.0
        %541 = vst.msk [vmem:[#allocation2 + $0x48] sm:$0xff] %vm530, 0.0
        %542 = vst.msk [vmem:[#allocation2 + $0x50] sm:$0xff] %vm530, 0.0
        %543 = vst.msk [vmem:[#allocation2 + $0x58] sm:$0x3] %vm533, 0.0
        %v544 = vld [vmem:[%s464] sm:$0xff]
        %v545 = vld [vmem:[%s464 + $0x8] sm:$0xff]
        %v546 = vld [vmem:[%s464 + $0x10] sm:$0xff]
        %v547 = vld [vmem:[%s464 + $0x18] sm:$0xff]
        %v548 = vld [vmem:[%s464 + $0x20] sm:$0xff]
        %v549 = vld [vmem:[%s464 + $0x28] sm:$0xff]
        %v550 = vld [vmem:[%s464 + $0x30] sm:$0xff]
        %v551 = vld [vmem:[%s464 + $0x38] sm:$0xff]
        %560 = vrot.lane.b32.xlu0 %v544, 1
        %v561 = vpop.permute.xlu0 %560
        %562 = vrot.lane.b32.xlu0 %v545, 1
        %v563 = vpop.permute.xlu0 %562
        %564 = vrot.lane.b32.xlu0 %v546, 1
        %v565 = vpop.permute.xlu0 %564
        %566 = vrot.lane.b32.xlu0 %v547, 1
        %v567 = vpop.permute.xlu0 %566
        %568 = vrot.lane.b32.xlu0 %v548, 1
        %v569 = vpop.permute.xlu0 %568
        %570 = vrot.lane.b32.xlu0 %v549, 1
        %v571 = vpop.permute.xlu0 %570
        %572 = vrot.lane.b32.xlu0 %v550, 1
        %v573 = vpop.permute.xlu0 %572
        %574 = vrot.lane.b32.xlu0 %v551, 1
        %v575 = vpop.permute.xlu0 %574
        %vm584 = vcmask 138248
        %585 = vst.msk [vmem:[#allocation2 + $0x1] sm:$0xff] %vm584, %v561
        %586 = vst.msk [vmem:[#allocation2 + $0x9] sm:$0xff] %vm584, %v563
        %587 = vst.msk [vmem:[#allocation2 + $0x19] sm:$0xff] %vm584, %v565
        %588 = vst.msk [vmem:[#allocation2 + $0x21] sm:$0xff] %vm584, %v567
        %589 = vst.msk [vmem:[#allocation2 + $0x31] sm:$0xff] %vm584, %v569
        %590 = vst.msk [vmem:[#allocation2 + $0x39] sm:$0xff] %vm584, %v571
        %591 = vst.msk [vmem:[#allocation2 + $0x49] sm:$0xff] %vm584, %v573
        %592 = vst.msk [vmem:[#allocation2 + $0x51] sm:$0xff] %vm584, %v575
        %v593 = vld [vmem:[#allocation2] ss:$2 sm:$0xff]
        %s594 = scalar_lea.vmem [#allocation2], 24
        %v595 = vld [vmem:[%s594] ss:$2 sm:$0xff]
        %s596 = scalar_lea.vmem [#allocation2], 48
        %v597 = vld [vmem:[%s596] ss:$2 sm:$0xff]
        %s598 = scalar_lea.vmem [#allocation2], 72
        %v599 = vld [vmem:[%s598] ss:$2 sm:$0xff]
        %s600 = scalar_lea.vmem [#allocation2], 1
        %v601 = vld [vmem:[%s600] ss:$2 sm:$0xff]
        %s602 = scalar_lea.vmem [#allocation2], 25
        %v603 = vld [vmem:[%s602] ss:$2 sm:$0xff]
        %s604 = scalar_lea.vmem [#allocation2], 49
        %v605 = vld [vmem:[%s604] ss:$2 sm:$0xff]
        %s606 = scalar_lea.vmem [#allocation2], 73
        %v607 = vld [vmem:[%s606] ss:$2 sm:$0xff]
        %s608 = scalar_lea.vmem [#allocation2], 2
        %v609 = vld [vmem:[%s608] ss:$2 sm:$0xff]
        %s610 = scalar_lea.vmem [#allocation2], 26
        %v611 = vld [vmem:[%s610] ss:$2 sm:$0xff]
        %s612 = scalar_lea.vmem [#allocation2], 50
        %v613 = vld [vmem:[%s612] ss:$2 sm:$0xff]
        %s614 = scalar_lea.vmem [#allocation2], 74
        %v615 = vld [vmem:[%s614] ss:$2 sm:$0xff]
        %s616 = scalar_lea.vmem [#allocation2], 3
        %v617 = vld [vmem:[%s616] ss:$2 sm:$0xff]
        %s618 = scalar_lea.vmem [#allocation2], 27
        %v619 = vld [vmem:[%s618] ss:$2 sm:$0xff]
        %s620 = scalar_lea.vmem [#allocation2], 51
        %v621 = vld [vmem:[%s620] ss:$2 sm:$0xff]
        %s622 = scalar_lea.vmem [#allocation2], 75
        %v623 = vld [vmem:[%s622] ss:$2 sm:$0xff]
        %v624 = vld [vmem:[#allocation6] sm:$0xff]
        %v625 = vld [vmem:[#allocation6 + $0x8] sm:$0xff]
        %v626 = vld [vmem:[#allocation6 + $0x10] sm:$0x3]
        %v628 = vsel %vm530, %v593, 0
        %v631 = vsel %vm530, %v595, 0
        %v634 = vsel %vm530, %v597, 0
        %v637 = vsel %vm530, %v599, 0
        %v640 = vsel %vm530, %v601, 0
        %v643 = vsel %vm530, %v603, 0
        %v646 = vsel %vm530, %v605, 0
        %v649 = vsel %vm530, %v607, 0
        %v652 = vsel %vm530, %v609, 0
        %v655 = vsel %vm530, %v611, 0
        %v658 = vsel %vm530, %v613, 0
        %v661 = vsel %vm530, %v615, 0
        %v664 = vsel %vm530, %v617, 0
        %v667 = vsel %vm530, %v619, 0
        %v670 = vsel %vm530, %v621, 0
        %v673 = vsel %vm530, %v623, 0
        %vm675 = vcmask 1041408
        %v677 = vsel %vm675, %v626, 0
        %679 = vmatprep.subr.mxu0 0.0
        %680 = vmatpush1.msra.mxu0 %v624
        %681 = vmatprep.subr.mxu0 0.0
        %682 = vmatpush1.msra.mxu0 %v625
        %683 = vmatprep.subr.mxu0 0.0
        %684 = vmatpush1.msra.mxu0 %v677
        %685 = vmatprep.subr.mxu0 0.0
        %686 = vmatpush1.msra.mxu0 0.0
        %687 = vmatprep.subr.mxu0 0.0
        %688 = vmatpush1.msra.mxu0 0.0
        %689 = vmatprep.subr.mxu0 0.0
        %690 = vmatpush1.msra.mxu0 0.0
        %691 = vmatprep.subr.mxu0 0.0
        %692 = vmatpush1.msra.mxu0 0.0
        %693 = vmatprep.subr.mxu0 0.0
        %694 = vmatpush1.msra.mxu0 0.0
        %695 = vmatprep.subr.mxu0 0.0
        %696 = vmatpush1.msra.mxu0 0.0
        %697 = vmatprep.subr.mxu0 0.0
        %698 = vmatpush1.msra.mxu0 0.0
        %699 = vmatprep.subr.mxu0 0.0
        %700 = vmatpush1.msra.mxu0 0.0
        %701 = vmatprep.subr.mxu0 0.0
        %702 = vmatpush1.msra.mxu0 0.0
        %703 = vmatprep.subr.mxu0 0.0
        %704 = vmatpush1.msra.mxu0 0.0
        %705 = vmatprep.subr.mxu0 0.0
        %706 = vmatpush1.msra.mxu0 0.0
        %707 = vmatprep.subr.mxu0 0.0
        %708 = vmatpush1.msra.mxu0 0.0
        %709 = vmatprep.subr.mxu0 0.0
        %710 = vmatpush1.msra.mxu0 0.0
        %711 = vmatprep.subr.mxu0 0.0
        %712 = vmatpush1.msra.mxu0 0.0
        %713 = vmatprep.subr.mxu0 0.0
        %714 = vmatpush1.msra.mxu0 0.0
        %715 = vmatprep.subr.mxu0 0.0
        %716 = vmatpush1.msra.mxu0 0.0
        %717 = vmatprep.subr.mxu0 0.0
        %718 = vmatpush1.msra.mxu0 0.0
        %719 = vmatprep.subr.mxu0 0.0
        %720 = vmatpush1.msra.mxu0 0.0
        %721 = vmatprep.subr.mxu0 0.0
        %722 = vmatpush1.msra.mxu0 0.0
        %723 = vmatprep.subr.mxu0 0.0
        %724 = vmatpush1.msra.mxu0 0.0
        %725 = vmatprep.subr.mxu0 0.0
        %726 = vmatpush1.msra.mxu0 0.0
        %727 = vmatprep.subr.mxu0 0.0
        %728 = vmatpush1.msra.mxu0 0.0
        %729 = vmatprep.subr.mxu0 0.0
        %730 = vmatpush1.msra.mxu0 0.0
        %731 = vmatprep.subr.mxu0 0.0
        %732 = vmatpush1.msra.mxu0 0.0
        %733 = vmatprep.subr.mxu0 0.0
        %734 = vmatpush1.msra.mxu0 0.0
        %735 = vmatprep.subr.mxu0 0.0
        %736 = vmatpush1.msra.mxu0 0.0
        %737 = vmatprep.subr.mxu0 0.0
        %738 = vmatpush1.msra.mxu0 0.0
        %739 = vmatprep.subr.mxu0 0.0
        %740 = vmatpush1.msra.mxu0 0.0
        %741 = vmatprep.subr.mxu0 0.0
        %742 = vmatpush1.msra.mxu0 0.0
        %743 = vmatprep.mubr.f32.mxu0 0.0
        %744 = vmatmul.mubr.f32.gmra.mrb[0].mxu0 %v628
        %v745 = vpop.f32.mrb[0].mxu0
        %v746 = vadd.f32 0.0, %v745
        %v747 = vpop.f32.mrb[0].mxu0
        %748 = vmatprep.mubr.f32.mxu0 0.0
        %749 = vmatmul.mubr.f32.gmra.mrb[0].mxu0 %v631
        %v750 = vpop.f32.mrb[0].mxu0
        %v751 = vadd.f32 0.0, %v750
        %v752 = vpop.f32.mrb[0].mxu0
        %753 = vmatprep.mubr.f32.mxu0 0.0
        %754 = vmatmul.mubr.f32.gmra.mrb[0].mxu0 %v634
        %v755 = vpop.f32.mrb[0].mxu0
        %v756 = vadd.f32 0.0, %v755
        %v757 = vpop.f32.mrb[0].mxu0
        %758 = vmatprep.mubr.f32.mxu0 0.0
        %759 = vmatmul.mubr.f32.gmra.mrb[0].mxu0 %v637
        %v760 = vpop.f32.mrb[0].mxu0
        %v761 = vadd.f32 0.0, %v760
        %v762 = vpop.f32.mrb[0].mxu0
        %763 = vmatprep.mubr.f32.mxu0 0.0
        %764 = vmatmul.mubr.f32.gmra.mrb[0].mxu0 %v640
        %v765 = vpop.f32.mrb[0].mxu0
        %v766 = vadd.f32 0.0, %v765
        %v767 = vpop.f32.mrb[0].mxu0
        %768 = vmatprep.mubr.f32.mxu0 0.0
        %769 = vmatmul.mubr.f32.gmra.mrb[0].mxu0 %v643
        %v770 = vpop.f32.mrb[0].mxu0
        %v771 = vadd.f32 0.0, %v770
        %v772 = vpop.f32.mrb[0].mxu0
        %773 = vmatprep.mubr.f32.mxu0 0.0
        %774 = vmatmul.mubr.f32.gmra.mrb[0].mxu0 %v646
        %v775 = vpop.f32.mrb[0].mxu0
        %v776 = vadd.f32 0.0, %v775
        %v777 = vpop.f32.mrb[0].mxu0
        %778 = vmatprep.mubr.f32.mxu0 0.0
        %779 = vmatmul.mubr.f32.gmra.mrb[0].mxu0 %v649
        %v780 = vpop.f32.mrb[0].mxu0
        %v781 = vadd.f32 0.0, %v780
        %v782 = vpop.f32.mrb[0].mxu0
        %783 = vmatprep.mubr.f32.mxu0 0.0
        %784 = vmatmul.mubr.f32.gmra.mrb[0].mxu0 %v652
        %v785 = vpop.f32.mrb[0].mxu0
        %v786 = vadd.f32 0.0, %v785
        %v787 = vpop.f32.mrb[0].mxu0
        %788 = vmatprep.mubr.f32.mxu0 0.0
        %789 = vmatmul.mubr.f32.gmra.mrb[0].mxu0 %v655
        %v790 = vpop.f32.mrb[0].mxu0
        %v791 = vadd.f32 0.0, %v790
        %v792 = vpop.f32.mrb[0].mxu0
        %793 = vmatprep.mubr.f32.mxu0 0.0
        %794 = vmatmul.mubr.f32.gmra.mrb[0].mxu0 %v658
        %v795 = vpop.f32.mrb[0].mxu0
        %v796 = vadd.f32 0.0, %v795
        %v797 = vpop.f32.mrb[0].mxu0
        %798 = vmatprep.mubr.f32.mxu0 0.0
        %799 = vmatmul.mubr.f32.gmra.mrb[0].mxu0 %v661
        %v800 = vpop.f32.mrb[0].mxu0
        %v801 = vadd.f32 0.0, %v800
        %v802 = vpop.f32.mrb[0].mxu0
        %803 = vmatprep.mubr.f32.mxu0 0.0
        %804 = vmatmul.mubr.f32.gmra.mrb[0].mxu0 %v664
        %v805 = vpop.f32.mrb[0].mxu0
        %v806 = vadd.f32 0.0, %v805
        %v807 = vpop.f32.mrb[0].mxu0
        %808 = vmatprep.mubr.f32.mxu0 0.0
        %809 = vmatmul.mubr.f32.gmra.mrb[0].mxu0 %v667
        %v810 = vpop.f32.mrb[0].mxu0
        %v811 = vadd.f32 0.0, %v810
        %v812 = vpop.f32.mrb[0].mxu0
        %813 = vmatprep.mubr.f32.mxu0 0.0
        %814 = vmatmul.mubr.f32.gmra.mrb[0].mxu0 %v670
        %v815 = vpop.f32.mrb[0].mxu0
        %v816 = vadd.f32 0.0, %v815
        %v817 = vpop.f32.mrb[0].mxu0
        %818 = vmatprep.mubr.f32.mxu0 0.0
        %819 = vmatmul.mubr.f32.gmra.mrb[0].mxu0 %v673
        %v820 = vpop.f32.mrb[0].mxu0
        %v821 = vadd.f32 0.0, %v820
        %v822 = vpop.f32.mrb[0].mxu0
        %823 = vdwg.mxu0
        %v824 = vld [vmem:[%s1] sm:$0xff]
        %v825 = vld [vmem:[%s1 + $0x8] sm:$0xff]
        %v826 = vld [vmem:[%s1 + $0x10] sm:$0xff]
        %v827 = vld [vmem:[%s1 + $0x18] sm:$0xff]
        %v828 = vld [vmem:[%s1 + $0x20] sm:$0xff]
        %v829 = vld [vmem:[%s1 + $0x28] sm:$0xff]
        %v830 = vld [vmem:[%s1 + $0x30] sm:$0xff]
        %v831 = vld [vmem:[%s1 + $0x38] sm:$0xff]
        %v832 = vld [vmem:[%s1 + $0x40] sm:$0xff]
        %v833 = vld [vmem:[%s1 + $0x48] sm:$0xff]
        %v834 = vld [vmem:[%s1 + $0x50] sm:$0xff]
        %v835 = vld [vmem:[%s1 + $0x58] sm:$0xff]
        %v836 = vld [vmem:[%s1 + $0x60] sm:$0xff]
        %v837 = vld [vmem:[%s1 + $0x68] sm:$0xff]
        %v838 = vld [vmem:[%s1 + $0x70] sm:$0xff]
        %v839 = vld [vmem:[%s1 + $0x78] sm:$0xff]
        %v840 = vld [vmem:[%s1 + $0x80] sm:$0xff]
        %v841 = vld [vmem:[%s1 + $0x88] sm:$0xff]
        %v842 = vld [vmem:[%s1 + $0x90] sm:$0xff]
        %v843 = vld [vmem:[%s1 + $0x98] sm:$0xff]
        %v844 = vld [vmem:[%s1 + $0xa0] sm:$0xff]
        %v845 = vld [vmem:[%s1 + $0xa8] sm:$0xff]
        %v846 = vld [vmem:[%s1 + $0xb0] sm:$0xff]
        %v847 = vld [vmem:[%s1 + $0xb8] sm:$0xff]
        %852 = vrot.lane.b32.xlu0 %v746, 120
        %v853 = vpop.permute.xlu0 %852
        %854 = vrot.lane.b32.xlu0 %v751, 120
        %v855 = vpop.permute.xlu0 %854
        %856 = vrot.lane.b32.xlu0 %v756, 120
        %v857 = vpop.permute.xlu0 %856
        %858 = vrot.lane.b32.xlu0 %v761, 120
        %v859 = vpop.permute.xlu0 %858
        %864 = vrot.lane.b32.xlu0 %v746, 112
        %v865 = vpop.permute.xlu0 %864
        %866 = vrot.lane.b32.xlu0 %v751, 112
        %v867 = vpop.permute.xlu0 %866
        %868 = vrot.lane.b32.xlu0 %v756, 112
        %v869 = vpop.permute.xlu0 %868
        %870 = vrot.lane.b32.xlu0 %v761, 112
        %v871 = vpop.permute.xlu0 %870
        %880 = vrot.lane.b32.xlu0 %v766, 120
        %v881 = vpop.permute.xlu0 %880
        %882 = vrot.lane.b32.xlu0 %v771, 120
        %v883 = vpop.permute.xlu0 %882
        %884 = vrot.lane.b32.xlu0 %v776, 120
        %v885 = vpop.permute.xlu0 %884
        %886 = vrot.lane.b32.xlu0 %v781, 120
        %v887 = vpop.permute.xlu0 %886
        %892 = vrot.lane.b32.xlu0 %v766, 112
        %v893 = vpop.permute.xlu0 %892
        %894 = vrot.lane.b32.xlu0 %v771, 112
        %v895 = vpop.permute.xlu0 %894
        %896 = vrot.lane.b32.xlu0 %v776, 112
        %v897 = vpop.permute.xlu0 %896
        %898 = vrot.lane.b32.xlu0 %v781, 112
        %v899 = vpop.permute.xlu0 %898
        %908 = vrot.lane.b32.xlu0 %v786, 120
        %v909 = vpop.permute.xlu0 %908
        %910 = vrot.lane.b32.xlu0 %v791, 120
        %v911 = vpop.permute.xlu0 %910
        %912 = vrot.lane.b32.xlu0 %v796, 120
        %v913 = vpop.permute.xlu0 %912
        %914 = vrot.lane.b32.xlu0 %v801, 120
        %v915 = vpop.permute.xlu0 %914
        %920 = vrot.lane.b32.xlu0 %v786, 112
        %v921 = vpop.permute.xlu0 %920
        %922 = vrot.lane.b32.xlu0 %v791, 112
        %v923 = vpop.permute.xlu0 %922
        %924 = vrot.lane.b32.xlu0 %v796, 112
        %v925 = vpop.permute.xlu0 %924
        %926 = vrot.lane.b32.xlu0 %v801, 112
        %v927 = vpop.permute.xlu0 %926
        %vm932 = vcmask 261120
        %v934 = vsel %vm932, %v826, 0
        %v937 = vsel %vm932, %v829, 0
        %v940 = vsel %vm932, %v832, 0
        %v943 = vsel %vm932, %v835, 0
        %v946 = vsel %vm932, %v838, 0
        %v949 = vsel %vm932, %v841, 0
        %v952 = vsel %vm932, %v844, 0
        %v955 = vsel %vm932, %v847, 0
        %957 = vmatprep.subr.mxu0 0.0
        %958 = vmatpush1.msra.mxu0 %v746
        %959 = vmatprep.subr.mxu0 0.0
        %960 = vmatpush1.msra.mxu0 %v751
        %961 = vmatprep.subr.mxu0 0.0
        %962 = vmatpush1.msra.mxu0 %v756
        %963 = vmatprep.subr.mxu0 0.0
        %964 = vmatpush1.msra.mxu0 %v761
        %965 = vmatprep.subr.mxu0 0.0
        %966 = vmatpush1.msra.mxu0 %v853
        %967 = vmatprep.subr.mxu0 0.0
        %968 = vmatpush1.msra.mxu0 %v855
        %969 = vmatprep.subr.mxu0 0.0
        %970 = vmatpush1.msra.mxu0 %v857
        %971 = vmatprep.subr.mxu0 0.0
        %972 = vmatpush1.msra.mxu0 %v859
        %973 = vmatprep.subr.mxu0 0.0
        %974 = vmatpush1.msra.mxu0 %v865
        %975 = vmatprep.subr.mxu0 0.0
        %976 = vmatpush1.msra.mxu0 %v867
        %977 = vmatprep.subr.mxu0 0.0
        %978 = vmatpush1.msra.mxu0 %v869
        %979 = vmatprep.subr.mxu0 0.0
        %980 = vmatpush1.msra.mxu0 %v871
        %981 = vmatprep.subr.mxu0 0.0
        %982 = vmatpush1.msra.mxu0 %v766
        %983 = vmatprep.subr.mxu0 0.0
        %984 = vmatpush1.msra.mxu0 %v771
        %985 = vmatprep.subr.mxu0 0.0
        %986 = vmatpush1.msra.mxu0 %v776
        %987 = vmatprep.subr.mxu0 0.0
        %988 = vmatpush1.msra.mxu0 %v781
        %989 = vmatprep.subr.mxu0 0.0
        %990 = vmatpush1.msra.mxu0 %v881
        %991 = vmatprep.subr.mxu0 0.0
        %992 = vmatpush1.msra.mxu0 %v883
        %993 = vmatprep.subr.mxu0 0.0
        %994 = vmatpush1.msra.mxu0 %v885
        %995 = vmatprep.subr.mxu0 0.0
        %996 = vmatpush1.msra.mxu0 %v887
        %997 = vmatprep.subr.mxu0 0.0
        %998 = vmatpush1.msra.mxu0 %v893
        %999 = vmatprep.subr.mxu0 0.0
        %1000 = vmatpush1.msra.mxu0 %v895
        %1001 = vmatprep.subr.mxu0 0.0
        %1002 = vmatpush1.msra.mxu0 %v897
        %1003 = vmatprep.subr.mxu0 0.0
        %1004 = vmatpush1.msra.mxu0 %v899
        %1005 = vmatprep.subr.mxu0 0.0
        %1006 = vmatpush1.msra.mxu0 %v786
        %1007 = vmatprep.subr.mxu0 0.0
        %1008 = vmatpush1.msra.mxu0 %v791
        %1009 = vmatprep.subr.mxu0 0.0
        %1010 = vmatpush1.msra.mxu0 %v796
        %1011 = vmatprep.subr.mxu0 0.0
        %1012 = vmatpush1.msra.mxu0 %v801
        %1013 = vmatprep.subr.mxu0 0.0
        %1014 = vmatpush1.msra.mxu0 %v909
        %1015 = vmatprep.subr.mxu0 0.0
        %1016 = vmatpush1.msra.mxu0 %v911
        %1017 = vmatprep.subr.mxu0 0.0
        %1018 = vmatpush1.msra.mxu0 %v913
        %1019 = vmatprep.subr.mxu0 0.0
        %1020 = vmatpush1.msra.mxu0 %v915
        %1021 = vmatprep.mubr.f32.mxu0 %v825
        %1022 = vmatmul.mubr.f32.gmra.mrb[0].mxu0 %v824
        %v1023 = vpop.f32.mrb[0].mxu0
        %v1024 = vadd.f32 0.0, %v1023
        %v1025 = vpop.f32.mrb[0].mxu0
        %1026 = vmatprep.mubr.f32.mxu0 %v828
        %1027 = vmatmul.mubr.f32.gmra.mrb[0].mxu0 %v827
        %v1028 = vpop.f32.mrb[0].mxu0
        %v1029 = vadd.f32 0.0, %v1028
        %v1030 = vpop.f32.mrb[0].mxu0
        %1031 = vmatprep.mubr.f32.mxu0 %v831
        %1032 = vmatmul.mubr.f32.gmra.mrb[0].mxu0 %v830
        %v1033 = vpop.f32.mrb[0].mxu0
        %v1034 = vadd.f32 0.0, %v1033
        %v1035 = vpop.f32.mrb[0].mxu0
        %1036 = vmatprep.mubr.f32.mxu0 %v834
        %1037 = vmatmul.mubr.f32.gmra.mrb[0].mxu0 %v833
        %v1038 = vpop.f32.mrb[0].mxu0
        %v1039 = vadd.f32 0.0, %v1038
        %v1040 = vpop.f32.mrb[0].mxu0
        %1041 = vmatprep.mubr.f32.mxu0 %v837
        %1042 = vmatmul.mubr.f32.gmra.mrb[0].mxu0 %v836
        %v1043 = vpop.f32.mrb[0].mxu0
        %v1044 = vadd.f32 0.0, %v1043
        %v1045 = vpop.f32.mrb[0].mxu0
        %1046 = vmatprep.mubr.f32.mxu0 %v840
        %1047 = vmatmul.mubr.f32.gmra.mrb[0].mxu0 %v839
        %v1048 = vpop.f32.mrb[0].mxu0
        %v1049 = vadd.f32 0.0, %v1048
        %v1050 = vpop.f32.mrb[0].mxu0
        %1051 = vmatprep.mubr.f32.mxu0 %v843
        %1052 = vmatmul.mubr.f32.gmra.mrb[0].mxu0 %v842
        %v1053 = vpop.f32.mrb[0].mxu0
        %v1054 = vadd.f32 0.0, %v1053
        %v1055 = vpop.f32.mrb[0].mxu0
        %1056 = vmatprep.mubr.f32.mxu0 %v846
        %1057 = vmatmul.mubr.f32.gmra.mrb[0].mxu0 %v845
        %v1058 = vpop.f32.mrb[0].mxu0
        %v1059 = vadd.f32 0.0, %v1058
        %v1060 = vpop.f32.mrb[0].mxu0
        %1061 = vdwg.mxu0
        %1062 = vmatprep.subr.mxu0 0.0
        %1063 = vmatpush1.msra.mxu0 %v921
        %1064 = vmatprep.subr.mxu0 0.0
        %1065 = vmatpush1.msra.mxu0 %v923
        %1066 = vmatprep.subr.mxu0 0.0
        %1067 = vmatpush1.msra.mxu0 %v925
        %1068 = vmatprep.subr.mxu0 0.0
        %1069 = vmatpush1.msra.mxu0 %v927
        %1070 = vmatprep.subr.mxu0 0.0
        %1071 = vmatpush1.msra.mxu0 0.0
        %1072 = vmatprep.subr.mxu0 0.0
        %1073 = vmatpush1.msra.mxu0 0.0
        %1074 = vmatprep.subr.mxu0 0.0
        %1075 = vmatpush1.msra.mxu0 0.0
        %1076 = vmatprep.subr.mxu0 0.0
        %1077 = vmatpush1.msra.mxu0 0.0
        %1078 = vmatprep.subr.mxu0 0.0
        %1079 = vmatpush1.msra.mxu0 0.0
        %1080 = vmatprep.subr.mxu0 0.0
        %1081 = vmatpush1.msra.mxu0 0.0
        %1082 = vmatprep.subr.mxu0 0.0
        %1083 = vmatpush1.msra.mxu0 0.0
        %1084 = vmatprep.subr.mxu0 0.0
        %1085 = vmatpush1.msra.mxu0 0.0
        %1086 = vmatprep.subr.mxu0 0.0
        %1087 = vmatpush1.msra.mxu0 0.0
        %1088 = vmatprep.subr.mxu0 0.0
        %1089 = vmatpush1.msra.mxu0 0.0
        %1090 = vmatprep.subr.mxu0 0.0
        %1091 = vmatpush1.msra.mxu0 0.0
        %1092 = vmatprep.subr.mxu0 0.0
        %1093 = vmatpush1.msra.mxu0 0.0
        %1094 = vmatprep.subr.mxu0 0.0
        %1095 = vmatpush1.msra.mxu0 0.0
        %1096 = vmatprep.subr.mxu0 0.0
        %1097 = vmatpush1.msra.mxu0 0.0
        %1098 = vmatprep.subr.mxu0 0.0
        %1099 = vmatpush1.msra.mxu0 0.0
        %1100 = vmatprep.subr.mxu0 0.0
        %1101 = vmatpush1.msra.mxu0 0.0
        %1102 = vmatprep.subr.mxu0 0.0
        %1103 = vmatpush1.msra.mxu0 0.0
        %1104 = vmatprep.subr.mxu0 0.0
        %1105 = vmatpush1.msra.mxu0 0.0
        %1106 = vmatprep.subr.mxu0 0.0
        %1107 = vmatpush1.msra.mxu0 0.0
        %1108 = vmatprep.subr.mxu0 0.0
        %1109 = vmatpush1.msra.mxu0 0.0
        %1110 = vmatprep.subr.mxu0 0.0
        %1111 = vmatpush1.msra.mxu0 0.0
        %1112 = vmatprep.subr.mxu0 0.0
        %1113 = vmatpush1.msra.mxu0 0.0
        %1114 = vmatprep.subr.mxu0 0.0
        %1115 = vmatpush1.msra.mxu0 0.0
        %1116 = vmatprep.subr.mxu0 0.0
        %1117 = vmatpush1.msra.mxu0 0.0
        %1118 = vmatprep.subr.mxu0 0.0
        %1119 = vmatpush1.msra.mxu0 0.0
        %1120 = vmatprep.subr.mxu0 0.0
        %1121 = vmatpush1.msra.mxu0 0.0
        %1122 = vmatprep.subr.mxu0 0.0
        %1123 = vmatpush1.msra.mxu0 0.0
        %1124 = vmatprep.subr.mxu0 0.0
        %1125 = vmatpush1.msra.mxu0 0.0
        %1126 = vmatprep.mubr.f32.mxu0 0.0
        %1127 = vmatmul.mubr.f32.gmra.mrb[0].mxu0 %v934
        %v1128 = vpop.f32.mrb[0].mxu0
        %v1129 = vadd.f32 %v1024, %v1128
        %v1130 = vpop.f32.mrb[0].mxu0
        %1131 = vmatprep.mubr.f32.mxu0 0.0
        %1132 = vmatmul.mubr.f32.gmra.mrb[0].mxu0 %v937
        %v1133 = vpop.f32.mrb[0].mxu0
        %v1134 = vadd.f32 %v1029, %v1133
        %v1135 = vpop.f32.mrb[0].mxu0
        %1136 = vmatprep.mubr.f32.mxu0 0.0
        %1137 = vmatmul.mubr.f32.gmra.mrb[0].mxu0 %v940
        %v1138 = vpop.f32.mrb[0].mxu0
        %v1139 = vadd.f32 %v1034, %v1138
        %v1140 = vpop.f32.mrb[0].mxu0
        %1141 = vmatprep.mubr.f32.mxu0 0.0
        %1142 = vmatmul.mubr.f32.gmra.mrb[0].mxu0 %v943
        %v1143 = vpop.f32.mrb[0].mxu0
        %v1144 = vadd.f32 %v1039, %v1143
        %v1145 = vpop.f32.mrb[0].mxu0
        %1146 = vmatprep.mubr.f32.mxu0 0.0
        %1147 = vmatmul.mubr.f32.gmra.mrb[0].mxu0 %v946
        %v1148 = vpop.f32.mrb[0].mxu0
        %v1149 = vadd.f32 %v1044, %v1148
        %v1150 = vpop.f32.mrb[0].mxu0
        %1151 = vmatprep.mubr.f32.mxu0 0.0
        %1152 = vmatmul.mubr.f32.gmra.mrb[0].mxu0 %v949
        %v1153 = vpop.f32.mrb[0].mxu0
        %v1154 = vadd.f32 %v1049, %v1153
        %v1155 = vpop.f32.mrb[0].mxu0
        %1156 = vmatprep.mubr.f32.mxu0 0.0
        %1157 = vmatmul.mubr.f32.gmra.mrb[0].mxu0 %v952
        %v1158 = vpop.f32.mrb[0].mxu0
        %v1159 = vadd.f32 %v1054, %v1158
        %v1160 = vpop.f32.mrb[0].mxu0
        %1161 = vmatprep.mubr.f32.mxu0 0.0
        %1162 = vmatmul.mubr.f32.gmra.mrb[0].mxu0 %v955
        %v1163 = vpop.f32.mrb[0].mxu0
        %v1164 = vadd.f32 %v1059, %v1163
        %v1165 = vpop.f32.mrb[0].mxu0
        %1166 = vdwg.mxu0
        %1167 = vrot.lane.b32.xlu0 %v853, 120
        %v1168 = vpop.permute.xlu0 %1167
        %1169 = vrot.lane.b32.xlu0 %v855, 120
        %v1170 = vpop.permute.xlu0 %1169
        %1171 = vrot.lane.b32.xlu0 %v857, 120
        %v1172 = vpop.permute.xlu0 %1171
        %1173 = vrot.lane.b32.xlu0 %v859, 120
        %v1174 = vpop.permute.xlu0 %1173
        %1175 = vrot.lane.b32.xlu0 %v865, 120
        %v1176 = vpop.permute.xlu0 %1175
        %1177 = vrot.lane.b32.xlu0 %v867, 120
        %v1178 = vpop.permute.xlu0 %1177
        %1179 = vrot.lane.b32.xlu0 %v869, 120
        %v1180 = vpop.permute.xlu0 %1179
        %1181 = vrot.lane.b32.xlu0 %v871, 120
        %v1182 = vpop.permute.xlu0 %1181
        %1183 = vrot.lane.b32.xlu0 %v881, 120
        %v1184 = vpop.permute.xlu0 %1183
        %1185 = vrot.lane.b32.xlu0 %v883, 120
        %v1186 = vpop.permute.xlu0 %1185
        %1187 = vrot.lane.b32.xlu0 %v885, 120
        %v1188 = vpop.permute.xlu0 %1187
        %1189 = vrot.lane.b32.xlu0 %v887, 120
        %v1190 = vpop.permute.xlu0 %1189
        %1191 = vrot.lane.b32.xlu0 %v893, 120
        %v1192 = vpop.permute.xlu0 %1191
        %1193 = vrot.lane.b32.xlu0 %v895, 120
        %v1194 = vpop.permute.xlu0 %1193
        %1195 = vrot.lane.b32.xlu0 %v897, 120
        %v1196 = vpop.permute.xlu0 %1195
        %1197 = vrot.lane.b32.xlu0 %v899, 120
        %v1198 = vpop.permute.xlu0 %1197
        %1199 = vrot.lane.b32.xlu0 %v909, 120
        %v1200 = vpop.permute.xlu0 %1199
        %1201 = vrot.lane.b32.xlu0 %v911, 120
        %v1202 = vpop.permute.xlu0 %1201
        %1203 = vrot.lane.b32.xlu0 %v913, 120
        %v1204 = vpop.permute.xlu0 %1203
        %1205 = vrot.lane.b32.xlu0 %v915, 120
        %v1206 = vpop.permute.xlu0 %1205
        %1207 = vrot.lane.b32.xlu0 %v921, 120
        %v1208 = vpop.permute.xlu0 %1207
        %1209 = vrot.lane.b32.xlu0 %v923, 120
        %v1210 = vpop.permute.xlu0 %1209
        %1211 = vrot.lane.b32.xlu0 %v925, 120
        %v1212 = vpop.permute.xlu0 %1211
        %1213 = vrot.lane.b32.xlu0 %v927, 120
        %v1214 = vpop.permute.xlu0 %1213
        %1239 = vmatprep.subr.mxu0 0.0
        %1240 = vmatpush1.msra.mxu0 %v853
        %1241 = vmatprep.subr.mxu0 0.0
        %1242 = vmatpush1.msra.mxu0 %v855
        %1243 = vmatprep.subr.mxu0 0.0
        %1244 = vmatpush1.msra.mxu0 %v857
        %1245 = vmatprep.subr.mxu0 0.0
        %1246 = vmatpush1.msra.mxu0 %v859
        %1247 = vmatprep.subr.mxu0 0.0
        %1248 = vmatpush1.msra.mxu0 %v1168
        %1249 = vmatprep.subr.mxu0 0.0
        %1250 = vmatpush1.msra.mxu0 %v1170
        %1251 = vmatprep.subr.mxu0 0.0
        %1252 = vmatpush1.msra.mxu0 %v1172
        %1253 = vmatprep.subr.mxu0 0.0
        %1254 = vmatpush1.msra.mxu0 %v1174
        %1255 = vmatprep.subr.mxu0 0.0
        %1256 = vmatpush1.msra.mxu0 %v1176
        %1257 = vmatprep.subr.mxu0 0.0
        %1258 = vmatpush1.msra.mxu0 %v1178
        %1259 = vmatprep.subr.mxu0 0.0
        %1260 = vmatpush1.msra.mxu0 %v1180
        %1261 = vmatprep.subr.mxu0 0.0
        %1262 = vmatpush1.msra.mxu0 %v1182
        %1263 = vmatprep.subr.mxu0 0.0
        %1264 = vmatpush1.msra.mxu0 %v881
        %1265 = vmatprep.subr.mxu0 0.0
        %1266 = vmatpush1.msra.mxu0 %v883
        %1267 = vmatprep.subr.mxu0 0.0
        %1268 = vmatpush1.msra.mxu0 %v885
        %1269 = vmatprep.subr.mxu0 0.0
        %1270 = vmatpush1.msra.mxu0 %v887
        %1271 = vmatprep.subr.mxu0 0.0
        %1272 = vmatpush1.msra.mxu0 %v1184
        %1273 = vmatprep.subr.mxu0 0.0
        %1274 = vmatpush1.msra.mxu0 %v1186
        %1275 = vmatprep.subr.mxu0 0.0
        %1276 = vmatpush1.msra.mxu0 %v1188
        %1277 = vmatprep.subr.mxu0 0.0
        %1278 = vmatpush1.msra.mxu0 %v1190
        %1279 = vmatprep.subr.mxu0 0.0
        %1280 = vmatpush1.msra.mxu0 %v1192
        %1281 = vmatprep.subr.mxu0 0.0
        %1282 = vmatpush1.msra.mxu0 %v1194
        %1283 = vmatprep.subr.mxu0 0.0
        %1284 = vmatpush1.msra.mxu0 %v1196
        %1285 = vmatprep.subr.mxu0 0.0
        %1286 = vmatpush1.msra.mxu0 %v1198
        %1287 = vmatprep.subr.mxu0 0.0
        %1288 = vmatpush1.msra.mxu0 %v909
        %1289 = vmatprep.subr.mxu0 0.0
        %1290 = vmatpush1.msra.mxu0 %v911
        %1291 = vmatprep.subr.mxu0 0.0
        %1292 = vmatpush1.msra.mxu0 %v913
        %1293 = vmatprep.subr.mxu0 0.0
        %1294 = vmatpush1.msra.mxu0 %v915
        %1295 = vmatprep.subr.mxu0 0.0
        %1296 = vmatpush1.msra.mxu0 %v1200
        %1297 = vmatprep.subr.mxu0 0.0
        %1298 = vmatpush1.msra.mxu0 %v1202
        %1299 = vmatprep.subr.mxu0 0.0
        %1300 = vmatpush1.msra.mxu0 %v1204
        %1301 = vmatprep.subr.mxu0 0.0
        %1302 = vmatpush1.msra.mxu0 %v1206
        %1303 = vmatprep.mubr.f32.mxu0 %v825
        %1304 = vmatmul.mubr.f32.gmra.mrb[0].mxu0 %v824
        %v1305 = vpop.f32.mrb[0].mxu0
        %v1306 = vadd.f32 0.0, %v1305
        %v1307 = vpop.f32.mrb[0].mxu0
        %1308 = vmatprep.mubr.f32.mxu0 %v828
        %1309 = vmatmul.mubr.f32.gmra.mrb[0].mxu0 %v827
        %v1310 = vpop.f32.mrb[0].mxu0
        %v1311 = vadd.f32 0.0, %v1310
        %v1312 = vpop.f32.mrb[0].mxu0
        %1313 = vmatprep.mubr.f32.mxu0 %v831
        %1314 = vmatmul.mubr.f32.gmra.mrb[0].mxu0 %v830
        %v1315 = vpop.f32.mrb[0].mxu0
        %v1316 = vadd.f32 0.0, %v1315
        %v1317 = vpop.f32.mrb[0].mxu0
        %1318 = vmatprep.mubr.f32.mxu0 %v834
        %1319 = vmatmul.mubr.f32.gmra.mrb[0].mxu0 %v833
        %v1320 = vpop.f32.mrb[0].mxu0
        %v1321 = vadd.f32 0.0, %v1320
        %v1322 = vpop.f32.mrb[0].mxu0
        %1323 = vmatprep.mubr.f32.mxu0 %v837
        %1324 = vmatmul.mubr.f32.gmra.mrb[0].mxu0 %v836
        %v1325 = vpop.f32.mrb[0].mxu0
        %v1326 = vadd.f32 0.0, %v1325
        %v1327 = vpop.f32.mrb[0].mxu0
        %1328 = vmatprep.mubr.f32.mxu0 %v840
        %1329 = vmatmul.mubr.f32.gmra.mrb[0].mxu0 %v839
        %v1330 = vpop.f32.mrb[0].mxu0
        %v1331 = vadd.f32 0.0, %v1330
        %v1332 = vpop.f32.mrb[0].mxu0
        %1333 = vmatprep.mubr.f32.mxu0 %v843
        %1334 = vmatmul.mubr.f32.gmra.mrb[0].mxu0 %v842
        %v1335 = vpop.f32.mrb[0].mxu0
        %v1336 = vadd.f32 0.0, %v1335
        %v1337 = vpop.f32.mrb[0].mxu0
        %1338 = vmatprep.mubr.f32.mxu0 %v846
        %1339 = vmatmul.mubr.f32.gmra.mrb[0].mxu0 %v845
        %v1340 = vpop.f32.mrb[0].mxu0
        %v1341 = vadd.f32 0.0, %v1340
        %v1342 = vpop.f32.mrb[0].mxu0
        %1343 = vdwg.mxu0
        %1344 = vmatprep.subr.mxu0 0.0
        %1345 = vmatpush1.msra.mxu0 %v1208
        %1346 = vmatprep.subr.mxu0 0.0
        %1347 = vmatpush1.msra.mxu0 %v1210
        %1348 = vmatprep.subr.mxu0 0.0
        %1349 = vmatpush1.msra.mxu0 %v1212
        %1350 = vmatprep.subr.mxu0 0.0
        %1351 = vmatpush1.msra.mxu0 %v1214
        %1352 = vmatprep.subr.mxu0 0.0
        %1353 = vmatpush1.msra.mxu0 0.0
        %1354 = vmatprep.subr.mxu0 0.0
        %1355 = vmatpush1.msra.mxu0 0.0
        %1356 = vmatprep.subr.mxu0 0.0
        %1357 = vmatpush1.msra.mxu0 0.0
        %1358 = vmatprep.subr.mxu0 0.0
        %1359 = vmatpush1.msra.mxu0 0.0
        %1360 = vmatprep.subr.mxu0 0.0
        %1361 = vmatpush1.msra.mxu0 0.0
        %1362 = vmatprep.subr.mxu0 0.0
        %1363 = vmatpush1.msra.mxu0 0.0
        %1364 = vmatprep.subr.mxu0 0.0
        %1365 = vmatpush1.msra.mxu0 0.0
        %1366 = vmatprep.subr.mxu0 0.0
        %1367 = vmatpush1.msra.mxu0 0.0
        %1368 = vmatprep.subr.mxu0 0.0
        %1369 = vmatpush1.msra.mxu0 0.0
        %1370 = vmatprep.subr.mxu0 0.0
        %1371 = vmatpush1.msra.mxu0 0.0
        %1372 = vmatprep.subr.mxu0 0.0
        %1373 = vmatpush1.msra.mxu0 0.0
        %1374 = vmatprep.subr.mxu0 0.0
        %1375 = vmatpush1.msra.mxu0 0.0
        %1376 = vmatprep.subr.mxu0 0.0
        %1377 = vmatpush1.msra.mxu0 0.0
        %1378 = vmatprep.subr.mxu0 0.0
        %1379 = vmatpush1.msra.mxu0 0.0
        %1380 = vmatprep.subr.mxu0 0.0
        %1381 = vmatpush1.msra.mxu0 0.0
        %1382 = vmatprep.subr.mxu0 0.0
        %1383 = vmatpush1.msra.mxu0 0.0
        %1384 = vmatprep.subr.mxu0 0.0
        %1385 = vmatpush1.msra.mxu0 0.0
        %1386 = vmatprep.subr.mxu0 0.0
        %1387 = vmatpush1.msra.mxu0 0.0
        %1388 = vmatprep.subr.mxu0 0.0
        %1389 = vmatpush1.msra.mxu0 0.0
        %1390 = vmatprep.subr.mxu0 0.0
        %1391 = vmatpush1.msra.mxu0 0.0
        %1392 = vmatprep.subr.mxu0 0.0
        %1393 = vmatpush1.msra.mxu0 0.0
        %1394 = vmatprep.subr.mxu0 0.0
        %1395 = vmatpush1.msra.mxu0 0.0
        %1396 = vmatprep.subr.mxu0 0.0
        %1397 = vmatpush1.msra.mxu0 0.0
        %1398 = vmatprep.subr.mxu0 0.0
        %1399 = vmatpush1.msra.mxu0 0.0
        %1400 = vmatprep.subr.mxu0 0.0
        %1401 = vmatpush1.msra.mxu0 0.0
        %1402 = vmatprep.subr.mxu0 0.0
        %1403 = vmatpush1.msra.mxu0 0.0
        %1404 = vmatprep.subr.mxu0 0.0
        %1405 = vmatpush1.msra.mxu0 0.0
        %1406 = vmatprep.subr.mxu0 0.0
        %1407 = vmatpush1.msra.mxu0 0.0
        %1408 = vmatprep.mubr.f32.mxu0 0.0
        %1409 = vmatmul.mubr.f32.gmra.mrb[0].mxu0 %v934
        %v1410 = vpop.f32.mrb[0].mxu0
        %v1411 = vadd.f32 %v1306, %v1410
        %v1412 = vpop.f32.mrb[0].mxu0
        %1413 = vmatprep.mubr.f32.mxu0 0.0
        %1414 = vmatmul.mubr.f32.gmra.mrb[0].mxu0 %v937
        %v1415 = vpop.f32.mrb[0].mxu0
        %v1416 = vadd.f32 %v1311, %v1415
        %v1417 = vpop.f32.mrb[0].mxu0
        %1418 = vmatprep.mubr.f32.mxu0 0.0
        %1419 = vmatmul.mubr.f32.gmra.mrb[0].mxu0 %v940
        %v1420 = vpop.f32.mrb[0].mxu0
        %v1421 = vadd.f32 %v1316, %v1420
        %v1422 = vpop.f32.mrb[0].mxu0
        %1423 = vmatprep.mubr.f32.mxu0 0.0
        %1424 = vmatmul.mubr.f32.gmra.mrb[0].mxu0 %v943
        %v1425 = vpop.f32.mrb[0].mxu0
        %v1426 = vadd.f32 %v1321, %v1425
        %v1427 = vpop.f32.mrb[0].mxu0
        %1428 = vmatprep.mubr.f32.mxu0 0.0
        %1429 = vmatmul.mubr.f32.gmra.mrb[0].mxu0 %v946
        %v1430 = vpop.f32.mrb[0].mxu0
        %v1431 = vadd.f32 %v1326, %v1430
        %v1432 = vpop.f32.mrb[0].mxu0
        %1433 = vmatprep.mubr.f32.mxu0 0.0
        %1434 = vmatmul.mubr.f32.gmra.mrb[0].mxu0 %v949
        %v1435 = vpop.f32.mrb[0].mxu0
        %v1436 = vadd.f32 %v1331, %v1435
        %v1437 = vpop.f32.mrb[0].mxu0
        %1438 = vmatprep.mubr.f32.mxu0 0.0
        %1439 = vmatmul.mubr.f32.gmra.mrb[0].mxu0 %v952
        %v1440 = vpop.f32.mrb[0].mxu0
        %v1441 = vadd.f32 %v1336, %v1440
        %v1442 = vpop.f32.mrb[0].mxu0
        %1443 = vmatprep.mubr.f32.mxu0 0.0
        %1444 = vmatmul.mubr.f32.gmra.mrb[0].mxu0 %v955
        %v1445 = vpop.f32.mrb[0].mxu0
        %v1446 = vadd.f32 %v1341, %v1445
        %v1447 = vpop.f32.mrb[0].mxu0
        %1448 = vdwg.mxu0
        %v1449 = vmax.f32 %v1129, %v1411
        %v1450 = vmax.f32 %v1134, %v1416
        %v1451 = vmax.f32 %v1139, %v1421
        %v1452 = vmax.f32 %v1144, %v1426
        %v1453 = vmax.f32 %v1149, %v1431
        %v1454 = vmax.f32 %v1154, %v1436
        %v1455 = vmax.f32 %v1159, %v1441
        %v1456 = vmax.f32 %v1164, %v1446
        %1461 = vrot.lane.b32.xlu0 %v806, 120
        %v1462 = vpop.permute.xlu0 %1461
        %1463 = vrot.lane.b32.xlu0 %v811, 120
        %v1464 = vpop.permute.xlu0 %1463
        %1465 = vrot.lane.b32.xlu0 %v816, 120
        %v1466 = vpop.permute.xlu0 %1465
        %1467 = vrot.lane.b32.xlu0 %v821, 120
        %v1468 = vpop.permute.xlu0 %1467
        %1473 = vrot.lane.b32.xlu0 %v806, 112
        %v1474 = vpop.permute.xlu0 %1473
        %1475 = vrot.lane.b32.xlu0 %v811, 112
        %v1476 = vpop.permute.xlu0 %1475
        %1477 = vrot.lane.b32.xlu0 %v816, 112
        %v1478 = vpop.permute.xlu0 %1477
        %1479 = vrot.lane.b32.xlu0 %v821, 112
        %v1480 = vpop.permute.xlu0 %1479
        %1485 = vmatprep.subr.mxu0 0.0
        %1486 = vmatpush1.msra.mxu0 %v766
        %1487 = vmatprep.subr.mxu0 0.0
        %1488 = vmatpush1.msra.mxu0 %v771
        %1489 = vmatprep.subr.mxu0 0.0
        %1490 = vmatpush1.msra.mxu0 %v776
        %1491 = vmatprep.subr.mxu0 0.0
        %1492 = vmatpush1.msra.mxu0 %v781
        %1493 = vmatprep.subr.mxu0 0.0
        %1494 = vmatpush1.msra.mxu0 %v881
        %1495 = vmatprep.subr.mxu0 0.0
        %1496 = vmatpush1.msra.mxu0 %v883
        %1497 = vmatprep.subr.mxu0 0.0
        %1498 = vmatpush1.msra.mxu0 %v885
        %1499 = vmatprep.subr.mxu0 0.0
        %1500 = vmatpush1.msra.mxu0 %v887
        %1501 = vmatprep.subr.mxu0 0.0
        %1502 = vmatpush1.msra.mxu0 %v893
        %1503 = vmatprep.subr.mxu0 0.0
        %1504 = vmatpush1.msra.mxu0 %v895
        %1505 = vmatprep.subr.mxu0 0.0
        %1506 = vmatpush1.msra.mxu0 %v897
        %1507 = vmatprep.subr.mxu0 0.0
        %1508 = vmatpush1.msra.mxu0 %v899
        %1509 = vmatprep.subr.mxu0 0.0
        %1510 = vmatpush1.msra.mxu0 %v786
        %1511 = vmatprep.subr.mxu0 0.0
        %1512 = vmatpush1.msra.mxu0 %v791
        %1513 = vmatprep.subr.mxu0 0.0
        %1514 = vmatpush1.msra.mxu0 %v796
        %1515 = vmatprep.subr.mxu0 0.0
        %1516 = vmatpush1.msra.mxu0 %v801
        %1517 = vmatprep.subr.mxu0 0.0
        %1518 = vmatpush1.msra.mxu0 %v909
        %1519 = vmatprep.subr.mxu0 0.0
        %1520 = vmatpush1.msra.mxu0 %v911
        %1521 = vmatprep.subr.mxu0 0.0
        %1522 = vmatpush1.msra.mxu0 %v913
        %1523 = vmatprep.subr.mxu0 0.0
        %1524 = vmatpush1.msra.mxu0 %v915
        %1525 = vmatprep.subr.mxu0 0.0
        %1526 = vmatpush1.msra.mxu0 %v921
        %1527 = vmatprep.subr.mxu0 0.0
        %1528 = vmatpush1.msra.mxu0 %v923
        %1529 = vmatprep.subr.mxu0 0.0
        %1530 = vmatpush1.msra.mxu0 %v925
        %1531 = vmatprep.subr.mxu0 0.0
        %1532 = vmatpush1.msra.mxu0 %v927
        %1533 = vmatprep.subr.mxu0 0.0
        %1534 = vmatpush1.msra.mxu0 %v806
        %1535 = vmatprep.subr.mxu0 0.0
        %1536 = vmatpush1.msra.mxu0 %v811
        %1537 = vmatprep.subr.mxu0 0.0
        %1538 = vmatpush1.msra.mxu0 %v816
        %1539 = vmatprep.subr.mxu0 0.0
        %1540 = vmatpush1.msra.mxu0 %v821
        %1541 = vmatprep.subr.mxu0 0.0
        %1542 = vmatpush1.msra.mxu0 %v1462
        %1543 = vmatprep.subr.mxu0 0.0
        %1544 = vmatpush1.msra.mxu0 %v1464
        %1545 = vmatprep.subr.mxu0 0.0
        %1546 = vmatpush1.msra.mxu0 %v1466
        %1547 = vmatprep.subr.mxu0 0.0
        %1548 = vmatpush1.msra.mxu0 %v1468
        %1549 = vmatprep.mubr.f32.mxu0 %v825
        %1550 = vmatmul.mubr.f32.gmra.mrb[0].mxu0 %v824
        %v1551 = vpop.f32.mrb[0].mxu0
        %v1552 = vadd.f32 0.0, %v1551
        %v1553 = vpop.f32.mrb[0].mxu0
        %1554 = vmatprep.mubr.f32.mxu0 %v828
        %1555 = vmatmul.mubr.f32.gmra.mrb[0].mxu0 %v827
        %v1556 = vpop.f32.mrb[0].mxu0
        %v1557 = vadd.f32 0.0, %v1556
        %v1558 = vpop.f32.mrb[0].mxu0
        %1559 = vmatprep.mubr.f32.mxu0 %v831
        %1560 = vmatmul.mubr.f32.gmra.mrb[0].mxu0 %v830
        %v1561 = vpop.f32.mrb[0].mxu0
        %v1562 = vadd.f32 0.0, %v1561
        %v1563 = vpop.f32.mrb[0].mxu0
        %1564 = vmatprep.mubr.f32.mxu0 %v834
        %1565 = vmatmul.mubr.f32.gmra.mrb[0].mxu0 %v833
        %v1566 = vpop.f32.mrb[0].mxu0
        %v1567 = vadd.f32 0.0, %v1566
        %v1568 = vpop.f32.mrb[0].mxu0
        %1569 = vmatprep.mubr.f32.mxu0 %v837
        %1570 = vmatmul.mubr.f32.gmra.mrb[0].mxu0 %v836
        %v1571 = vpop.f32.mrb[0].mxu0
        %v1572 = vadd.f32 0.0, %v1571
        %v1573 = vpop.f32.mrb[0].mxu0
        %1574 = vmatprep.mubr.f32.mxu0 %v840
        %1575 = vmatmul.mubr.f32.gmra.mrb[0].mxu0 %v839
        %v1576 = vpop.f32.mrb[0].mxu0
        %v1577 = vadd.f32 0.0, %v1576
        %v1578 = vpop.f32.mrb[0].mxu0
        %1579 = vmatprep.mubr.f32.mxu0 %v843
        %1580 = vmatmul.mubr.f32.gmra.mrb[0].mxu0 %v842
        %v1581 = vpop.f32.mrb[0].mxu0
        %v1582 = vadd.f32 0.0, %v1581
        %v1583 = vpop.f32.mrb[0].mxu0
        %1584 = vmatprep.mubr.f32.mxu0 %v846
        %1585 = vmatmul.mubr.f32.gmra.mrb[0].mxu0 %v845
        %v1586 = vpop.f32.mrb[0].mxu0
        %v1587 = vadd.f32 0.0, %v1586
        %v1588 = vpop.f32.mrb[0].mxu0
        %1589 = vdwg.mxu0
        %1590 = vmatprep.subr.mxu0 0.0
        %1591 = vmatpush1.msra.mxu0 %v1474
        %1592 = vmatprep.subr.mxu0 0.0
        %1593 = vmatpush1.msra.mxu0 %v1476
        %1594 = vmatprep.subr.mxu0 0.0
        %1595 = vmatpush1.msra.mxu0 %v1478
        %1596 = vmatprep.subr.mxu0 0.0
        %1597 = vmatpush1.msra.mxu0 %v1480
        %1598 = vmatprep.subr.mxu0 0.0
        %1599 = vmatpush1.msra.mxu0 0.0
        %1600 = vmatprep.subr.mxu0 0.0
        %1601 = vmatpush1.msra.mxu0 0.0
        %1602 = vmatprep.subr.mxu0 0.0
        %1603 = vmatpush1.msra.mxu0 0.0
        %1604 = vmatprep.subr.mxu0 0.0
        %1605 = vmatpush1.msra.mxu0 0.0
        %1606 = vmatprep.subr.mxu0 0.0
        %1607 = vmatpush1.msra.mxu0 0.0
        %1608 = vmatprep.subr.mxu0 0.0
        %1609 = vmatpush1.msra.mxu0 0.0
        %1610 = vmatprep.subr.mxu0 0.0
        %1611 = vmatpush1.msra.mxu0 0.0
        %1612 = vmatprep.subr.mxu0 0.0
        %1613 = vmatpush1.msra.mxu0 0.0
        %1614 = vmatprep.subr.mxu0 0.0
        %1615 = vmatpush1.msra.mxu0 0.0
        %1616 = vmatprep.subr.mxu0 0.0
        %1617 = vmatpush1.msra.mxu0 0.0
        %1618 = vmatprep.subr.mxu0 0.0
        %1619 = vmatpush1.msra.mxu0 0.0
        %1620 = vmatprep.subr.mxu0 0.0
        %1621 = vmatpush1.msra.mxu0 0.0
        %1622 = vmatprep.subr.mxu0 0.0
        %1623 = vmatpush1.msra.mxu0 0.0
        %1624 = vmatprep.subr.mxu0 0.0
        %1625 = vmatpush1.msra.mxu0 0.0
        %1626 = vmatprep.subr.mxu0 0.0
        %1627 = vmatpush1.msra.mxu0 0.0
        %1628 = vmatprep.subr.mxu0 0.0
        %1629 = vmatpush1.msra.mxu0 0.0
        %1630 = vmatprep.subr.mxu0 0.0
        %1631 = vmatpush1.msra.mxu0 0.0
        %1632 = vmatprep.subr.mxu0 0.0
        %1633 = vmatpush1.msra.mxu0 0.0
        %1634 = vmatprep.subr.mxu0 0.0
        %1635 = vmatpush1.msra.mxu0 0.0
        %1636 = vmatprep.subr.mxu0 0.0
        %1637 = vmatpush1.msra.mxu0 0.0
        %1638 = vmatprep.subr.mxu0 0.0
        %1639 = vmatpush1.msra.mxu0 0.0
        %1640 = vmatprep.subr.mxu0 0.0
        %1641 = vmatpush1.msra.mxu0 0.0
        %1642 = vmatprep.subr.mxu0 0.0
        %1643 = vmatpush1.msra.mxu0 0.0
        %1644 = vmatprep.subr.mxu0 0.0
        %1645 = vmatpush1.msra.mxu0 0.0
        %1646 = vmatprep.subr.mxu0 0.0
        %1647 = vmatpush1.msra.mxu0 0.0
        %1648 = vmatprep.subr.mxu0 0.0
        %1649 = vmatpush1.msra.mxu0 0.0
        %1650 = vmatprep.subr.mxu0 0.0
        %1651 = vmatpush1.msra.mxu0 0.0
        %1652 = vmatprep.subr.mxu0 0.0
        %1653 = vmatpush1.msra.mxu0 0.0
        %1654 = vmatprep.mubr.f32.mxu0 0.0
        %1655 = vmatmul.mubr.f32.gmra.mrb[0].mxu0 %v934
        %v1656 = vpop.f32.mrb[0].mxu0
        %v1657 = vadd.f32 %v1552, %v1656
        %v1658 = vpop.f32.mrb[0].mxu0
        %1659 = vmatprep.mubr.f32.mxu0 0.0
        %1660 = vmatmul.mubr.f32.gmra.mrb[0].mxu0 %v937
        %v1661 = vpop.f32.mrb[0].mxu0
        %v1662 = vadd.f32 %v1557, %v1661
        %v1663 = vpop.f32.mrb[0].mxu0
        %1664 = vmatprep.mubr.f32.mxu0 0.0
        %1665 = vmatmul.mubr.f32.gmra.mrb[0].mxu0 %v940
        %v1666 = vpop.f32.mrb[0].mxu0
        %v1667 = vadd.f32 %v1562, %v1666
        %v1668 = vpop.f32.mrb[0].mxu0
        %1669 = vmatprep.mubr.f32.mxu0 0.0
        %1670 = vmatmul.mubr.f32.gmra.mrb[0].mxu0 %v943
        %v1671 = vpop.f32.mrb[0].mxu0
        %v1672 = vadd.f32 %v1567, %v1671
        %v1673 = vpop.f32.mrb[0].mxu0
        %1674 = vmatprep.mubr.f32.mxu0 0.0
        %1675 = vmatmul.mubr.f32.gmra.mrb[0].mxu0 %v946
        %v1676 = vpop.f32.mrb[0].mxu0
        %v1677 = vadd.f32 %v1572, %v1676
        %v1678 = vpop.f32.mrb[0].mxu0
        %1679 = vmatprep.mubr.f32.mxu0 0.0
        %1680 = vmatmul.mubr.f32.gmra.mrb[0].mxu0 %v949
        %v1681 = vpop.f32.mrb[0].mxu0
        %v1682 = vadd.f32 %v1577, %v1681
        %v1683 = vpop.f32.mrb[0].mxu0
        %1684 = vmatprep.mubr.f32.mxu0 0.0
        %1685 = vmatmul.mubr.f32.gmra.mrb[0].mxu0 %v952
        %v1686 = vpop.f32.mrb[0].mxu0
        %v1687 = vadd.f32 %v1582, %v1686
        %v1688 = vpop.f32.mrb[0].mxu0
        %1689 = vmatprep.mubr.f32.mxu0 0.0
        %1690 = vmatmul.mubr.f32.gmra.mrb[0].mxu0 %v955
        %v1691 = vpop.f32.mrb[0].mxu0
        %v1692 = vadd.f32 %v1587, %v1691
        %v1693 = vpop.f32.mrb[0].mxu0
        %1694 = vdwg.mxu0
        %v1695 = vmax.f32 %v1449, %v1657
        %v1696 = vmax.f32 %v1450, %v1662
        %v1697 = vmax.f32 %v1451, %v1667
        %v1698 = vmax.f32 %v1452, %v1672
        %v1699 = vmax.f32 %v1453, %v1677
        %v1700 = vmax.f32 %v1454, %v1682
        %v1701 = vmax.f32 %v1455, %v1687
        %v1702 = vmax.f32 %v1456, %v1692
        %1703 = vrot.lane.b32.xlu0 %v1462, 120
        %v1704 = vpop.permute.xlu0 %1703
        %1705 = vrot.lane.b32.xlu0 %v1464, 120
        %v1706 = vpop.permute.xlu0 %1705
        %1707 = vrot.lane.b32.xlu0 %v1466, 120
        %v1708 = vpop.permute.xlu0 %1707
        %1709 = vrot.lane.b32.xlu0 %v1468, 120
        %v1710 = vpop.permute.xlu0 %1709
        %1711 = vrot.lane.b32.xlu0 %v1474, 120
        %v1712 = vpop.permute.xlu0 %1711
        %1713 = vrot.lane.b32.xlu0 %v1476, 120
        %v1714 = vpop.permute.xlu0 %1713
        %1715 = vrot.lane.b32.xlu0 %v1478, 120
        %v1716 = vpop.permute.xlu0 %1715
        %1717 = vrot.lane.b32.xlu0 %v1480, 120
        %v1718 = vpop.permute.xlu0 %1717
        %1727 = vmatprep.subr.mxu0 0.0
        %1728 = vmatpush1.msra.mxu0 %v881
        %1729 = vmatprep.subr.mxu0 0.0
        %1730 = vmatpush1.msra.mxu0 %v883
        %1731 = vmatprep.subr.mxu0 0.0
        %1732 = vmatpush1.msra.mxu0 %v885
        %1733 = vmatprep.subr.mxu0 0.0
        %1734 = vmatpush1.msra.mxu0 %v887
        %1735 = vmatprep.subr.mxu0 0.0
        %1736 = vmatpush1.msra.mxu0 %v1184
        %1737 = vmatprep.subr.mxu0 0.0
        %1738 = vmatpush1.msra.mxu0 %v1186
        %1739 = vmatprep.subr.mxu0 0.0
        %1740 = vmatpush1.msra.mxu0 %v1188
        %1741 = vmatprep.subr.mxu0 0.0
        %1742 = vmatpush1.msra.mxu0 %v1190
        %1743 = vmatprep.subr.mxu0 0.0
        %1744 = vmatpush1.msra.mxu0 %v1192
        %1745 = vmatprep.subr.mxu0 0.0
        %1746 = vmatpush1.msra.mxu0 %v1194
        %1747 = vmatprep.subr.mxu0 0.0
        %1748 = vmatpush1.msra.mxu0 %v1196
        %1749 = vmatprep.subr.mxu0 0.0
        %1750 = vmatpush1.msra.mxu0 %v1198
        %1751 = vmatprep.subr.mxu0 0.0
        %1752 = vmatpush1.msra.mxu0 %v909
        %1753 = vmatprep.subr.mxu0 0.0
        %1754 = vmatpush1.msra.mxu0 %v911
        %1755 = vmatprep.subr.mxu0 0.0
        %1756 = vmatpush1.msra.mxu0 %v913
        %1757 = vmatprep.subr.mxu0 0.0
        %1758 = vmatpush1.msra.mxu0 %v915
        %1759 = vmatprep.subr.mxu0 0.0
        %1760 = vmatpush1.msra.mxu0 %v1200
        %1761 = vmatprep.subr.mxu0 0.0
        %1762 = vmatpush1.msra.mxu0 %v1202
        %1763 = vmatprep.subr.mxu0 0.0
        %1764 = vmatpush1.msra.mxu0 %v1204
        %1765 = vmatprep.subr.mxu0 0.0
        %1766 = vmatpush1.msra.mxu0 %v1206
        %1767 = vmatprep.subr.mxu0 0.0
        %1768 = vmatpush1.msra.mxu0 %v1208
        %1769 = vmatprep.subr.mxu0 0.0
        %1770 = vmatpush1.msra.mxu0 %v1210
        %1771 = vmatprep.subr.mxu0 0.0
        %1772 = vmatpush1.msra.mxu0 %v1212
        %1773 = vmatprep.subr.mxu0 0.0
        %1774 = vmatpush1.msra.mxu0 %v1214
        %1775 = vmatprep.subr.mxu0 0.0
        %1776 = vmatpush1.msra.mxu0 %v1462
        %1777 = vmatprep.subr.mxu0 0.0
        %1778 = vmatpush1.msra.mxu0 %v1464
        %1779 = vmatprep.subr.mxu0 0.0
        %1780 = vmatpush1.msra.mxu0 %v1466
        %1781 = vmatprep.subr.mxu0 0.0
        %1782 = vmatpush1.msra.mxu0 %v1468
        %1783 = vmatprep.subr.mxu0 0.0
        %1784 = vmatpush1.msra.mxu0 %v1704
        %1785 = vmatprep.subr.mxu0 0.0
        %1786 = vmatpush1.msra.mxu0 %v1706
        %1787 = vmatprep.subr.mxu0 0.0
        %1788 = vmatpush1.msra.mxu0 %v1708
        %1789 = vmatprep.subr.mxu0 0.0
        %1790 = vmatpush1.msra.mxu0 %v1710
        %1791 = vmatprep.mubr.f32.mxu0 %v825
        %1792 = vmatmul.mubr.f32.gmra.mrb[0].mxu0 %v824
        %v1793 = vpop.f32.mrb[0].mxu0
        %v1794 = vadd.f32 0.0, %v1793
        %v1795 = vpop.f32.mrb[0].mxu0
        %1796 = vmatprep.mubr.f32.mxu0 %v828
        %1797 = vmatmul.mubr.f32.gmra.mrb[0].mxu0 %v827
        %v1798 = vpop.f32.mrb[0].mxu0
        %v1799 = vadd.f32 0.0, %v1798
        %v1800 = vpop.f32.mrb[0].mxu0
        %1801 = vmatprep.mubr.f32.mxu0 %v831
        %1802 = vmatmul.mubr.f32.gmra.mrb[0].mxu0 %v830
        %v1803 = vpop.f32.mrb[0].mxu0
        %v1804 = vadd.f32 0.0, %v1803
        %v1805 = vpop.f32.mrb[0].mxu0
        %1806 = vmatprep.mubr.f32.mxu0 %v834
        %1807 = vmatmul.mubr.f32.gmra.mrb[0].mxu0 %v833
        %v1808 = vpop.f32.mrb[0].mxu0
        %v1809 = vadd.f32 0.0, %v1808
        %v1810 = vpop.f32.mrb[0].mxu0
        %1811 = vmatprep.mubr.f32.mxu0 %v837
        %1812 = vmatmul.mubr.f32.gmra.mrb[0].mxu0 %v836
        %v1813 = vpop.f32.mrb[0].mxu0
        %v1814 = vadd.f32 0.0, %v1813
        %v1815 = vpop.f32.mrb[0].mxu0
        %1816 = vmatprep.mubr.f32.mxu0 %v840
        %1817 = vmatmul.mubr.f32.gmra.mrb[0].mxu0 %v839
        %v1818 = vpop.f32.mrb[0].mxu0
        %v1819 = vadd.f32 0.0, %v1818
        %v1820 = vpop.f32.mrb[0].mxu0
        %1821 = vmatprep.mubr.f32.mxu0 %v843
        %1822 = vmatmul.mubr.f32.gmra.mrb[0].mxu0 %v842
        %v1823 = vpop.f32.mrb[0].mxu0
        %v1824 = vadd.f32 0.0, %v1823
        %v1825 = vpop.f32.mrb[0].mxu0
        %1826 = vmatprep.mubr.f32.mxu0 %v846
        %1827 = vmatmul.mubr.f32.gmra.mrb[0].mxu0 %v845
        %v1828 = vpop.f32.mrb[0].mxu0
        %v1829 = vadd.f32 0.0, %v1828
        %v1830 = vpop.f32.mrb[0].mxu0
        %1831 = vdwg.mxu0
        %1832 = vmatprep.subr.mxu0 0.0
        %1833 = vmatpush1.msra.mxu0 %v1712
        %1834 = vmatprep.subr.mxu0 0.0
        %1835 = vmatpush1.msra.mxu0 %v1714
        %1836 = vmatprep.subr.mxu0 0.0
        %1837 = vmatpush1.msra.mxu0 %v1716
        %1838 = vmatprep.subr.mxu0 0.0
        %1839 = vmatpush1.msra.mxu0 %v1718
        %1840 = vmatprep.subr.mxu0 0.0
        %1841 = vmatpush1.msra.mxu0 0.0
        %1842 = vmatprep.subr.mxu0 0.0
        %1843 = vmatpush1.msra.mxu0 0.0
        %1844 = vmatprep.subr.mxu0 0.0
        %1845 = vmatpush1.msra.mxu0 0.0
        %1846 = vmatprep.subr.mxu0 0.0
        %1847 = vmatpush1.msra.mxu0 0.0
        %1848 = vmatprep.subr.mxu0 0.0
        %1849 = vmatpush1.msra.mxu0 0.0
        %1850 = vmatprep.subr.mxu0 0.0
        %1851 = vmatpush1.msra.mxu0 0.0
        %1852 = vmatprep.subr.mxu0 0.0
        %1853 = vmatpush1.msra.mxu0 0.0
        %1854 = vmatprep.subr.mxu0 0.0
        %1855 = vmatpush1.msra.mxu0 0.0
        %1856 = vmatprep.subr.mxu0 0.0
        %1857 = vmatpush1.msra.mxu0 0.0
        %1858 = vmatprep.subr.mxu0 0.0
        %1859 = vmatpush1.msra.mxu0 0.0
        %1860 = vmatprep.subr.mxu0 0.0
        %1861 = vmatpush1.msra.mxu0 0.0
        %1862 = vmatprep.subr.mxu0 0.0
        %1863 = vmatpush1.msra.mxu0 0.0
        %1864 = vmatprep.subr.mxu0 0.0
        %1865 = vmatpush1.msra.mxu0 0.0
        %1866 = vmatprep.subr.mxu0 0.0
        %1867 = vmatpush1.msra.mxu0 0.0
        %1868 = vmatprep.subr.mxu0 0.0
        %1869 = vmatpush1.msra.mxu0 0.0
        %1870 = vmatprep.subr.mxu0 0.0
        %1871 = vmatpush1.msra.mxu0 0.0
        %1872 = vmatprep.subr.mxu0 0.0
        %1873 = vmatpush1.msra.mxu0 0.0
        %1874 = vmatprep.subr.mxu0 0.0
        %1875 = vmatpush1.msra.mxu0 0.0
        %1876 = vmatprep.subr.mxu0 0.0
        %1877 = vmatpush1.msra.mxu0 0.0
        %1878 = vmatprep.subr.mxu0 0.0
        %1879 = vmatpush1.msra.mxu0 0.0
        %1880 = vmatprep.subr.mxu0 0.0
        %1881 = vmatpush1.msra.mxu0 0.0
        %1882 = vmatprep.subr.mxu0 0.0
        %1883 = vmatpush1.msra.mxu0 0.0
        %1884 = vmatprep.subr.mxu0 0.0
        %1885 = vmatpush1.msra.mxu0 0.0
        %1886 = vmatprep.subr.mxu0 0.0
        %1887 = vmatpush1.msra.mxu0 0.0
        %1888 = vmatprep.subr.mxu0 0.0
        %1889 = vmatpush1.msra.mxu0 0.0
        %1890 = vmatprep.subr.mxu0 0.0
        %1891 = vmatpush1.msra.mxu0 0.0
        %1892 = vmatprep.subr.mxu0 0.0
        %1893 = vmatpush1.msra.mxu0 0.0
        %1894 = vmatprep.subr.mxu0 0.0
        %1895 = vmatpush1.msra.mxu0 0.0
        %1896 = vmatprep.mubr.f32.mxu0 0.0
        %1897 = vmatmul.mubr.f32.gmra.mrb[0].mxu0 %v934
        %v1898 = vpop.f32.mrb[0].mxu0
        %v1899 = vadd.f32 %v1794, %v1898
        %v1900 = vpop.f32.mrb[0].mxu0
        %1901 = vmatprep.mubr.f32.mxu0 0.0
        %1902 = vmatmul.mubr.f32.gmra.mrb[0].mxu0 %v937
        %v1903 = vpop.f32.mrb[0].mxu0
        %v1904 = vadd.f32 %v1799, %v1903
        %v1905 = vpop.f32.mrb[0].mxu0
        %1906 = vmatprep.mubr.f32.mxu0 0.0
        %1907 = vmatmul.mubr.f32.gmra.mrb[0].mxu0 %v940
        %v1908 = vpop.f32.mrb[0].mxu0
        %v1909 = vadd.f32 %v1804, %v1908
        %v1910 = vpop.f32.mrb[0].mxu0
        %1911 = vmatprep.mubr.f32.mxu0 0.0
        %1912 = vmatmul.mubr.f32.gmra.mrb[0].mxu0 %v943
        %v1913 = vpop.f32.mrb[0].mxu0
        %v1914 = vadd.f32 %v1809, %v1913
        %v1915 = vpop.f32.mrb[0].mxu0
        %1916 = vmatprep.mubr.f32.mxu0 0.0
        %1917 = vmatmul.mubr.f32.gmra.mrb[0].mxu0 %v946
        %v1918 = vpop.f32.mrb[0].mxu0
        %v1919 = vadd.f32 %v1814, %v1918
        %v1920 = vpop.f32.mrb[0].mxu0
        %1921 = vmatprep.mubr.f32.mxu0 0.0
        %1922 = vmatmul.mubr.f32.gmra.mrb[0].mxu0 %v949
        %v1923 = vpop.f32.mrb[0].mxu0
        %v1924 = vadd.f32 %v1819, %v1923
        %v1925 = vpop.f32.mrb[0].mxu0
        %1926 = vmatprep.mubr.f32.mxu0 0.0
        %1927 = vmatmul.mubr.f32.gmra.mrb[0].mxu0 %v952
        %v1928 = vpop.f32.mrb[0].mxu0
        %v1929 = vadd.f32 %v1824, %v1928
        %v1930 = vpop.f32.mrb[0].mxu0
        %1931 = vmatprep.mubr.f32.mxu0 0.0
        %1932 = vmatmul.mubr.f32.gmra.mrb[0].mxu0 %v955
        %v1933 = vpop.f32.mrb[0].mxu0
        %v1934 = vadd.f32 %v1829, %v1933
        %v1935 = vpop.f32.mrb[0].mxu0
        %1936 = vdwg.mxu0
        %v1937 = vmax.f32 %v1695, %v1899
        %v1938 = vmax.f32 %v1696, %v1904
        %v1939 = vmax.f32 %v1697, %v1909
        %v1940 = vmax.f32 %v1698, %v1914
        %v1941 = vmax.f32 %v1699, %v1919
        %v1942 = vmax.f32 %v1700, %v1924
        %v1943 = vmax.f32 %v1701, %v1929
        %v1944 = vmax.f32 %v1702, %v1934
        %v1945 = vld [vmem:[%s2] sm:$0xff]
        %v1946 = vld [vmem:[%s2 + $0x8] sm:$0xff]
        %v1947 = vld [vmem:[%s2 + $0x10] sm:$0xff]
        %v1948 = vld [vmem:[%s2 + $0x18] sm:$0xff]
        %v1949 = vld [vmem:[%s2 + $0x20] sm:$0xff]
        %v1950 = vld [vmem:[%s2 + $0x28] sm:$0xff]
        %v1951 = vld [vmem:[%s2 + $0x30] sm:$0xff]
        %v1952 = vld [vmem:[%s2 + $0x38] sm:$0xff]
        %1954 = vset.pattern.permute.xlu0 0
        %1955 = vperm.xlu0 %1954, %v1945
        %v1956 = vpop.permute.xlu0 %1955
        %1959 = vset.pattern.permute.xlu0 0
        %1960 = vperm.xlu0 %1959, %v1946
        %v1961 = vpop.permute.xlu0 %1960
        %1964 = vset.pattern.permute.xlu0 0
        %1965 = vperm.xlu0 %1964, %v1947
        %v1966 = vpop.permute.xlu0 %1965
        %1969 = vset.pattern.permute.xlu0 0
        %1970 = vperm.xlu0 %1969, %v1948
        %v1971 = vpop.permute.xlu0 %1970
        %1974 = vset.pattern.permute.xlu0 0
        %1975 = vperm.xlu0 %1974, %v1949
        %v1976 = vpop.permute.xlu0 %1975
        %1979 = vset.pattern.permute.xlu0 0
        %1980 = vperm.xlu0 %1979, %v1950
        %v1981 = vpop.permute.xlu0 %1980
        %1984 = vset.pattern.permute.xlu0 0
        %1985 = vperm.xlu0 %1984, %v1951
        %v1986 = vpop.permute.xlu0 %1985
        %1989 = vset.pattern.permute.xlu0 0
        %1990 = vperm.xlu0 %1989, %v1952
        %v1991 = vpop.permute.xlu0 %1990
        %v1993 = vadd.f32 %v1937, %v1956
        %v1994 = vadd.f32 %v1938, %v1961
        %v1995 = vadd.f32 %v1939, %v1966
        %v1996 = vadd.f32 %v1940, %v1971
        %v1997 = vadd.f32 %v1941, %v1976
        %v1998 = vadd.f32 %v1942, %v1981
        %v1999 = vadd.f32 %v1943, %v1986
        %v2000 = vadd.f32 %v1944, %v1991
        %v2001 = vmax.f32 %v1993, 0.0
        %v2002 = vmax.f32 %v1994, 0.0
        %v2003 = vmax.f32 %v1995, 0.0
        %v2004 = vmax.f32 %v1996, 0.0
        %v2005 = vmax.f32 %v1997, 0.0
        %v2006 = vmax.f32 %v1998, 0.0
        %v2007 = vmax.f32 %v1999, 0.0
        %v2008 = vmax.f32 %v2000, 0.0
        %vm2009 = vcmask 80896
        %2010 = vst.msk [vmem:[#allocation3] sm:$0xff] %vm2009, 0.0
        %vm2011 = vcmask 74752
        %2012 = vst.msk [vmem:[#allocation3 + $0x8] sm:$0x3] %vm2011, 0.0
        %2013 = vst.msk [vmem:[#allocation3 + $0x10] sm:$0xff] %vm2009, 0.0
        %2014 = vst.msk [vmem:[#allocation3 + $0x18] sm:$0x3] %vm2011, 0.0
        %2015 = vst.msk [vmem:[#allocation3 + $0x20] sm:$0xff] %vm2009, 0.0
        %2016 = vst.msk [vmem:[#allocation3 + $0x28] sm:$0x3] %vm2011, 0.0
        %2017 = vst.msk [vmem:[#allocation3 + $0x30] sm:$0xff] %vm2009, 0.0
        %2018 = vst.msk [vmem:[#allocation3 + $0x38] sm:$0x3] %vm2011, 0.0
        %2019 = vst.msk [vmem:[#allocation3 + $0x40] sm:$0xff] %vm2009, 0.0
        %2020 = vst.msk [vmem:[#allocation3 + $0x48] sm:$0x3] %vm2011, 0.0
        %2021 = vst.msk [vmem:[#allocation3 + $0x50] sm:$0xff] %vm2009, 0.0
        %2022 = vst.msk [vmem:[#allocation3 + $0x58] sm:$0x3] %vm2011, 0.0
        %2023 = vst.msk [vmem:[#allocation3 + $0x60] sm:$0xff] %vm2009, 0.0
        %2024 = vst.msk [vmem:[#allocation3 + $0x68] sm:$0x3] %vm2011, 0.0
        %2025 = vst.msk [vmem:[#allocation3 + $0x70] sm:$0xff] %vm2009, 0.0
        %2026 = vst.msk [vmem:[#allocation3 + $0x78] sm:$0x3] %vm2011, 0.0
        %2035 = vrot.lane.b32.xlu0 %v2001, 1
        %v2036 = vpop.permute.xlu0 %2035
        %2037 = vrot.lane.b32.xlu0 %v2002, 1
        %v2038 = vpop.permute.xlu0 %2037
        %2039 = vrot.lane.b32.xlu0 %v2003, 1
        %v2040 = vpop.permute.xlu0 %2039
        %2041 = vrot.lane.b32.xlu0 %v2004, 1
        %v2042 = vpop.permute.xlu0 %2041
        %2043 = vrot.lane.b32.xlu0 %v2005, 1
        %v2044 = vpop.permute.xlu0 %2043
        %2045 = vrot.lane.b32.xlu0 %v2006, 1
        %v2046 = vpop.permute.xlu0 %2045
        %2047 = vrot.lane.b32.xlu0 %v2007, 1
        %v2048 = vpop.permute.xlu0 %2047
        %2049 = vrot.lane.b32.xlu0 %v2008, 1
        %v2050 = vpop.permute.xlu0 %2049
        %vm2059 = vcmask 72712
        %2060 = vst.msk [vmem:[#allocation3 + $0x1] sm:$0xff] %vm2059, %v2036
        %2061 = vst.msk [vmem:[#allocation3 + $0x11] sm:$0xff] %vm2059, %v2038
        %2062 = vst.msk [vmem:[#allocation3 + $0x21] sm:$0xff] %vm2059, %v2040
        %2063 = vst.msk [vmem:[#allocation3 + $0x31] sm:$0xff] %vm2059, %v2042
        %2064 = vst.msk [vmem:[#allocation3 + $0x41] sm:$0xff] %vm2059, %v2044
        %2065 = vst.msk [vmem:[#allocation3 + $0x51] sm:$0xff] %vm2059, %v2046
        %2066 = vst.msk [vmem:[#allocation3 + $0x61] sm:$0xff] %vm2059, %v2048
        %2067 = vst.msk [vmem:[#allocation3 + $0x71] sm:$0xff] %vm2059, %v2050
        %v2068 = vld [vmem:[#allocation3] ss:$2 sm:$0xf]
        %s2069 = scalar_lea.vmem [#allocation3], 16
        %v2070 = vld [vmem:[%s2069] ss:$2 sm:$0xf]
        %s2071 = scalar_lea.vmem [#allocation3], 32
        %v2072 = vld [vmem:[%s2071] ss:$2 sm:$0xf]
        %s2073 = scalar_lea.vmem [#allocation3], 48
        %v2074 = vld [vmem:[%s2073] ss:$2 sm:$0xf]
        %s2075 = scalar_lea.vmem [#allocation3], 64
        %v2076 = vld [vmem:[%s2075] ss:$2 sm:$0xf]
        %s2077 = scalar_lea.vmem [#allocation3], 80
        %v2078 = vld [vmem:[%s2077] ss:$2 sm:$0xf]
        %s2079 = scalar_lea.vmem [#allocation3], 96
        %v2080 = vld [vmem:[%s2079] ss:$2 sm:$0xf]
        %s2081 = scalar_lea.vmem [#allocation3], 112
        %v2082 = vld [vmem:[%s2081] ss:$2 sm:$0xf]
        %s2083 = scalar_lea.vmem [#allocation3], 1
        %v2084 = vld [vmem:[%s2083] ss:$2 sm:$0xf]
        %s2085 = scalar_lea.vmem [#allocation3], 17
        %v2086 = vld [vmem:[%s2085] ss:$2 sm:$0xf]
        %s2087 = scalar_lea.vmem [#allocation3], 33
        %v2088 = vld [vmem:[%s2087] ss:$2 sm:$0xf]
        %s2089 = scalar_lea.vmem [#allocation3], 49
        %v2090 = vld [vmem:[%s2089] ss:$2 sm:$0xf]
        %s2091 = scalar_lea.vmem [#allocation3], 65
        %v2092 = vld [vmem:[%s2091] ss:$2 sm:$0xf]
        %s2093 = scalar_lea.vmem [#allocation3], 81
        %v2094 = vld [vmem:[%s2093] ss:$2 sm:$0xf]
        %s2095 = scalar_lea.vmem [#allocation3], 97
        %v2096 = vld [vmem:[%s2095] ss:$2 sm:$0xf]
        %s2097 = scalar_lea.vmem [#allocation3], 113
        %v2098 = vld [vmem:[%s2097] ss:$2 sm:$0xf]
        %s2099 = scalar_lea.vmem [#allocation3], 2
        %v2100 = vld [vmem:[%s2099] ss:$2 sm:$0xf]
        %s2101 = scalar_lea.vmem [#allocation3], 18
        %v2102 = vld [vmem:[%s2101] ss:$2 sm:$0xf]
        %s2103 = scalar_lea.vmem [#allocation3], 34
        %v2104 = vld [vmem:[%s2103] ss:$2 sm:$0xf]
        %s2105 = scalar_lea.vmem [#allocation3], 50
        %v2106 = vld [vmem:[%s2105] ss:$2 sm:$0xf]
        %s2107 = scalar_lea.vmem [#allocation3], 66
        %v2108 = vld [vmem:[%s2107] ss:$2 sm:$0xf]
        %s2109 = scalar_lea.vmem [#allocation3], 82
        %v2110 = vld [vmem:[%s2109] ss:$2 sm:$0xf]
        %s2111 = scalar_lea.vmem [#allocation3], 98
        %v2112 = vld [vmem:[%s2111] ss:$2 sm:$0xf]
        %s2113 = scalar_lea.vmem [#allocation3], 114
        %v2114 = vld [vmem:[%s2113] ss:$2 sm:$0xf]
        %s2115 = scalar_lea.vmem [#allocation3], 3
        %v2116 = vld [vmem:[%s2115] ss:$2 sm:$0xf]
        %s2117 = scalar_lea.vmem [#allocation3], 19
        %v2118 = vld [vmem:[%s2117] ss:$2 sm:$0xf]
        %s2119 = scalar_lea.vmem [#allocation3], 35
        %v2120 = vld [vmem:[%s2119] ss:$2 sm:$0xf]
        %s2121 = scalar_lea.vmem [#allocation3], 51
        %v2122 = vld [vmem:[%s2121] ss:$2 sm:$0xf]
        %s2123 = scalar_lea.vmem [#allocation3], 67
        %v2124 = vld [vmem:[%s2123] ss:$2 sm:$0xf]
        %s2125 = scalar_lea.vmem [#allocation3], 83
        %v2126 = vld [vmem:[%s2125] ss:$2 sm:$0xf]
        %s2127 = scalar_lea.vmem [#allocation3], 99
        %v2128 = vld [vmem:[%s2127] ss:$2 sm:$0xf]
        %s2129 = scalar_lea.vmem [#allocation3], 115
        %v2130 = vld [vmem:[%s2129] ss:$2 sm:$0xf]
        %v2139 = vcombine.low %v2068, %v2070
        %v2140 = vcombine.low %v2072, %v2074
        %v2141 = vcombine.low %v2076, %v2078
        %v2142 = vcombine.low %v2080, %v2082
        %v2151 = vcombine.low %v2084, %v2086
        %v2152 = vcombine.low %v2088, %v2090
        %v2153 = vcombine.low %v2092, %v2094
        %v2154 = vcombine.low %v2096, %v2098
        %v2163 = vcombine.low %v2100, %v2102
        %v2164 = vcombine.low %v2104, %v2106
        %v2165 = vcombine.low %v2108, %v2110
        %v2166 = vcombine.low %v2112, %v2114
        %v2175 = vcombine.low %v2116, %v2118
        %v2176 = vcombine.low %v2120, %v2122
        %v2177 = vcombine.low %v2124, %v2126
        %v2178 = vcombine.low %v2128, %v2130
        %v2179 = vld [vmem:[%s6] sm:$0xff]
        %v2180 = vld [vmem:[%s6 + $0x8] sm:$0x3]
        %v2181 = vsel %vm2009, %v2139, 0
        %v2183 = vsel %vm2009, %v2140, 0
        %v2185 = vsel %vm2009, %v2141, 0
        %v2187 = vsel %vm2009, %v2142, 0
        %v2189 = vsel %vm2009, %v2151, 0
        %v2191 = vsel %vm2009, %v2152, 0
        %v2193 = vsel %vm2009, %v2153, 0
        %v2195 = vsel %vm2009, %v2154, 0
        %v2197 = vsel %vm2009, %v2163, 0
        %v2199 = vsel %vm2009, %v2164, 0
        %v2201 = vsel %vm2009, %v2165, 0
        %v2203 = vsel %vm2009, %v2166, 0
        %v2205 = vsel %vm2009, %v2175, 0
        %v2207 = vsel %vm2009, %v2176, 0
        %v2209 = vsel %vm2009, %v2177, 0
        %v2211 = vsel %vm2009, %v2178, 0
        %v2214 = vsel %vm675, %v2180, 0
        %2216 = vmatprep.subr.mxu0 0.0
        %2217 = vmatpush1.msra.mxu0 %v2179
        %2218 = vmatprep.subr.mxu0 0.0
        %2219 = vmatpush1.msra.mxu0 %v2214
        %2220 = vmatprep.subr.mxu0 0.0
        %2221 = vmatpush1.msra.mxu0 0.0
        %2222 = vmatprep.subr.mxu0 0.0
        %2223 = vmatpush1.msra.mxu0 0.0
        %2224 = vmatprep.subr.mxu0 0.0
        %2225 = vmatpush1.msra.mxu0 0.0
        %2226 = vmatprep.subr.mxu0 0.0
        %2227 = vmatpush1.msra.mxu0 0.0
        %2228 = vmatprep.subr.mxu0 0.0
        %2229 = vmatpush1.msra.mxu0 0.0
        %2230 = vmatprep.subr.mxu0 0.0
        %2231 = vmatpush1.msra.mxu0 0.0
        %2232 = vmatprep.subr.mxu0 0.0
        %2233 = vmatpush1.msra.mxu0 0.0
        %2234 = vmatprep.subr.mxu0 0.0
        %2235 = vmatpush1.msra.mxu0 0.0
        %2236 = vmatprep.subr.mxu0 0.0
        %2237 = vmatpush1.msra.mxu0 0.0
        %2238 = vmatprep.subr.mxu0 0.0
        %2239 = vmatpush1.msra.mxu0 0.0
        %2240 = vmatprep.subr.mxu0 0.0
        %2241 = vmatpush1.msra.mxu0 0.0
        %2242 = vmatprep.subr.mxu0 0.0
        %2243 = vmatpush1.msra.mxu0 0.0
        %2244 = vmatprep.subr.mxu0 0.0
        %2245 = vmatpush1.msra.mxu0 0.0
        %2246 = vmatprep.subr.mxu0 0.0
        %2247 = vmatpush1.msra.mxu0 0.0
        %2248 = vmatprep.subr.mxu0 0.0
        %2249 = vmatpush1.msra.mxu0 0.0
        %2250 = vmatprep.subr.mxu0 0.0
        %2251 = vmatpush1.msra.mxu0 0.0
        %2252 = vmatprep.subr.mxu0 0.0
        %2253 = vmatpush1.msra.mxu0 0.0
        %2254 = vmatprep.subr.mxu0 0.0
        %2255 = vmatpush1.msra.mxu0 0.0
        %2256 = vmatprep.subr.mxu0 0.0
        %2257 = vmatpush1.msra.mxu0 0.0
        %2258 = vmatprep.subr.mxu0 0.0
        %2259 = vmatpush1.msra.mxu0 0.0
        %2260 = vmatprep.subr.mxu0 0.0
        %2261 = vmatpush1.msra.mxu0 0.0
        %2262 = vmatprep.subr.mxu0 0.0
        %2263 = vmatpush1.msra.mxu0 0.0
        %2264 = vmatprep.subr.mxu0 0.0
        %2265 = vmatpush1.msra.mxu0 0.0
        %2266 = vmatprep.subr.mxu0 0.0
        %2267 = vmatpush1.msra.mxu0 0.0
        %2268 = vmatprep.subr.mxu0 0.0
        %2269 = vmatpush1.msra.mxu0 0.0
        %2270 = vmatprep.subr.mxu0 0.0
        %2271 = vmatpush1.msra.mxu0 0.0
        %2272 = vmatprep.subr.mxu0 0.0
        %2273 = vmatpush1.msra.mxu0 0.0
        %2274 = vmatprep.subr.mxu0 0.0
        %2275 = vmatpush1.msra.mxu0 0.0
        %2276 = vmatprep.subr.mxu0 0.0
        %2277 = vmatpush1.msra.mxu0 0.0
        %2278 = vmatprep.subr.mxu0 0.0
        %2279 = vmatpush1.msra.mxu0 0.0
        %2280 = vmatprep.mubr.f32.mxu0 0.0
        %2281 = vmatmul.mubr.f32.gmra.mrb[0].mxu0 %v2181
        %v2282 = vpop.f32.mrb[0].mxu0
        %v2283 = vadd.f32 0.0, %v2282
        %v2284 = vpop.f32.mrb[0].mxu0
        %2285 = vmatprep.mubr.f32.mxu0 0.0
        %2286 = vmatmul.mubr.f32.gmra.mrb[0].mxu0 %v2183
        %v2287 = vpop.f32.mrb[0].mxu0
        %v2288 = vadd.f32 0.0, %v2287
        %v2289 = vpop.f32.mrb[0].mxu0
        %2290 = vmatprep.mubr.f32.mxu0 0.0
        %2291 = vmatmul.mubr.f32.gmra.mrb[0].mxu0 %v2185
        %v2292 = vpop.f32.mrb[0].mxu0
        %v2293 = vadd.f32 0.0, %v2292
        %v2294 = vpop.f32.mrb[0].mxu0
        %2295 = vmatprep.mubr.f32.mxu0 0.0
        %2296 = vmatmul.mubr.f32.gmra.mrb[0].mxu0 %v2187
        %v2297 = vpop.f32.mrb[0].mxu0
        %v2298 = vadd.f32 0.0, %v2297
        %v2299 = vpop.f32.mrb[0].mxu0
        %2300 = vmatprep.mubr.f32.mxu0 0.0
        %2301 = vmatmul.mubr.f32.gmra.mrb[0].mxu0 %v2189
        %v2302 = vpop.f32.mrb[0].mxu0
        %v2303 = vadd.f32 0.0, %v2302
        %v2304 = vpop.f32.mrb[0].mxu0
        %2305 = vmatprep.mubr.f32.mxu0 0.0
        %2306 = vmatmul.mubr.f32.gmra.mrb[0].mxu0 %v2191
        %v2307 = vpop.f32.mrb[0].mxu0
        %v2308 = vadd.f32 0.0, %v2307
        %v2309 = vpop.f32.mrb[0].mxu0
        %2310 = vmatprep.mubr.f32.mxu0 0.0
        %2311 = vmatmul.mubr.f32.gmra.mrb[0].mxu0 %v2193
        %v2312 = vpop.f32.mrb[0].mxu0
        %v2313 = vadd.f32 0.0, %v2312
        %v2314 = vpop.f32.mrb[0].mxu0
        %2315 = vmatprep.mubr.f32.mxu0 0.0
        %2316 = vmatmul.mubr.f32.gmra.mrb[0].mxu0 %v2195
        %v2317 = vpop.f32.mrb[0].mxu0
        %v2318 = vadd.f32 0.0, %v2317
        %v2319 = vpop.f32.mrb[0].mxu0
        %2320 = vmatprep.mubr.f32.mxu0 0.0
        %2321 = vmatmul.mubr.f32.gmra.mrb[0].mxu0 %v2197
        %v2322 = vpop.f32.mrb[0].mxu0
        %v2323 = vadd.f32 0.0, %v2322
        %v2324 = vpop.f32.mrb[0].mxu0
        %2325 = vmatprep.mubr.f32.mxu0 0.0
        %2326 = vmatmul.mubr.f32.gmra.mrb[0].mxu0 %v2199
        %v2327 = vpop.f32.mrb[0].mxu0
        %v2328 = vadd.f32 0.0, %v2327
        %v2329 = vpop.f32.mrb[0].mxu0
        %2330 = vmatprep.mubr.f32.mxu0 0.0
        %2331 = vmatmul.mubr.f32.gmra.mrb[0].mxu0 %v2201
        %v2332 = vpop.f32.mrb[0].mxu0
        %v2333 = vadd.f32 0.0, %v2332
        %v2334 = vpop.f32.mrb[0].mxu0
        %2335 = vmatprep.mubr.f32.mxu0 0.0
        %2336 = vmatmul.mubr.f32.gmra.mrb[0].mxu0 %v2203
        %v2337 = vpop.f32.mrb[0].mxu0
        %v2338 = vadd.f32 0.0, %v2337
        %v2339 = vpop.f32.mrb[0].mxu0
        %2340 = vmatprep.mubr.f32.mxu0 0.0
        %2341 = vmatmul.mubr.f32.gmra.mrb[0].mxu0 %v2205
        %v2342 = vpop.f32.mrb[0].mxu0
        %v2343 = vadd.f32 0.0, %v2342
        %v2344 = vpop.f32.mrb[0].mxu0
        %2345 = vmatprep.mubr.f32.mxu0 0.0
        %2346 = vmatmul.mubr.f32.gmra.mrb[0].mxu0 %v2207
        %v2347 = vpop.f32.mrb[0].mxu0
        %v2348 = vadd.f32 0.0, %v2347
        %v2349 = vpop.f32.mrb[0].mxu0
        %2350 = vmatprep.mubr.f32.mxu0 0.0
        %2351 = vmatmul.mubr.f32.gmra.mrb[0].mxu0 %v2209
        %v2352 = vpop.f32.mrb[0].mxu0
        %v2353 = vadd.f32 0.0, %v2352
        %v2354 = vpop.f32.mrb[0].mxu0
        %2355 = vmatprep.mubr.f32.mxu0 0.0
        %2356 = vmatmul.mubr.f32.gmra.mrb[0].mxu0 %v2211
        %v2357 = vpop.f32.mrb[0].mxu0
        %v2358 = vadd.f32 0.0, %v2357
        %v2359 = vpop.f32.mrb[0].mxu0
        %2360 = vdwg.mxu0
        %v2361 = vld [vmem:[#allocation8] sm:$0xff]
        %v2362 = vld [vmem:[#allocation8 + $0x8] sm:$0xff]
        %v2363 = vld [vmem:[#allocation8 + $0x10] sm:$0xff]
        %v2364 = vld [vmem:[#allocation8 + $0x18] sm:$0xff]
        %v2365 = vld [vmem:[#allocation8 + $0x20] sm:$0xff]
        %v2366 = vld [vmem:[#allocation8 + $0x28] sm:$0xff]
        %v2367 = vld [vmem:[#allocation8 + $0x30] sm:$0xff]
        %v2368 = vld [vmem:[#allocation8 + $0x38] sm:$0xff]
        %v2369 = vld [vmem:[#allocation8 + $0x40] sm:$0xff]
        %v2370 = vld [vmem:[#allocation8 + $0x48] sm:$0xff]
        %v2371 = vld [vmem:[#allocation8 + $0x50] sm:$0xff]
        %v2372 = vld [vmem:[#allocation8 + $0x58] sm:$0xff]
        %2377 = vrot.lane.b32.xlu0 %v2283, 124
        %v2378 = vpop.permute.xlu0 %2377
        %2379 = vrot.lane.b32.xlu0 %v2288, 124
        %v2380 = vpop.permute.xlu0 %2379
        %2381 = vrot.lane.b32.xlu0 %v2293, 124
        %v2382 = vpop.permute.xlu0 %2381
        %2383 = vrot.lane.b32.xlu0 %v2298, 124
        %v2384 = vpop.permute.xlu0 %2383
        %2389 = vrot.lane.b32.xlu0 %v2283, 120
        %v2390 = vpop.permute.xlu0 %2389
        %2391 = vrot.lane.b32.xlu0 %v2288, 120
        %v2392 = vpop.permute.xlu0 %2391
        %2393 = vrot.lane.b32.xlu0 %v2293, 120
        %v2394 = vpop.permute.xlu0 %2393
        %2395 = vrot.lane.b32.xlu0 %v2298, 120
        %v2396 = vpop.permute.xlu0 %2395
        %2405 = vrot.lane.b32.xlu0 %v2303, 124
        %v2406 = vpop.permute.xlu0 %2405
        %2407 = vrot.lane.b32.xlu0 %v2308, 124
        %v2408 = vpop.permute.xlu0 %2407
        %2409 = vrot.lane.b32.xlu0 %v2313, 124
        %v2410 = vpop.permute.xlu0 %2409
        %2411 = vrot.lane.b32.xlu0 %v2318, 124
        %v2412 = vpop.permute.xlu0 %2411
        %2417 = vrot.lane.b32.xlu0 %v2303, 120
        %v2418 = vpop.permute.xlu0 %2417
        %2419 = vrot.lane.b32.xlu0 %v2308, 120
        %v2420 = vpop.permute.xlu0 %2419
        %2421 = vrot.lane.b32.xlu0 %v2313, 120
        %v2422 = vpop.permute.xlu0 %2421
        %2423 = vrot.lane.b32.xlu0 %v2318, 120
        %v2424 = vpop.permute.xlu0 %2423
        %2433 = vrot.lane.b32.xlu0 %v2323, 124
        %v2434 = vpop.permute.xlu0 %2433
        %2435 = vrot.lane.b32.xlu0 %v2328, 124
        %v2436 = vpop.permute.xlu0 %2435
        %2437 = vrot.lane.b32.xlu0 %v2333, 124
        %v2438 = vpop.permute.xlu0 %2437
        %2439 = vrot.lane.b32.xlu0 %v2338, 124
        %v2440 = vpop.permute.xlu0 %2439
        %2445 = vrot.lane.b32.xlu0 %v2323, 120
        %v2446 = vpop.permute.xlu0 %2445
        %2447 = vrot.lane.b32.xlu0 %v2328, 120
        %v2448 = vpop.permute.xlu0 %2447
        %2449 = vrot.lane.b32.xlu0 %v2333, 120
        %v2450 = vpop.permute.xlu0 %2449
        %2451 = vrot.lane.b32.xlu0 %v2338, 120
        %v2452 = vpop.permute.xlu0 %2451
        %v2458 = vsel %vm932, %v2363, 0
        %v2461 = vsel %vm932, %v2366, 0
        %v2464 = vsel %vm932, %v2369, 0
        %v2467 = vsel %vm932, %v2372, 0
        %2469 = vmatprep.subr.mxu0 0.0
        %2470 = vmatpush1.msra.mxu0 %v2283
        %2471 = vmatprep.subr.mxu0 0.0
        %2472 = vmatpush1.msra.mxu0 %v2288
        %2473 = vmatprep.subr.mxu0 0.0
        %2474 = vmatpush1.msra.mxu0 %v2293
        %2475 = vmatprep.subr.mxu0 0.0
        %2476 = vmatpush1.msra.mxu0 %v2298
        %2477 = vmatprep.subr.mxu0 0.0
        %2478 = vmatpush1.msra.mxu0 %v2378
        %2479 = vmatprep.subr.mxu0 0.0
        %2480 = vmatpush1.msra.mxu0 %v2380
        %2481 = vmatprep.subr.mxu0 0.0
        %2482 = vmatpush1.msra.mxu0 %v2382
        %2483 = vmatprep.subr.mxu0 0.0
        %2484 = vmatpush1.msra.mxu0 %v2384
        %2485 = vmatprep.subr.mxu0 0.0
        %2486 = vmatpush1.msra.mxu0 %v2390
        %2487 = vmatprep.subr.mxu0 0.0
        %2488 = vmatpush1.msra.mxu0 %v2392
        %2489 = vmatprep.subr.mxu0 0.0
        %2490 = vmatpush1.msra.mxu0 %v2394
        %2491 = vmatprep.subr.mxu0 0.0
        %2492 = vmatpush1.msra.mxu0 %v2396
        %2493 = vmatprep.subr.mxu0 0.0
        %2494 = vmatpush1.msra.mxu0 %v2303
        %2495 = vmatprep.subr.mxu0 0.0
        %2496 = vmatpush1.msra.mxu0 %v2308
        %2497 = vmatprep.subr.mxu0 0.0
        %2498 = vmatpush1.msra.mxu0 %v2313
        %2499 = vmatprep.subr.mxu0 0.0
        %2500 = vmatpush1.msra.mxu0 %v2318
        %2501 = vmatprep.subr.mxu0 0.0
        %2502 = vmatpush1.msra.mxu0 %v2406
        %2503 = vmatprep.subr.mxu0 0.0
        %2504 = vmatpush1.msra.mxu0 %v2408
        %2505 = vmatprep.subr.mxu0 0.0
        %2506 = vmatpush1.msra.mxu0 %v2410
        %2507 = vmatprep.subr.mxu0 0.0
        %2508 = vmatpush1.msra.mxu0 %v2412
        %2509 = vmatprep.subr.mxu0 0.0
        %2510 = vmatpush1.msra.mxu0 %v2418
        %2511 = vmatprep.subr.mxu0 0.0
        %2512 = vmatpush1.msra.mxu0 %v2420
        %2513 = vmatprep.subr.mxu0 0.0
        %2514 = vmatpush1.msra.mxu0 %v2422
        %2515 = vmatprep.subr.mxu0 0.0
        %2516 = vmatpush1.msra.mxu0 %v2424
        %2517 = vmatprep.subr.mxu0 0.0
        %2518 = vmatpush1.msra.mxu0 %v2323
        %2519 = vmatprep.subr.mxu0 0.0
        %2520 = vmatpush1.msra.mxu0 %v2328
        %2521 = vmatprep.subr.mxu0 0.0
        %2522 = vmatpush1.msra.mxu0 %v2333
        %2523 = vmatprep.subr.mxu0 0.0
        %2524 = vmatpush1.msra.mxu0 %v2338
        %2525 = vmatprep.subr.mxu0 0.0
        %2526 = vmatpush1.msra.mxu0 %v2434
        %2527 = vmatprep.subr.mxu0 0.0
        %2528 = vmatpush1.msra.mxu0 %v2436
        %2529 = vmatprep.subr.mxu0 0.0
        %2530 = vmatpush1.msra.mxu0 %v2438
        %2531 = vmatprep.subr.mxu0 0.0
        %2532 = vmatpush1.msra.mxu0 %v2440
        %2533 = vmatprep.mubr.f32.mxu0 %v2362
        %2534 = vmatmul.mubr.f32.gmra.mrb[0].mxu0 %v2361
        %v2535 = vpop.f32.mrb[0].mxu0
        %v2536 = vadd.f32 0.0, %v2535
        %v2537 = vpop.f32.mrb[0].mxu0
        %2538 = vmatprep.mubr.f32.mxu0 %v2365
        %2539 = vmatmul.mubr.f32.gmra.mrb[0].mxu0 %v2364
        %v2540 = vpop.f32.mrb[0].mxu0
        %v2541 = vadd.f32 0.0, %v2540
        %v2542 = vpop.f32.mrb[0].mxu0
        %2543 = vmatprep.mubr.f32.mxu0 %v2368
        %2544 = vmatmul.mubr.f32.gmra.mrb[0].mxu0 %v2367
        %v2545 = vpop.f32.mrb[0].mxu0
        %v2546 = vadd.f32 0.0, %v2545
        %v2547 = vpop.f32.mrb[0].mxu0
        %2548 = vmatprep.mubr.f32.mxu0 %v2371
        %2549 = vmatmul.mubr.f32.gmra.mrb[0].mxu0 %v2370
        %v2550 = vpop.f32.mrb[0].mxu0
        %v2551 = vadd.f32 0.0, %v2550
        %v2552 = vpop.f32.mrb[0].mxu0
        %2553 = vdwg.mxu0
        %2554 = vmatprep.subr.mxu0 0.0
        %2555 = vmatpush1.msra.mxu0 %v2446
        %2556 = vmatprep.subr.mxu0 0.0
        %2557 = vmatpush1.msra.mxu0 %v2448
        %2558 = vmatprep.subr.mxu0 0.0
        %2559 = vmatpush1.msra.mxu0 %v2450
        %2560 = vmatprep.subr.mxu0 0.0
        %2561 = vmatpush1.msra.mxu0 %v2452
        %2562 = vmatprep.subr.mxu0 0.0
        %2563 = vmatpush1.msra.mxu0 0.0
        %2564 = vmatprep.subr.mxu0 0.0
        %2565 = vmatpush1.msra.mxu0 0.0
        %2566 = vmatprep.subr.mxu0 0.0
        %2567 = vmatpush1.msra.mxu0 0.0
        %2568 = vmatprep.subr.mxu0 0.0
        %2569 = vmatpush1.msra.mxu0 0.0
        %2570 = vmatprep.subr.mxu0 0.0
        %2571 = vmatpush1.msra.mxu0 0.0
        %2572 = vmatprep.subr.mxu0 0.0
        %2573 = vmatpush1.msra.mxu0 0.0
        %2574 = vmatprep.subr.mxu0 0.0
        %2575 = vmatpush1.msra.mxu0 0.0
        %2576 = vmatprep.subr.mxu0 0.0
        %2577 = vmatpush1.msra.mxu0 0.0
        %2578 = vmatprep.subr.mxu0 0.0
        %2579 = vmatpush1.msra.mxu0 0.0
        %2580 = vmatprep.subr.mxu0 0.0
        %2581 = vmatpush1.msra.mxu0 0.0
        %2582 = vmatprep.subr.mxu0 0.0
        %2583 = vmatpush1.msra.mxu0 0.0
        %2584 = vmatprep.subr.mxu0 0.0
        %2585 = vmatpush1.msra.mxu0 0.0
        %2586 = vmatprep.subr.mxu0 0.0
        %2587 = vmatpush1.msra.mxu0 0.0
        %2588 = vmatprep.subr.mxu0 0.0
        %2589 = vmatpush1.msra.mxu0 0.0
        %2590 = vmatprep.subr.mxu0 0.0
        %2591 = vmatpush1.msra.mxu0 0.0
        %2592 = vmatprep.subr.mxu0 0.0
        %2593 = vmatpush1.msra.mxu0 0.0
        %2594 = vmatprep.subr.mxu0 0.0
        %2595 = vmatpush1.msra.mxu0 0.0
        %2596 = vmatprep.subr.mxu0 0.0
        %2597 = vmatpush1.msra.mxu0 0.0
        %2598 = vmatprep.subr.mxu0 0.0
        %2599 = vmatpush1.msra.mxu0 0.0
        %2600 = vmatprep.subr.mxu0 0.0
        %2601 = vmatpush1.msra.mxu0 0.0
        %2602 = vmatprep.subr.mxu0 0.0
        %2603 = vmatpush1.msra.mxu0 0.0
        %2604 = vmatprep.subr.mxu0 0.0
        %2605 = vmatpush1.msra.mxu0 0.0
        %2606 = vmatprep.subr.mxu0 0.0
        %2607 = vmatpush1.msra.mxu0 0.0
        %2608 = vmatprep.subr.mxu0 0.0
        %2609 = vmatpush1.msra.mxu0 0.0
        %2610 = vmatprep.subr.mxu0 0.0
        %2611 = vmatpush1.msra.mxu0 0.0
        %2612 = vmatprep.subr.mxu0 0.0
        %2613 = vmatpush1.msra.mxu0 0.0
        %2614 = vmatprep.subr.mxu0 0.0
        %2615 = vmatpush1.msra.mxu0 0.0
        %2616 = vmatprep.subr.mxu0 0.0
        %2617 = vmatpush1.msra.mxu0 0.0
        %2618 = vmatprep.mubr.f32.mxu0 0.0
        %2619 = vmatmul.mubr.f32.gmra.mrb[0].mxu0 %v2458
        %v2620 = vpop.f32.mrb[0].mxu0
        %v2621 = vadd.f32 %v2536, %v2620
        %v2622 = vpop.f32.mrb[0].mxu0
        %2623 = vmatprep.mubr.f32.mxu0 0.0
        %2624 = vmatmul.mubr.f32.gmra.mrb[0].mxu0 %v2461
        %v2625 = vpop.f32.mrb[0].mxu0
        %v2626 = vadd.f32 %v2541, %v2625
        %v2627 = vpop.f32.mrb[0].mxu0
        %2628 = vmatprep.mubr.f32.mxu0 0.0
        %2629 = vmatmul.mubr.f32.gmra.mrb[0].mxu0 %v2464
        %v2630 = vpop.f32.mrb[0].mxu0
        %v2631 = vadd.f32 %v2546, %v2630
        %v2632 = vpop.f32.mrb[0].mxu0
        %2633 = vmatprep.mubr.f32.mxu0 0.0
        %2634 = vmatmul.mubr.f32.gmra.mrb[0].mxu0 %v2467
        %v2635 = vpop.f32.mrb[0].mxu0
        %v2636 = vadd.f32 %v2551, %v2635
        %v2637 = vpop.f32.mrb[0].mxu0
        %2638 = vdwg.mxu0
        %2639 = vrot.lane.b32.xlu0 %v2378, 124
        %v2640 = vpop.permute.xlu0 %2639
        %2641 = vrot.lane.b32.xlu0 %v2380, 124
        %v2642 = vpop.permute.xlu0 %2641
        %2643 = vrot.lane.b32.xlu0 %v2382, 124
        %v2644 = vpop.permute.xlu0 %2643
        %2645 = vrot.lane.b32.xlu0 %v2384, 124
        %v2646 = vpop.permute.xlu0 %2645
        %2647 = vrot.lane.b32.xlu0 %v2390, 124
        %v2648 = vpop.permute.xlu0 %2647
        %2649 = vrot.lane.b32.xlu0 %v2392, 124
        %v2650 = vpop.permute.xlu0 %2649
        %2651 = vrot.lane.b32.xlu0 %v2394, 124
        %v2652 = vpop.permute.xlu0 %2651
        %2653 = vrot.lane.b32.xlu0 %v2396, 124
        %v2654 = vpop.permute.xlu0 %2653
        %2655 = vrot.lane.b32.xlu0 %v2406, 124
        %v2656 = vpop.permute.xlu0 %2655
        %2657 = vrot.lane.b32.xlu0 %v2408, 124
        %v2658 = vpop.permute.xlu0 %2657
        %2659 = vrot.lane.b32.xlu0 %v2410, 124
        %v2660 = vpop.permute.xlu0 %2659
        %2661 = vrot.lane.b32.xlu0 %v2412, 124
        %v2662 = vpop.permute.xlu0 %2661
        %2663 = vrot.lane.b32.xlu0 %v2418, 124
        %v2664 = vpop.permute.xlu0 %2663
        %2665 = vrot.lane.b32.xlu0 %v2420, 124
        %v2666 = vpop.permute.xlu0 %2665
        %2667 = vrot.lane.b32.xlu0 %v2422, 124
        %v2668 = vpop.permute.xlu0 %2667
        %2669 = vrot.lane.b32.xlu0 %v2424, 124
        %v2670 = vpop.permute.xlu0 %2669
        %2671 = vrot.lane.b32.xlu0 %v2434, 124
        %v2672 = vpop.permute.xlu0 %2671
        %2673 = vrot.lane.b32.xlu0 %v2436, 124
        %v2674 = vpop.permute.xlu0 %2673
        %2675 = vrot.lane.b32.xlu0 %v2438, 124
        %v2676 = vpop.permute.xlu0 %2675
        %2677 = vrot.lane.b32.xlu0 %v2440, 124
        %v2678 = vpop.permute.xlu0 %2677
        %2679 = vrot.lane.b32.xlu0 %v2446, 124
        %v2680 = vpop.permute.xlu0 %2679
        %2681 = vrot.lane.b32.xlu0 %v2448, 124
        %v2682 = vpop.permute.xlu0 %2681
        %2683 = vrot.lane.b32.xlu0 %v2450, 124
        %v2684 = vpop.permute.xlu0 %2683
        %2685 = vrot.lane.b32.xlu0 %v2452, 124
        %v2686 = vpop.permute.xlu0 %2685
        %2711 = vmatprep.subr.mxu0 0.0
        %2712 = vmatpush1.msra.mxu0 %v2378
        %2713 = vmatprep.subr.mxu0 0.0
        %2714 = vmatpush1.msra.mxu0 %v2380
        %2715 = vmatprep.subr.mxu0 0.0
        %2716 = vmatpush1.msra.mxu0 %v2382
        %2717 = vmatprep.subr.mxu0 0.0
        %2718 = vmatpush1.msra.mxu0 %v2384
        %2719 = vmatprep.subr.mxu0 0.0
        %2720 = vmatpush1.msra.mxu0 %v2640
        %2721 = vmatprep.subr.mxu0 0.0
        %2722 = vmatpush1.msra.mxu0 %v2642
        %2723 = vmatprep.subr.mxu0 0.0
        %2724 = vmatpush1.msra.mxu0 %v2644
        %2725 = vmatprep.subr.mxu0 0.0
        %2726 = vmatpush1.msra.mxu0 %v2646
        %2727 = vmatprep.subr.mxu0 0.0
        %2728 = vmatpush1.msra.mxu0 %v2648
        %2729 = vmatprep.subr.mxu0 0.0
        %2730 = vmatpush1.msra.mxu0 %v2650
        %2731 = vmatprep.subr.mxu0 0.0
        %2732 = vmatpush1.msra.mxu0 %v2652
        %2733 = vmatprep.subr.mxu0 0.0
        %2734 = vmatpush1.msra.mxu0 %v2654
        %2735 = vmatprep.subr.mxu0 0.0
        %2736 = vmatpush1.msra.mxu0 %v2406
        %2737 = vmatprep.subr.mxu0 0.0
        %2738 = vmatpush1.msra.mxu0 %v2408
        %2739 = vmatprep.subr.mxu0 0.0
        %2740 = vmatpush1.msra.mxu0 %v2410
        %2741 = vmatprep.subr.mxu0 0.0
        %2742 = vmatpush1.msra.mxu0 %v2412
        %2743 = vmatprep.subr.mxu0 0.0
        %2744 = vmatpush1.msra.mxu0 %v2656
        %2745 = vmatprep.subr.mxu0 0.0
        %2746 = vmatpush1.msra.mxu0 %v2658
        %2747 = vmatprep.subr.mxu0 0.0
        %2748 = vmatpush1.msra.mxu0 %v2660
        %2749 = vmatprep.subr.mxu0 0.0
        %2750 = vmatpush1.msra.mxu0 %v2662
        %2751 = vmatprep.subr.mxu0 0.0
        %2752 = vmatpush1.msra.mxu0 %v2664
        %2753 = vmatprep.subr.mxu0 0.0
        %2754 = vmatpush1.msra.mxu0 %v2666
        %2755 = vmatprep.subr.mxu0 0.0
        %2756 = vmatpush1.msra.mxu0 %v2668
        %2757 = vmatprep.subr.mxu0 0.0
        %2758 = vmatpush1.msra.mxu0 %v2670
        %2759 = vmatprep.subr.mxu0 0.0
        %2760 = vmatpush1.msra.mxu0 %v2434
        %2761 = vmatprep.subr.mxu0 0.0
        %2762 = vmatpush1.msra.mxu0 %v2436
        %2763 = vmatprep.subr.mxu0 0.0
        %2764 = vmatpush1.msra.mxu0 %v2438
        %2765 = vmatprep.subr.mxu0 0.0
        %2766 = vmatpush1.msra.mxu0 %v2440
        %2767 = vmatprep.subr.mxu0 0.0
        %2768 = vmatpush1.msra.mxu0 %v2672
        %2769 = vmatprep.subr.mxu0 0.0
        %2770 = vmatpush1.msra.mxu0 %v2674
        %2771 = vmatprep.subr.mxu0 0.0
        %2772 = vmatpush1.msra.mxu0 %v2676
        %2773 = vmatprep.subr.mxu0 0.0
        %2774 = vmatpush1.msra.mxu0 %v2678
        %2775 = vmatprep.mubr.f32.mxu0 %v2362
        %2776 = vmatmul.mubr.f32.gmra.mrb[0].mxu0 %v2361
        %v2777 = vpop.f32.mrb[0].mxu0
        %v2778 = vadd.f32 0.0, %v2777
        %v2779 = vpop.f32.mrb[0].mxu0
        %2780 = vmatprep.mubr.f32.mxu0 %v2365
        %2781 = vmatmul.mubr.f32.gmra.mrb[0].mxu0 %v2364
        %v2782 = vpop.f32.mrb[0].mxu0
        %v2783 = vadd.f32 0.0, %v2782
        %v2784 = vpop.f32.mrb[0].mxu0
        %2785 = vmatprep.mubr.f32.mxu0 %v2368
        %2786 = vmatmul.mubr.f32.gmra.mrb[0].mxu0 %v2367
        %v2787 = vpop.f32.mrb[0].mxu0
        %v2788 = vadd.f32 0.0, %v2787
        %v2789 = vpop.f32.mrb[0].mxu0
        %2790 = vmatprep.mubr.f32.mxu0 %v2371
        %2791 = vmatmul.mubr.f32.gmra.mrb[0].mxu0 %v2370
        %v2792 = vpop.f32.mrb[0].mxu0
        %v2793 = vadd.f32 0.0, %v2792
        %v2794 = vpop.f32.mrb[0].mxu0
        %2795 = vdwg.mxu0
        %2796 = vmatprep.subr.mxu0 0.0
        %2797 = vmatpush1.msra.mxu0 %v2680
        %2798 = vmatprep.subr.mxu0 0.0
        %2799 = vmatpush1.msra.mxu0 %v2682
        %2800 = vmatprep.subr.mxu0 0.0
        %2801 = vmatpush1.msra.mxu0 %v2684
        %2802 = vmatprep.subr.mxu0 0.0
        %2803 = vmatpush1.msra.mxu0 %v2686
        %2804 = vmatprep.subr.mxu0 0.0
        %2805 = vmatpush1.msra.mxu0 0.0
        %2806 = vmatprep.subr.mxu0 0.0
        %2807 = vmatpush1.msra.mxu0 0.0
        %2808 = vmatprep.subr.mxu0 0.0
        %2809 = vmatpush1.msra.mxu0 0.0
        %2810 = vmatprep.subr.mxu0 0.0
        %2811 = vmatpush1.msra.mxu0 0.0
        %2812 = vmatprep.subr.mxu0 0.0
        %2813 = vmatpush1.msra.mxu0 0.0
        %2814 = vmatprep.subr.mxu0 0.0
        %2815 = vmatpush1.msra.mxu0 0.0
        %2816 = vmatprep.subr.mxu0 0.0
        %2817 = vmatpush1.msra.mxu0 0.0
        %2818 = vmatprep.subr.mxu0 0.0
        %2819 = vmatpush1.msra.mxu0 0.0
        %2820 = vmatprep.subr.mxu0 0.0
        %2821 = vmatpush1.msra.mxu0 0.0
        %2822 = vmatprep.subr.mxu0 0.0
        %2823 = vmatpush1.msra.mxu0 0.0
        %2824 = vmatprep.subr.mxu0 0.0
        %2825 = vmatpush1.msra.mxu0 0.0
        %2826 = vmatprep.subr.mxu0 0.0
        %2827 = vmatpush1.msra.mxu0 0.0
        %2828 = vmatprep.subr.mxu0 0.0
        %2829 = vmatpush1.msra.mxu0 0.0
        %2830 = vmatprep.subr.mxu0 0.0
        %2831 = vmatpush1.msra.mxu0 0.0
        %2832 = vmatprep.subr.mxu0 0.0
        %2833 = vmatpush1.msra.mxu0 0.0
        %2834 = vmatprep.subr.mxu0 0.0
        %2835 = vmatpush1.msra.mxu0 0.0
        %2836 = vmatprep.subr.mxu0 0.0
        %2837 = vmatpush1.msra.mxu0 0.0
        %2838 = vmatprep.subr.mxu0 0.0
        %2839 = vmatpush1.msra.mxu0 0.0
        %2840 = vmatprep.subr.mxu0 0.0
        %2841 = vmatpush1.msra.mxu0 0.0
        %2842 = vmatprep.subr.mxu0 0.0
        %2843 = vmatpush1.msra.mxu0 0.0
        %2844 = vmatprep.subr.mxu0 0.0
        %2845 = vmatpush1.msra.mxu0 0.0
        %2846 = vmatprep.subr.mxu0 0.0
        %2847 = vmatpush1.msra.mxu0 0.0
        %2848 = vmatprep.subr.mxu0 0.0
        %2849 = vmatpush1.msra.mxu0 0.0
        %2850 = vmatprep.subr.mxu0 0.0
        %2851 = vmatpush1.msra.mxu0 0.0
        %2852 = vmatprep.subr.mxu0 0.0
        %2853 = vmatpush1.msra.mxu0 0.0
        %2854 = vmatprep.subr.mxu0 0.0
        %2855 = vmatpush1.msra.mxu0 0.0
        %2856 = vmatprep.subr.mxu0 0.0
        %2857 = vmatpush1.msra.mxu0 0.0
        %2858 = vmatprep.subr.mxu0 0.0
        %2859 = vmatpush1.msra.mxu0 0.0
        %2860 = vmatprep.mubr.f32.mxu0 0.0
        %2861 = vmatmul.mubr.f32.gmra.mrb[0].mxu0 %v2458
        %v2862 = vpop.f32.mrb[0].mxu0
        %v2863 = vadd.f32 %v2778, %v2862
        %v2864 = vpop.f32.mrb[0].mxu0
        %2865 = vmatprep.mubr.f32.mxu0 0.0
        %2866 = vmatmul.mubr.f32.gmra.mrb[0].mxu0 %v2461
        %v2867 = vpop.f32.mrb[0].mxu0
        %v2868 = vadd.f32 %v2783, %v2867
        %v2869 = vpop.f32.mrb[0].mxu0
        %2870 = vmatprep.mubr.f32.mxu0 0.0
        %2871 = vmatmul.mubr.f32.gmra.mrb[0].mxu0 %v2464
        %v2872 = vpop.f32.mrb[0].mxu0
        %v2873 = vadd.f32 %v2788, %v2872
        %v2874 = vpop.f32.mrb[0].mxu0
        %2875 = vmatprep.mubr.f32.mxu0 0.0
        %2876 = vmatmul.mubr.f32.gmra.mrb[0].mxu0 %v2467
        %v2877 = vpop.f32.mrb[0].mxu0
        %v2878 = vadd.f32 %v2793, %v2877
        %v2879 = vpop.f32.mrb[0].mxu0
        %2880 = vdwg.mxu0
        %v2881 = vmax.f32 %v2621, %v2863
        %v2882 = vmax.f32 %v2626, %v2868
        %v2883 = vmax.f32 %v2631, %v2873
        %v2884 = vmax.f32 %v2636, %v2878
        %2889 = vrot.lane.b32.xlu0 %v2343, 124
        %v2890 = vpop.permute.xlu0 %2889
        %2891 = vrot.lane.b32.xlu0 %v2348, 124
        %v2892 = vpop.permute.xlu0 %2891
        %2893 = vrot.lane.b32.xlu0 %v2353, 124
        %v2894 = vpop.permute.xlu0 %2893
        %2895 = vrot.lane.b32.xlu0 %v2358, 124
        %v2896 = vpop.permute.xlu0 %2895
        %2901 = vrot.lane.b32.xlu0 %v2343, 120
        %v2902 = vpop.permute.xlu0 %2901
        %2903 = vrot.lane.b32.xlu0 %v2348, 120
        %v2904 = vpop.permute.xlu0 %2903
        %2905 = vrot.lane.b32.xlu0 %v2353, 120
        %v2906 = vpop.permute.xlu0 %2905
        %2907 = vrot.lane.b32.xlu0 %v2358, 120
        %v2908 = vpop.permute.xlu0 %2907
        %2913 = vmatprep.subr.mxu0 0.0
        %2914 = vmatpush1.msra.mxu0 %v2303
        %2915 = vmatprep.subr.mxu0 0.0
        %2916 = vmatpush1.msra.mxu0 %v2308
        %2917 = vmatprep.subr.mxu0 0.0
        %2918 = vmatpush1.msra.mxu0 %v2313
        %2919 = vmatprep.subr.mxu0 0.0
        %2920 = vmatpush1.msra.mxu0 %v2318
        %2921 = vmatprep.subr.mxu0 0.0
        %2922 = vmatpush1.msra.mxu0 %v2406
        %2923 = vmatprep.subr.mxu0 0.0
        %2924 = vmatpush1.msra.mxu0 %v2408
        %2925 = vmatprep.subr.mxu0 0.0
        %2926 = vmatpush1.msra.mxu0 %v2410
        %2927 = vmatprep.subr.mxu0 0.0
        %2928 = vmatpush1.msra.mxu0 %v2412
        %2929 = vmatprep.subr.mxu0 0.0
        %2930 = vmatpush1.msra.mxu0 %v2418
        %2931 = vmatprep.subr.mxu0 0.0
        %2932 = vmatpush1.msra.mxu0 %v2420
        %2933 = vmatprep.subr.mxu0 0.0
        %2934 = vmatpush1.msra.mxu0 %v2422
        %2935 = vmatprep.subr.mxu0 0.0
        %2936 = vmatpush1.msra.mxu0 %v2424
        %2937 = vmatprep.subr.mxu0 0.0
        %2938 = vmatpush1.msra.mxu0 %v2323
        %2939 = vmatprep.subr.mxu0 0.0
        %2940 = vmatpush1.msra.mxu0 %v2328
        %2941 = vmatprep.subr.mxu0 0.0
        %2942 = vmatpush1.msra.mxu0 %v2333
        %2943 = vmatprep.subr.mxu0 0.0
        %2944 = vmatpush1.msra.mxu0 %v2338
        %2945 = vmatprep.subr.mxu0 0.0
        %2946 = vmatpush1.msra.mxu0 %v2434
        %2947 = vmatprep.subr.mxu0 0.0
        %2948 = vmatpush1.msra.mxu0 %v2436
        %2949 = vmatprep.subr.mxu0 0.0
        %2950 = vmatpush1.msra.mxu0 %v2438
        %2951 = vmatprep.subr.mxu0 0.0
        %2952 = vmatpush1.msra.mxu0 %v2440
        %2953 = vmatprep.subr.mxu0 0.0
        %2954 = vmatpush1.msra.mxu0 %v2446
        %2955 = vmatprep.subr.mxu0 0.0
        %2956 = vmatpush1.msra.mxu0 %v2448
        %2957 = vmatprep.subr.mxu0 0.0
        %2958 = vmatpush1.msra.mxu0 %v2450
        %2959 = vmatprep.subr.mxu0 0.0
        %2960 = vmatpush1.msra.mxu0 %v2452
        %2961 = vmatprep.subr.mxu0 0.0
        %2962 = vmatpush1.msra.mxu0 %v2343
        %2963 = vmatprep.subr.mxu0 0.0
        %2964 = vmatpush1.msra.mxu0 %v2348
        %2965 = vmatprep.subr.mxu0 0.0
        %2966 = vmatpush1.msra.mxu0 %v2353
        %2967 = vmatprep.subr.mxu0 0.0
        %2968 = vmatpush1.msra.mxu0 %v2358
        %2969 = vmatprep.subr.mxu0 0.0
        %2970 = vmatpush1.msra.mxu0 %v2890
        %2971 = vmatprep.subr.mxu0 0.0
        %2972 = vmatpush1.msra.mxu0 %v2892
        %2973 = vmatprep.subr.mxu0 0.0
        %2974 = vmatpush1.msra.mxu0 %v2894
        %2975 = vmatprep.subr.mxu0 0.0
        %2976 = vmatpush1.msra.mxu0 %v2896
        %2977 = vmatprep.mubr.f32.mxu0 %v2362
        %2978 = vmatmul.mubr.f32.gmra.mrb[0].mxu0 %v2361
        %v2979 = vpop.f32.mrb[0].mxu0
        %v2980 = vadd.f32 0.0, %v2979
        %v2981 = vpop.f32.mrb[0].mxu0
        %2982 = vmatprep.mubr.f32.mxu0 %v2365
        %2983 = vmatmul.mubr.f32.gmra.mrb[0].mxu0 %v2364
        %v2984 = vpop.f32.mrb[0].mxu0
        %v2985 = vadd.f32 0.0, %v2984
        %v2986 = vpop.f32.mrb[0].mxu0
        %2987 = vmatprep.mubr.f32.mxu0 %v2368
        %2988 = vmatmul.mubr.f32.gmra.mrb[0].mxu0 %v2367
        %v2989 = vpop.f32.mrb[0].mxu0
        %v2990 = vadd.f32 0.0, %v2989
        %v2991 = vpop.f32.mrb[0].mxu0
        %2992 = vmatprep.mubr.f32.mxu0 %v2371
        %2993 = vmatmul.mubr.f32.gmra.mrb[0].mxu0 %v2370
        %v2994 = vpop.f32.mrb[0].mxu0
        %v2995 = vadd.f32 0.0, %v2994
        %v2996 = vpop.f32.mrb[0].mxu0
        %2997 = vdwg.mxu0
        %2998 = vmatprep.subr.mxu0 0.0
        %2999 = vmatpush1.msra.mxu0 %v2902
        %3000 = vmatprep.subr.mxu0 0.0
        %3001 = vmatpush1.msra.mxu0 %v2904
        %3002 = vmatprep.subr.mxu0 0.0
        %3003 = vmatpush1.msra.mxu0 %v2906
        %3004 = vmatprep.subr.mxu0 0.0
        %3005 = vmatpush1.msra.mxu0 %v2908
        %3006 = vmatprep.subr.mxu0 0.0
        %3007 = vmatpush1.msra.mxu0 0.0
        %3008 = vmatprep.subr.mxu0 0.0
        %3009 = vmatpush1.msra.mxu0 0.0
        %3010 = vmatprep.subr.mxu0 0.0
        %3011 = vmatpush1.msra.mxu0 0.0
        %3012 = vmatprep.subr.mxu0 0.0
        %3013 = vmatpush1.msra.mxu0 0.0
        %3014 = vmatprep.subr.mxu0 0.0
        %3015 = vmatpush1.msra.mxu0 0.0
        %3016 = vmatprep.subr.mxu0 0.0
        %3017 = vmatpush1.msra.mxu0 0.0
        %3018 = vmatprep.subr.mxu0 0.0
        %3019 = vmatpush1.msra.mxu0 0.0
        %3020 = vmatprep.subr.mxu0 0.0
        %3021 = vmatpush1.msra.mxu0 0.0
        %3022 = vmatprep.subr.mxu0 0.0
        %3023 = vmatpush1.msra.mxu0 0.0
        %3024 = vmatprep.subr.mxu0 0.0
        %3025 = vmatpush1.msra.mxu0 0.0
        %3026 = vmatprep.subr.mxu0 0.0
        %3027 = vmatpush1.msra.mxu0 0.0
        %3028 = vmatprep.subr.mxu0 0.0
        %3029 = vmatpush1.msra.mxu0 0.0
        %3030 = vmatprep.subr.mxu0 0.0
        %3031 = vmatpush1.msra.mxu0 0.0
        %3032 = vmatprep.subr.mxu0 0.0
        %3033 = vmatpush1.msra.mxu0 0.0
        %3034 = vmatprep.subr.mxu0 0.0
        %3035 = vmatpush1.msra.mxu0 0.0
        %3036 = vmatprep.subr.mxu0 0.0
        %3037 = vmatpush1.msra.mxu0 0.0
        %3038 = vmatprep.subr.mxu0 0.0
        %3039 = vmatpush1.msra.mxu0 0.0
        %3040 = vmatprep.subr.mxu0 0.0
        %3041 = vmatpush1.msra.mxu0 0.0
        %3042 = vmatprep.subr.mxu0 0.0
        %3043 = vmatpush1.msra.mxu0 0.0
        %3044 = vmatprep.subr.mxu0 0.0
        %3045 = vmatpush1.msra.mxu0 0.0
        %3046 = vmatprep.subr.mxu0 0.0
        %3047 = vmatpush1.msra.mxu0 0.0
        %3048 = vmatprep.subr.mxu0 0.0
        %3049 = vmatpush1.msra.mxu0 0.0
        %3050 = vmatprep.subr.mxu0 0.0
        %3051 = vmatpush1.msra.mxu0 0.0
        %3052 = vmatprep.subr.mxu0 0.0
        %3053 = vmatpush1.msra.mxu0 0.0
        %3054 = vmatprep.subr.mxu0 0.0
        %3055 = vmatpush1.msra.mxu0 0.0
        %3056 = vmatprep.subr.mxu0 0.0
        %3057 = vmatpush1.msra.mxu0 0.0
        %3058 = vmatprep.subr.mxu0 0.0
        %3059 = vmatpush1.msra.mxu0 0.0
        %3060 = vmatprep.subr.mxu0 0.0
        %3061 = vmatpush1.msra.mxu0 0.0
        %3062 = vmatprep.mubr.f32.mxu0 0.0
        %3063 = vmatmul.mubr.f32.gmra.mrb[0].mxu0 %v2458
        %v3064 = vpop.f32.mrb[0].mxu0
        %v3065 = vadd.f32 %v2980, %v3064
        %v3066 = vpop.f32.mrb[0].mxu0
        %3067 = vmatprep.mubr.f32.mxu0 0.0
        %3068 = vmatmul.mubr.f32.gmra.mrb[0].mxu0 %v2461
        %v3069 = vpop.f32.mrb[0].mxu0
        %v3070 = vadd.f32 %v2985, %v3069
        %v3071 = vpop.f32.mrb[0].mxu0
        %3072 = vmatprep.mubr.f32.mxu0 0.0
        %3073 = vmatmul.mubr.f32.gmra.mrb[0].mxu0 %v2464
        %v3074 = vpop.f32.mrb[0].mxu0
        %v3075 = vadd.f32 %v2990, %v3074
        %v3076 = vpop.f32.mrb[0].mxu0
        %3077 = vmatprep.mubr.f32.mxu0 0.0
        %3078 = vmatmul.mubr.f32.gmra.mrb[0].mxu0 %v2467
        %v3079 = vpop.f32.mrb[0].mxu0
        %v3080 = vadd.f32 %v2995, %v3079
        %v3081 = vpop.f32.mrb[0].mxu0
        %3082 = vdwg.mxu0
        %v3083 = vmax.f32 %v2881, %v3065
        %v3084 = vmax.f32 %v2882, %v3070
        %v3085 = vmax.f32 %v2883, %v3075
        %v3086 = vmax.f32 %v2884, %v3080
        %3087 = vrot.lane.b32.xlu0 %v2890, 124
        %v3088 = vpop.permute.xlu0 %3087
        %3089 = vrot.lane.b32.xlu0 %v2892, 124
        %v3090 = vpop.permute.xlu0 %3089
        %3091 = vrot.lane.b32.xlu0 %v2894, 124
        %v3092 = vpop.permute.xlu0 %3091
        %3093 = vrot.lane.b32.xlu0 %v2896, 124
        %v3094 = vpop.permute.xlu0 %3093
        %3095 = vrot.lane.b32.xlu0 %v2902, 124
        %v3096 = vpop.permute.xlu0 %3095
        %3097 = vrot.lane.b32.xlu0 %v2904, 124
        %v3098 = vpop.permute.xlu0 %3097
        %3099 = vrot.lane.b32.xlu0 %v2906, 124
        %v3100 = vpop.permute.xlu0 %3099
        %3101 = vrot.lane.b32.xlu0 %v2908, 124
        %v3102 = vpop.permute.xlu0 %3101
        %3111 = vmatprep.subr.mxu0 0.0
        %3112 = vmatpush1.msra.mxu0 %v2406
        %3113 = vmatprep.subr.mxu0 0.0
        %3114 = vmatpush1.msra.mxu0 %v2408
        %3115 = vmatprep.subr.mxu0 0.0
        %3116 = vmatpush1.msra.mxu0 %v2410
        %3117 = vmatprep.subr.mxu0 0.0
        %3118 = vmatpush1.msra.mxu0 %v2412
        %3119 = vmatprep.subr.mxu0 0.0
        %3120 = vmatpush1.msra.mxu0 %v2656
        %3121 = vmatprep.subr.mxu0 0.0
        %3122 = vmatpush1.msra.mxu0 %v2658
        %3123 = vmatprep.subr.mxu0 0.0
        %3124 = vmatpush1.msra.mxu0 %v2660
        %3125 = vmatprep.subr.mxu0 0.0
        %3126 = vmatpush1.msra.mxu0 %v2662
        %3127 = vmatprep.subr.mxu0 0.0
        %3128 = vmatpush1.msra.mxu0 %v2664
        %3129 = vmatprep.subr.mxu0 0.0
        %3130 = vmatpush1.msra.mxu0 %v2666
        %3131 = vmatprep.subr.mxu0 0.0
        %3132 = vmatpush1.msra.mxu0 %v2668
        %3133 = vmatprep.subr.mxu0 0.0
        %3134 = vmatpush1.msra.mxu0 %v2670
        %3135 = vmatprep.subr.mxu0 0.0
        %3136 = vmatpush1.msra.mxu0 %v2434
        %3137 = vmatprep.subr.mxu0 0.0
        %3138 = vmatpush1.msra.mxu0 %v2436
        %3139 = vmatprep.subr.mxu0 0.0
        %3140 = vmatpush1.msra.mxu0 %v2438
        %3141 = vmatprep.subr.mxu0 0.0
        %3142 = vmatpush1.msra.mxu0 %v2440
        %3143 = vmatprep.subr.mxu0 0.0
        %3144 = vmatpush1.msra.mxu0 %v2672
        %3145 = vmatprep.subr.mxu0 0.0
        %3146 = vmatpush1.msra.mxu0 %v2674
        %3147 = vmatprep.subr.mxu0 0.0
        %3148 = vmatpush1.msra.mxu0 %v2676
        %3149 = vmatprep.subr.mxu0 0.0
        %3150 = vmatpush1.msra.mxu0 %v2678
        %3151 = vmatprep.subr.mxu0 0.0
        %3152 = vmatpush1.msra.mxu0 %v2680
        %3153 = vmatprep.subr.mxu0 0.0
        %3154 = vmatpush1.msra.mxu0 %v2682
        %3155 = vmatprep.subr.mxu0 0.0
        %3156 = vmatpush1.msra.mxu0 %v2684
        %3157 = vmatprep.subr.mxu0 0.0
        %3158 = vmatpush1.msra.mxu0 %v2686
        %3159 = vmatprep.subr.mxu0 0.0
        %3160 = vmatpush1.msra.mxu0 %v2890
        %3161 = vmatprep.subr.mxu0 0.0
        %3162 = vmatpush1.msra.mxu0 %v2892
        %3163 = vmatprep.subr.mxu0 0.0
        %3164 = vmatpush1.msra.mxu0 %v2894
        %3165 = vmatprep.subr.mxu0 0.0
        %3166 = vmatpush1.msra.mxu0 %v2896
        %3167 = vmatprep.subr.mxu0 0.0
        %3168 = vmatpush1.msra.mxu0 %v3088
        %3169 = vmatprep.subr.mxu0 0.0
        %3170 = vmatpush1.msra.mxu0 %v3090
        %3171 = vmatprep.subr.mxu0 0.0
        %3172 = vmatpush1.msra.mxu0 %v3092
        %3173 = vmatprep.subr.mxu0 0.0
        %3174 = vmatpush1.msra.mxu0 %v3094
        %3175 = vmatprep.mubr.f32.mxu0 %v2362
        %3176 = vmatmul.mubr.f32.gmra.mrb[0].mxu0 %v2361
        %v3177 = vpop.f32.mrb[0].mxu0
        %v3178 = vadd.f32 0.0, %v3177
        %v3179 = vpop.f32.mrb[0].mxu0
        %3180 = vmatprep.mubr.f32.mxu0 %v2365
        %3181 = vmatmul.mubr.f32.gmra.mrb[0].mxu0 %v2364
        %v3182 = vpop.f32.mrb[0].mxu0
        %v3183 = vadd.f32 0.0, %v3182
        %v3184 = vpop.f32.mrb[0].mxu0
        %3185 = vmatprep.mubr.f32.mxu0 %v2368
        %3186 = vmatmul.mubr.f32.gmra.mrb[0].mxu0 %v2367
        %v3187 = vpop.f32.mrb[0].mxu0
        %v3188 = vadd.f32 0.0, %v3187
        %v3189 = vpop.f32.mrb[0].mxu0
        %3190 = vmatprep.mubr.f32.mxu0 %v2371
        %3191 = vmatmul.mubr.f32.gmra.mrb[0].mxu0 %v2370
        %v3192 = vpop.f32.mrb[0].mxu0
        %v3193 = vadd.f32 0.0, %v3192
        %v3194 = vpop.f32.mrb[0].mxu0
        %3195 = vdwg.mxu0
        %3196 = vmatprep.subr.mxu0 0.0
        %3197 = vmatpush1.msra.mxu0 %v3096
        %3198 = vmatprep.subr.mxu0 0.0
        %3199 = vmatpush1.msra.mxu0 %v3098
        %3200 = vmatprep.subr.mxu0 0.0
        %3201 = vmatpush1.msra.mxu0 %v3100
        %3202 = vmatprep.subr.mxu0 0.0
        %3203 = vmatpush1.msra.mxu0 %v3102
        %3204 = vmatprep.subr.mxu0 0.0
        %3205 = vmatpush1.msra.mxu0 0.0
        %3206 = vmatprep.subr.mxu0 0.0
        %3207 = vmatpush1.msra.mxu0 0.0
        %3208 = vmatprep.subr.mxu0 0.0
        %3209 = vmatpush1.msra.mxu0 0.0
        %3210 = vmatprep.subr.mxu0 0.0
        %3211 = vmatpush1.msra.mxu0 0.0
        %3212 = vmatprep.subr.mxu0 0.0
        %3213 = vmatpush1.msra.mxu0 0.0
        %3214 = vmatprep.subr.mxu0 0.0
        %3215 = vmatpush1.msra.mxu0 0.0
        %3216 = vmatprep.subr.mxu0 0.0
        %3217 = vmatpush1.msra.mxu0 0.0
        %3218 = vmatprep.subr.mxu0 0.0
        %3219 = vmatpush1.msra.mxu0 0.0
        %3220 = vmatprep.subr.mxu0 0.0
        %3221 = vmatpush1.msra.mxu0 0.0
        %3222 = vmatprep.subr.mxu0 0.0
        %3223 = vmatpush1.msra.mxu0 0.0
        %3224 = vmatprep.subr.mxu0 0.0
        %3225 = vmatpush1.msra.mxu0 0.0
        %3226 = vmatprep.subr.mxu0 0.0
        %3227 = vmatpush1.msra.mxu0 0.0
        %3228 = vmatprep.subr.mxu0 0.0
        %3229 = vmatpush1.msra.mxu0 0.0
        %3230 = vmatprep.subr.mxu0 0.0
        %3231 = vmatpush1.msra.mxu0 0.0
        %3232 = vmatprep.subr.mxu0 0.0
        %3233 = vmatpush1.msra.mxu0 0.0
        %3234 = vmatprep.subr.mxu0 0.0
        %3235 = vmatpush1.msra.mxu0 0.0
        %3236 = vmatprep.subr.mxu0 0.0
        %3237 = vmatpush1.msra.mxu0 0.0
        %3238 = vmatprep.subr.mxu0 0.0
        %3239 = vmatpush1.msra.mxu0 0.0
        %3240 = vmatprep.subr.mxu0 0.0
        %3241 = vmatpush1.msra.mxu0 0.0
        %3242 = vmatprep.subr.mxu0 0.0
        %3243 = vmatpush1.msra.mxu0 0.0
        %3244 = vmatprep.subr.mxu0 0.0
        %3245 = vmatpush1.msra.mxu0 0.0
        %3246 = vmatprep.subr.mxu0 0.0
        %3247 = vmatpush1.msra.mxu0 0.0
        %3248 = vmatprep.subr.mxu0 0.0
        %3249 = vmatpush1.msra.mxu0 0.0
        %3250 = vmatprep.subr.mxu0 0.0
        %3251 = vmatpush1.msra.mxu0 0.0
        %3252 = vmatprep.subr.mxu0 0.0
        %3253 = vmatpush1.msra.mxu0 0.0
        %3254 = vmatprep.subr.mxu0 0.0
        %3255 = vmatpush1.msra.mxu0 0.0
        %3256 = vmatprep.subr.mxu0 0.0
        %3257 = vmatpush1.msra.mxu0 0.0
        %3258 = vmatprep.subr.mxu0 0.0
        %3259 = vmatpush1.msra.mxu0 0.0
        %3260 = vmatprep.mubr.f32.mxu0 0.0
        %3261 = vmatmul.mubr.f32.gmra.mrb[0].mxu0 %v2458
        %v3262 = vpop.f32.mrb[0].mxu0
        %v3263 = vadd.f32 %v3178, %v3262
        %v3264 = vpop.f32.mrb[0].mxu0
        %3265 = vmatprep.mubr.f32.mxu0 0.0
        %3266 = vmatmul.mubr.f32.gmra.mrb[0].mxu0 %v2461
        %v3267 = vpop.f32.mrb[0].mxu0
        %v3268 = vadd.f32 %v3183, %v3267
        %v3269 = vpop.f32.mrb[0].mxu0
        %3270 = vmatprep.mubr.f32.mxu0 0.0
        %3271 = vmatmul.mubr.f32.gmra.mrb[0].mxu0 %v2464
        %v3272 = vpop.f32.mrb[0].mxu0
        %v3273 = vadd.f32 %v3188, %v3272
        %v3274 = vpop.f32.mrb[0].mxu0
        %3275 = vmatprep.mubr.f32.mxu0 0.0
        %3276 = vmatmul.mubr.f32.gmra.mrb[0].mxu0 %v2467
        %v3277 = vpop.f32.mrb[0].mxu0
        %v3278 = vadd.f32 %v3193, %v3277
        %v3279 = vpop.f32.mrb[0].mxu0
        %3280 = vdwg.mxu0
        %v3281 = vmax.f32 %v3083, %v3263
        %v3282 = vmax.f32 %v3084, %v3268
        %v3283 = vmax.f32 %v3085, %v3273
        %v3284 = vmax.f32 %v3086, %v3278
        %v3285 = vld [vmem:[%s5] sm:$0xff]
        %v3286 = vld [vmem:[%s5 + $0x8] sm:$0xff]
        %v3287 = vld [vmem:[%s5 + $0x10] sm:$0xff]
        %v3288 = vld [vmem:[%s5 + $0x18] sm:$0xff]
        %3290 = vset.pattern.permute.xlu0 0
        %3291 = vperm.xlu0 %3290, %v3285
        %v3292 = vpop.permute.xlu0 %3291
        %3295 = vset.pattern.permute.xlu0 0
        %3296 = vperm.xlu0 %3295, %v3286
        %v3297 = vpop.permute.xlu0 %3296
        %3300 = vset.pattern.permute.xlu0 0
        %3301 = vperm.xlu0 %3300, %v3287
        %v3302 = vpop.permute.xlu0 %3301
        %3305 = vset.pattern.permute.xlu0 0
        %3306 = vperm.xlu0 %3305, %v3288
        %v3307 = vpop.permute.xlu0 %3306
        %v3309 = vadd.f32 %v3281, %v3292
        %v3310 = vadd.f32 %v3282, %v3297
        %v3311 = vadd.f32 %v3283, %v3302
        %v3312 = vadd.f32 %v3284, %v3307
        %v3313 = vmax.f32 %v3309, 0.0
        %v3314 = vmax.f32 %v3310, 0.0
        %v3315 = vmax.f32 %v3311, 0.0
        %v3316 = vmax.f32 %v3312, 0.0
        %v3317 = vld [vmem:[%s8] sm:$0xff]
        %v3318 = vld [vmem:[%s8 + $0x8] sm:$0xff]
        %v3319 = vld [vmem:[%s8 + $0x10] sm:$0xff]
        %v3320 = vld [vmem:[%s8 + $0x18] sm:$0xff]
        %v3321 = vld [vmem:[#allocation9] sm:$0xff]
        %v3322 = vld [vmem:[#allocation9 + $0x8] sm:$0xff]
        %v3323 = vld [vmem:[#allocation9 + $0x10] sm:$0xff]
        %v3324 = vld [vmem:[#allocation9 + $0x18] sm:$0xff]
        %v3326 = vsel %vm932, %v3321, 0
        %v3329 = vsel %vm932, %v3322, 0
        %v3332 = vsel %vm932, %v3323, 0
        %v3335 = vsel %vm932, %v3324, 0
        %3337 = vmatprep.subr.mxu0 0.0
        %3338 = vmatpush1.msra.mxu0 %v3313
        %3339 = vmatprep.subr.mxu0 0.0
        %3340 = vmatpush1.msra.mxu0 %v3314
        %3341 = vmatprep.subr.mxu0 0.0
        %3342 = vmatpush1.msra.mxu0 %v3315
        %3343 = vmatprep.subr.mxu0 0.0
        %3344 = vmatpush1.msra.mxu0 %v3316
        %3345 = vmatprep.subr.mxu0 0.0
        %3346 = vmatpush1.msra.mxu0 0.0
        %3347 = vmatprep.subr.mxu0 0.0
        %3348 = vmatpush1.msra.mxu0 0.0
        %3349 = vmatprep.subr.mxu0 0.0
        %3350 = vmatpush1.msra.mxu0 0.0
        %3351 = vmatprep.subr.mxu0 0.0
        %3352 = vmatpush1.msra.mxu0 0.0
        %3353 = vmatprep.subr.mxu0 0.0
        %3354 = vmatpush1.msra.mxu0 0.0
        %3355 = vmatprep.subr.mxu0 0.0
        %3356 = vmatpush1.msra.mxu0 0.0
        %3357 = vmatprep.subr.mxu0 0.0
        %3358 = vmatpush1.msra.mxu0 0.0
        %3359 = vmatprep.subr.mxu0 0.0
        %3360 = vmatpush1.msra.mxu0 0.0
        %3361 = vmatprep.subr.mxu0 0.0
        %3362 = vmatpush1.msra.mxu0 0.0
        %3363 = vmatprep.subr.mxu0 0.0
        %3364 = vmatpush1.msra.mxu0 0.0
        %3365 = vmatprep.subr.mxu0 0.0
        %3366 = vmatpush1.msra.mxu0 0.0
        %3367 = vmatprep.subr.mxu0 0.0
        %3368 = vmatpush1.msra.mxu0 0.0
        %3369 = vmatprep.subr.mxu0 0.0
        %3370 = vmatpush1.msra.mxu0 0.0
        %3371 = vmatprep.subr.mxu0 0.0
        %3372 = vmatpush1.msra.mxu0 0.0
        %3373 = vmatprep.subr.mxu0 0.0
        %3374 = vmatpush1.msra.mxu0 0.0
        %3375 = vmatprep.subr.mxu0 0.0
        %3376 = vmatpush1.msra.mxu0 0.0
        %3377 = vmatprep.subr.mxu0 0.0
        %3378 = vmatpush1.msra.mxu0 0.0
        %3379 = vmatprep.subr.mxu0 0.0
        %3380 = vmatpush1.msra.mxu0 0.0
        %3381 = vmatprep.subr.mxu0 0.0
        %3382 = vmatpush1.msra.mxu0 0.0
        %3383 = vmatprep.subr.mxu0 0.0
        %3384 = vmatpush1.msra.mxu0 0.0
        %3385 = vmatprep.subr.mxu0 0.0
        %3386 = vmatpush1.msra.mxu0 0.0
        %3387 = vmatprep.subr.mxu0 0.0
        %3388 = vmatpush1.msra.mxu0 0.0
        %3389 = vmatprep.subr.mxu0 0.0
        %3390 = vmatpush1.msra.mxu0 0.0
        %3391 = vmatprep.subr.mxu0 0.0
        %3392 = vmatpush1.msra.mxu0 0.0
        %3393 = vmatprep.subr.mxu0 0.0
        %3394 = vmatpush1.msra.mxu0 0.0
        %3395 = vmatprep.subr.mxu0 0.0
        %3396 = vmatpush1.msra.mxu0 0.0
        %3397 = vmatprep.subr.mxu0 0.0
        %3398 = vmatpush1.msra.mxu0 0.0
        %3399 = vmatprep.subr.mxu0 0.0
        %3400 = vmatpush1.msra.mxu0 0.0
        %3401 = vmatprep.mubr.f32.mxu0 0.0
        %3402 = vmatmul.mubr.f32.gmra.mrb[0].mxu0 %v3326
        %v3403 = vpop.f32.mrb[0].mxu0
        %v3404 = vadd.f32 0.0, %v3403
        %v3405 = vpop.f32.mrb[0].mxu0
        %3406 = vmatprep.mubr.f32.mxu0 0.0
        %3407 = vmatmul.mubr.f32.gmra.mrb[0].mxu0 %v3329
        %v3408 = vpop.f32.mrb[0].mxu0
        %v3409 = vadd.f32 0.0, %v3408
        %v3410 = vpop.f32.mrb[0].mxu0
        %3411 = vmatprep.mubr.f32.mxu0 0.0
        %3412 = vmatmul.mubr.f32.gmra.mrb[0].mxu0 %v3332
        %v3413 = vpop.f32.mrb[0].mxu0
        %v3414 = vadd.f32 0.0, %v3413
        %v3415 = vpop.f32.mrb[0].mxu0
        %3416 = vmatprep.mubr.f32.mxu0 0.0
        %3417 = vmatmul.mubr.f32.gmra.mrb[0].mxu0 %v3335
        %v3418 = vpop.f32.mrb[0].mxu0
        %v3419 = vadd.f32 0.0, %v3418
        %v3420 = vpop.f32.mrb[0].mxu0
        %3421 = vdwg.mxu0
        %v3422 = vadd.f32 %v3317, %v3404
        %v3423 = vadd.f32 %v3318, %v3409
        %v3424 = vadd.f32 %v3319, %v3414
        %v3425 = vadd.f32 %v3320, %v3419
        %s3426 = scalar_lea.vmem [#allocation9], 32
        %v3427 = vld [vmem:[%s3426] sm:$0xff]
        %v3428 = vld [vmem:[%s3426 + $0x8] sm:$0xff]
        %v3429 = vld [vmem:[%s3426 + $0x10] sm:$0xff]
        %v3430 = vld [vmem:[%s3426 + $0x18] sm:$0xff]
        %3435 = vrot.lane.b32.xlu0 %v3313, 127
        %v3436 = vpop.permute.xlu0 %3435
        %3437 = vrot.lane.b32.xlu0 %v3314, 127
        %v3438 = vpop.permute.xlu0 %3437
        %3439 = vrot.lane.b32.xlu0 %v3315, 127
        %v3440 = vpop.permute.xlu0 %3439
        %3441 = vrot.lane.b32.xlu0 %v3316, 127
        %v3442 = vpop.permute.xlu0 %3441
        %v3448 = vsel %vm932, %v3427, 0
        %v3451 = vsel %vm932, %v3428, 0
        %v3454 = vsel %vm932, %v3429, 0
        %v3457 = vsel %vm932, %v3430, 0
        %3459 = vmatprep.subr.mxu0 0.0
        %3460 = vmatpush1.msra.mxu0 %v3436
        %3461 = vmatprep.subr.mxu0 0.0
        %3462 = vmatpush1.msra.mxu0 %v3438
        %3463 = vmatprep.subr.mxu0 0.0
        %3464 = vmatpush1.msra.mxu0 %v3440
        %3465 = vmatprep.subr.mxu0 0.0
        %3466 = vmatpush1.msra.mxu0 %v3442
        %3467 = vmatprep.subr.mxu0 0.0
        %3468 = vmatpush1.msra.mxu0 0.0
        %3469 = vmatprep.subr.mxu0 0.0
        %3470 = vmatpush1.msra.mxu0 0.0
        %3471 = vmatprep.subr.mxu0 0.0
        %3472 = vmatpush1.msra.mxu0 0.0
        %3473 = vmatprep.subr.mxu0 0.0
        %3474 = vmatpush1.msra.mxu0 0.0
        %3475 = vmatprep.subr.mxu0 0.0
        %3476 = vmatpush1.msra.mxu0 0.0
        %3477 = vmatprep.subr.mxu0 0.0
        %3478 = vmatpush1.msra.mxu0 0.0
        %3479 = vmatprep.subr.mxu0 0.0
        %3480 = vmatpush1.msra.mxu0 0.0
        %3481 = vmatprep.subr.mxu0 0.0
        %3482 = vmatpush1.msra.mxu0 0.0
        %3483 = vmatprep.subr.mxu0 0.0
        %3484 = vmatpush1.msra.mxu0 0.0
        %3485 = vmatprep.subr.mxu0 0.0
        %3486 = vmatpush1.msra.mxu0 0.0
        %3487 = vmatprep.subr.mxu0 0.0
        %3488 = vmatpush1.msra.mxu0 0.0
        %3489 = vmatprep.subr.mxu0 0.0
        %3490 = vmatpush1.msra.mxu0 0.0
        %3491 = vmatprep.subr.mxu0 0.0
        %3492 = vmatpush1.msra.mxu0 0.0
        %3493 = vmatprep.subr.mxu0 0.0
        %3494 = vmatpush1.msra.mxu0 0.0
        %3495 = vmatprep.subr.mxu0 0.0
        %3496 = vmatpush1.msra.mxu0 0.0
        %3497 = vmatprep.subr.mxu0 0.0
        %3498 = vmatpush1.msra.mxu0 0.0
        %3499 = vmatprep.subr.mxu0 0.0
        %3500 = vmatpush1.msra.mxu0 0.0
        %3501 = vmatprep.subr.mxu0 0.0
        %3502 = vmatpush1.msra.mxu0 0.0
        %3503 = vmatprep.subr.mxu0 0.0
        %3504 = vmatpush1.msra.mxu0 0.0
        %3505 = vmatprep.subr.mxu0 0.0
        %3506 = vmatpush1.msra.mxu0 0.0
        %3507 = vmatprep.subr.mxu0 0.0
        %3508 = vmatpush1.msra.mxu0 0.0
        %3509 = vmatprep.subr.mxu0 0.0
        %3510 = vmatpush1.msra.mxu0 0.0
        %3511 = vmatprep.subr.mxu0 0.0
        %3512 = vmatpush1.msra.mxu0 0.0
        %3513 = vmatprep.subr.mxu0 0.0
        %3514 = vmatpush1.msra.mxu0 0.0
        %3515 = vmatprep.subr.mxu0 0.0
        %3516 = vmatpush1.msra.mxu0 0.0
        %3517 = vmatprep.subr.mxu0 0.0
        %3518 = vmatpush1.msra.mxu0 0.0
        %3519 = vmatprep.subr.mxu0 0.0
        %3520 = vmatpush1.msra.mxu0 0.0
        %3521 = vmatprep.subr.mxu0 0.0
        %3522 = vmatpush1.msra.mxu0 0.0
        %3523 = vmatprep.mubr.f32.mxu0 0.0
        %3524 = vmatmul.mubr.f32.gmra.mrb[0].mxu0 %v3448
        %v3525 = vpop.f32.mrb[0].mxu0
        %v3526 = vadd.f32 0.0, %v3525
        %v3527 = vpop.f32.mrb[0].mxu0
        %3528 = vmatprep.mubr.f32.mxu0 0.0
        %3529 = vmatmul.mubr.f32.gmra.mrb[0].mxu0 %v3451
        %v3530 = vpop.f32.mrb[0].mxu0
        %v3531 = vadd.f32 0.0, %v3530
        %v3532 = vpop.f32.mrb[0].mxu0
        %3533 = vmatprep.mubr.f32.mxu0 0.0
        %3534 = vmatmul.mubr.f32.gmra.mrb[0].mxu0 %v3454
        %v3535 = vpop.f32.mrb[0].mxu0
        %v3536 = vadd.f32 0.0, %v3535
        %v3537 = vpop.f32.mrb[0].mxu0
        %3538 = vmatprep.mubr.f32.mxu0 0.0
        %3539 = vmatmul.mubr.f32.gmra.mrb[0].mxu0 %v3457
        %v3540 = vpop.f32.mrb[0].mxu0
        %v3541 = vadd.f32 0.0, %v3540
        %v3542 = vpop.f32.mrb[0].mxu0
        %3543 = vdwg.mxu0
        %v3544 = vadd.f32 %v3422, %v3526
        %v3545 = vadd.f32 %v3423, %v3531
        %v3546 = vadd.f32 %v3424, %v3536
        %v3547 = vadd.f32 %v3425, %v3541
        %s3548 = scalar_lea.vmem [#allocation9], 64
        %v3549 = vld [vmem:[%s3548] sm:$0xff]
        %v3550 = vld [vmem:[%s3548 + $0x8] sm:$0xff]
        %v3551 = vld [vmem:[%s3548 + $0x10] sm:$0xff]
        %v3552 = vld [vmem:[%s3548 + $0x18] sm:$0xff]
        %3553 = vrot.lane.b32.xlu0 %v3313, 126
        %v3554 = vpop.permute.xlu0 %3553
        %3555 = vrot.lane.b32.xlu0 %v3314, 126
        %v3556 = vpop.permute.xlu0 %3555
        %3557 = vrot.lane.b32.xlu0 %v3315, 126
        %v3558 = vpop.permute.xlu0 %3557
        %3559 = vrot.lane.b32.xlu0 %v3316, 126
        %v3560 = vpop.permute.xlu0 %3559
        %v3566 = vsel %vm932, %v3549, 0
        %v3569 = vsel %vm932, %v3550, 0
        %v3572 = vsel %vm932, %v3551, 0
        %v3575 = vsel %vm932, %v3552, 0
        %3577 = vmatprep.subr.mxu0 0.0
        %3578 = vmatpush1.msra.mxu0 %v3554
        %3579 = vmatprep.subr.mxu0 0.0
        %3580 = vmatpush1.msra.mxu0 %v3556
        %3581 = vmatprep.subr.mxu0 0.0
        %3582 = vmatpush1.msra.mxu0 %v3558
        %3583 = vmatprep.subr.mxu0 0.0
        %3584 = vmatpush1.msra.mxu0 %v3560
        %3585 = vmatprep.subr.mxu0 0.0
        %3586 = vmatpush1.msra.mxu0 0.0
        %3587 = vmatprep.subr.mxu0 0.0
        %3588 = vmatpush1.msra.mxu0 0.0
        %3589 = vmatprep.subr.mxu0 0.0
        %3590 = vmatpush1.msra.mxu0 0.0
        %3591 = vmatprep.subr.mxu0 0.0
        %3592 = vmatpush1.msra.mxu0 0.0
        %3593 = vmatprep.subr.mxu0 0.0
        %3594 = vmatpush1.msra.mxu0 0.0
        %3595 = vmatprep.subr.mxu0 0.0
        %3596 = vmatpush1.msra.mxu0 0.0
        %3597 = vmatprep.subr.mxu0 0.0
        %3598 = vmatpush1.msra.mxu0 0.0
        %3599 = vmatprep.subr.mxu0 0.0
        %3600 = vmatpush1.msra.mxu0 0.0
        %3601 = vmatprep.subr.mxu0 0.0
        %3602 = vmatpush1.msra.mxu0 0.0
        %3603 = vmatprep.subr.mxu0 0.0
        %3604 = vmatpush1.msra.mxu0 0.0
        %3605 = vmatprep.subr.mxu0 0.0
        %3606 = vmatpush1.msra.mxu0 0.0
        %3607 = vmatprep.subr.mxu0 0.0
        %3608 = vmatpush1.msra.mxu0 0.0
        %3609 = vmatprep.subr.mxu0 0.0
        %3610 = vmatpush1.msra.mxu0 0.0
        %3611 = vmatprep.subr.mxu0 0.0
        %3612 = vmatpush1.msra.mxu0 0.0
        %3613 = vmatprep.subr.mxu0 0.0
        %3614 = vmatpush1.msra.mxu0 0.0
        %3615 = vmatprep.subr.mxu0 0.0
        %3616 = vmatpush1.msra.mxu0 0.0
        %3617 = vmatprep.subr.mxu0 0.0
        %3618 = vmatpush1.msra.mxu0 0.0
        %3619 = vmatprep.subr.mxu0 0.0
        %3620 = vmatpush1.msra.mxu0 0.0
        %3621 = vmatprep.subr.mxu0 0.0
        %3622 = vmatpush1.msra.mxu0 0.0
        %3623 = vmatprep.subr.mxu0 0.0
        %3624 = vmatpush1.msra.mxu0 0.0
        %3625 = vmatprep.subr.mxu0 0.0
        %3626 = vmatpush1.msra.mxu0 0.0
        %3627 = vmatprep.subr.mxu0 0.0
        %3628 = vmatpush1.msra.mxu0 0.0
        %3629 = vmatprep.subr.mxu0 0.0
        %3630 = vmatpush1.msra.mxu0 0.0
        %3631 = vmatprep.subr.mxu0 0.0
        %3632 = vmatpush1.msra.mxu0 0.0
        %3633 = vmatprep.subr.mxu0 0.0
        %3634 = vmatpush1.msra.mxu0 0.0
        %3635 = vmatprep.subr.mxu0 0.0
        %3636 = vmatpush1.msra.mxu0 0.0
        %3637 = vmatprep.subr.mxu0 0.0
        %3638 = vmatpush1.msra.mxu0 0.0
        %3639 = vmatprep.subr.mxu0 0.0
        %3640 = vmatpush1.msra.mxu0 0.0
        %3641 = vmatprep.mubr.f32.mxu0 0.0
        %3642 = vmatmul.mubr.f32.gmra.mrb[0].mxu0 %v3566
        %v3643 = vpop.f32.mrb[0].mxu0
        %v3644 = vadd.f32 0.0, %v3643
        %v3645 = vpop.f32.mrb[0].mxu0
        %3646 = vmatprep.mubr.f32.mxu0 0.0
        %3647 = vmatmul.mubr.f32.gmra.mrb[0].mxu0 %v3569
        %v3648 = vpop.f32.mrb[0].mxu0
        %v3649 = vadd.f32 0.0, %v3648
        %v3650 = vpop.f32.mrb[0].mxu0
        %3651 = vmatprep.mubr.f32.mxu0 0.0
        %3652 = vmatmul.mubr.f32.gmra.mrb[0].mxu0 %v3572
        %v3653 = vpop.f32.mrb[0].mxu0
        %v3654 = vadd.f32 0.0, %v3653
        %v3655 = vpop.f32.mrb[0].mxu0
        %3656 = vmatprep.mubr.f32.mxu0 0.0
        %3657 = vmatmul.mubr.f32.gmra.mrb[0].mxu0 %v3575
        %v3658 = vpop.f32.mrb[0].mxu0
        %v3659 = vadd.f32 0.0, %v3658
        %v3660 = vpop.f32.mrb[0].mxu0
        %3661 = vdwg.mxu0
        %v3662 = vadd.f32 %v3544, %v3644
        %v3663 = vadd.f32 %v3545, %v3649
        %v3664 = vadd.f32 %v3546, %v3654
        %v3665 = vadd.f32 %v3547, %v3659
        %s3666 = scalar_lea.vmem [#allocation9], 96
        %v3667 = vld [vmem:[%s3666] sm:$0xff]
        %v3668 = vld [vmem:[%s3666 + $0x8] sm:$0xff]
        %v3669 = vld [vmem:[%s3666 + $0x10] sm:$0xff]
        %v3670 = vld [vmem:[%s3666 + $0x18] sm:$0xff]
        %3671 = vrot.lane.b32.xlu0 %v3313, 125
        %v3672 = vpop.permute.xlu0 %3671
        %3673 = vrot.lane.b32.xlu0 %v3314, 125
        %v3674 = vpop.permute.xlu0 %3673
        %3675 = vrot.lane.b32.xlu0 %v3315, 125
        %v3676 = vpop.permute.xlu0 %3675
        %3677 = vrot.lane.b32.xlu0 %v3316, 125
        %v3678 = vpop.permute.xlu0 %3677
        %v3684 = vsel %vm932, %v3667, 0
        %v3687 = vsel %vm932, %v3668, 0
        %v3690 = vsel %vm932, %v3669, 0
        %v3693 = vsel %vm932, %v3670, 0
        %3695 = vmatprep.subr.mxu0 0.0
        %3696 = vmatpush1.msra.mxu0 %v3672
        %3697 = vmatprep.subr.mxu0 0.0
        %3698 = vmatpush1.msra.mxu0 %v3674
        %3699 = vmatprep.subr.mxu0 0.0
        %3700 = vmatpush1.msra.mxu0 %v3676
        %3701 = vmatprep.subr.mxu0 0.0
        %3702 = vmatpush1.msra.mxu0 %v3678
        %3703 = vmatprep.subr.mxu0 0.0
        %3704 = vmatpush1.msra.mxu0 0.0
        %3705 = vmatprep.subr.mxu0 0.0
        %3706 = vmatpush1.msra.mxu0 0.0
        %3707 = vmatprep.subr.mxu0 0.0
        %3708 = vmatpush1.msra.mxu0 0.0
        %3709 = vmatprep.subr.mxu0 0.0
        %3710 = vmatpush1.msra.mxu0 0.0
        %3711 = vmatprep.subr.mxu0 0.0
        %3712 = vmatpush1.msra.mxu0 0.0
        %3713 = vmatprep.subr.mxu0 0.0
        %3714 = vmatpush1.msra.mxu0 0.0
        %3715 = vmatprep.subr.mxu0 0.0
        %3716 = vmatpush1.msra.mxu0 0.0
        %3717 = vmatprep.subr.mxu0 0.0
        %3718 = vmatpush1.msra.mxu0 0.0
        %3719 = vmatprep.subr.mxu0 0.0
        %3720 = vmatpush1.msra.mxu0 0.0
        %3721 = vmatprep.subr.mxu0 0.0
        %3722 = vmatpush1.msra.mxu0 0.0
        %3723 = vmatprep.subr.mxu0 0.0
        %3724 = vmatpush1.msra.mxu0 0.0
        %3725 = vmatprep.subr.mxu0 0.0
        %3726 = vmatpush1.msra.mxu0 0.0
        %3727 = vmatprep.subr.mxu0 0.0
        %3728 = vmatpush1.msra.mxu0 0.0
        %3729 = vmatprep.subr.mxu0 0.0
        %3730 = vmatpush1.msra.mxu0 0.0
        %3731 = vmatprep.subr.mxu0 0.0
        %3732 = vmatpush1.msra.mxu0 0.0
        %3733 = vmatprep.subr.mxu0 0.0
        %3734 = vmatpush1.msra.mxu0 0.0
        %3735 = vmatprep.subr.mxu0 0.0
        %3736 = vmatpush1.msra.mxu0 0.0
        %3737 = vmatprep.subr.mxu0 0.0
        %3738 = vmatpush1.msra.mxu0 0.0
        %3739 = vmatprep.subr.mxu0 0.0
        %3740 = vmatpush1.msra.mxu0 0.0
        %3741 = vmatprep.subr.mxu0 0.0
        %3742 = vmatpush1.msra.mxu0 0.0
        %3743 = vmatprep.subr.mxu0 0.0
        %3744 = vmatpush1.msra.mxu0 0.0
        %3745 = vmatprep.subr.mxu0 0.0
        %3746 = vmatpush1.msra.mxu0 0.0
        %3747 = vmatprep.subr.mxu0 0.0
        %3748 = vmatpush1.msra.mxu0 0.0
        %3749 = vmatprep.subr.mxu0 0.0
        %3750 = vmatpush1.msra.mxu0 0.0
        %3751 = vmatprep.subr.mxu0 0.0
        %3752 = vmatpush1.msra.mxu0 0.0
        %3753 = vmatprep.subr.mxu0 0.0
        %3754 = vmatpush1.msra.mxu0 0.0
        %3755 = vmatprep.subr.mxu0 0.0
        %3756 = vmatpush1.msra.mxu0 0.0
        %3757 = vmatprep.subr.mxu0 0.0
        %3758 = vmatpush1.msra.mxu0 0.0
        %3759 = vmatprep.mubr.f32.mxu0 0.0
        %3760 = vmatmul.mubr.f32.gmra.mrb[0].mxu0 %v3684
        %v3761 = vpop.f32.mrb[0].mxu0
        %v3762 = vadd.f32 0.0, %v3761
        %v3763 = vpop.f32.mrb[0].mxu0
        %3764 = vmatprep.mubr.f32.mxu0 0.0
        %3765 = vmatmul.mubr.f32.gmra.mrb[0].mxu0 %v3687
        %v3766 = vpop.f32.mrb[0].mxu0
        %v3767 = vadd.f32 0.0, %v3766
        %v3768 = vpop.f32.mrb[0].mxu0
        %3769 = vmatprep.mubr.f32.mxu0 0.0
        %3770 = vmatmul.mubr.f32.gmra.mrb[0].mxu0 %v3690
        %v3771 = vpop.f32.mrb[0].mxu0
        %v3772 = vadd.f32 0.0, %v3771
        %v3773 = vpop.f32.mrb[0].mxu0
        %3774 = vmatprep.mubr.f32.mxu0 0.0
        %3775 = vmatmul.mubr.f32.gmra.mrb[0].mxu0 %v3693
        %v3776 = vpop.f32.mrb[0].mxu0
        %v3777 = vadd.f32 0.0, %v3776
        %v3778 = vpop.f32.mrb[0].mxu0
        %3779 = vdwg.mxu0
        %v3780 = vadd.f32 %v3662, %v3762
        %v3781 = vadd.f32 %v3663, %v3767
        %v3782 = vadd.f32 %v3664, %v3772
        %v3783 = vadd.f32 %v3665, %v3777
        %v3784 = vmax.f32 %v3780, 0.0
        %v3785 = vmax.f32 %v3781, 0.0
        %v3786 = vmax.f32 %v3782, 0.0
        %v3787 = vmax.f32 %v3783, 0.0
        %v3788 = vld [vmem:[#allocation11] sm:$0xff]
        %v3789 = vld [vmem:[#allocation11 + $0x8] sm:$0xff]
        %v3790 = vld [vmem:[#allocation11 + $0x10] sm:$0xff]
        %v3791 = vld [vmem:[#allocation11 + $0x18] sm:$0xff]
        %v3792 = vld [vmem:[%s10] sm:$0xff]
        %v3793 = vld [vmem:[%s10 + $0x8] sm:$0xff]
        %v3794 = vld [vmem:[%s10 + $0x10] sm:$0xff]
        %v3795 = vld [vmem:[%s10 + $0x18] sm:$0xff]
        %v3797 = vsel %vm932, %v3788, 0
        %v3800 = vsel %vm932, %v3789, 0
        %v3803 = vsel %vm932, %v3790, 0
        %v3806 = vsel %vm932, %v3791, 0
        %3808 = vmatprep.subr.mxu0 0.0
        %3809 = vmatpush1.msra.mxu0 %v3784
        %3810 = vmatprep.subr.mxu0 0.0
        %3811 = vmatpush1.msra.mxu0 %v3785
        %3812 = vmatprep.subr.mxu0 0.0
        %3813 = vmatpush1.msra.mxu0 %v3786
        %3814 = vmatprep.subr.mxu0 0.0
        %3815 = vmatpush1.msra.mxu0 %v3787
        %3816 = vmatprep.subr.mxu0 0.0
        %3817 = vmatpush1.msra.mxu0 0.0
        %3818 = vmatprep.subr.mxu0 0.0
        %3819 = vmatpush1.msra.mxu0 0.0
        %3820 = vmatprep.subr.mxu0 0.0
        %3821 = vmatpush1.msra.mxu0 0.0
        %3822 = vmatprep.subr.mxu0 0.0
        %3823 = vmatpush1.msra.mxu0 0.0
        %3824 = vmatprep.subr.mxu0 0.0
        %3825 = vmatpush1.msra.mxu0 0.0
        %3826 = vmatprep.subr.mxu0 0.0
        %3827 = vmatpush1.msra.mxu0 0.0
        %3828 = vmatprep.subr.mxu0 0.0
        %3829 = vmatpush1.msra.mxu0 0.0
        %3830 = vmatprep.subr.mxu0 0.0
        %3831 = vmatpush1.msra.mxu0 0.0
        %3832 = vmatprep.subr.mxu0 0.0
        %3833 = vmatpush1.msra.mxu0 0.0
        %3834 = vmatprep.subr.mxu0 0.0
        %3835 = vmatpush1.msra.mxu0 0.0
        %3836 = vmatprep.subr.mxu0 0.0
        %3837 = vmatpush1.msra.mxu0 0.0
        %3838 = vmatprep.subr.mxu0 0.0
        %3839 = vmatpush1.msra.mxu0 0.0
        %3840 = vmatprep.subr.mxu0 0.0
        %3841 = vmatpush1.msra.mxu0 0.0
        %3842 = vmatprep.subr.mxu0 0.0
        %3843 = vmatpush1.msra.mxu0 0.0
        %3844 = vmatprep.subr.mxu0 0.0
        %3845 = vmatpush1.msra.mxu0 0.0
        %3846 = vmatprep.subr.mxu0 0.0
        %3847 = vmatpush1.msra.mxu0 0.0
        %3848 = vmatprep.subr.mxu0 0.0
        %3849 = vmatpush1.msra.mxu0 0.0
        %3850 = vmatprep.subr.mxu0 0.0
        %3851 = vmatpush1.msra.mxu0 0.0
        %3852 = vmatprep.subr.mxu0 0.0
        %3853 = vmatpush1.msra.mxu0 0.0
        %3854 = vmatprep.subr.mxu0 0.0
        %3855 = vmatpush1.msra.mxu0 0.0
        %3856 = vmatprep.subr.mxu0 0.0
        %3857 = vmatpush1.msra.mxu0 0.0
        %3858 = vmatprep.subr.mxu0 0.0
        %3859 = vmatpush1.msra.mxu0 0.0
        %3860 = vmatprep.subr.mxu0 0.0
        %3861 = vmatpush1.msra.mxu0 0.0
        %3862 = vmatprep.subr.mxu0 0.0
        %3863 = vmatpush1.msra.mxu0 0.0
        %3864 = vmatprep.subr.mxu0 0.0
        %3865 = vmatpush1.msra.mxu0 0.0
        %3866 = vmatprep.subr.mxu0 0.0
        %3867 = vmatpush1.msra.mxu0 0.0
        %3868 = vmatprep.subr.mxu0 0.0
        %3869 = vmatpush1.msra.mxu0 0.0
        %3870 = vmatprep.subr.mxu0 0.0
        %3871 = vmatpush1.msra.mxu0 0.0
        %3872 = vmatprep.mubr.f32.mxu0 0.0
        %3873 = vmatmul.mubr.f32.gmra.mrb[0].mxu0 %v3797
        %v3874 = vpop.f32.mrb[0].mxu0
        %v3875 = vadd.f32 %v3792, %v3874
        %v3876 = vpop.f32.mrb[0].mxu0
        %3877 = vmatprep.mubr.f32.mxu0 0.0
        %3878 = vmatmul.mubr.f32.gmra.mrb[0].mxu0 %v3800
        %v3879 = vpop.f32.mrb[0].mxu0
        %v3880 = vadd.f32 %v3793, %v3879
        %v3881 = vpop.f32.mrb[0].mxu0
        %3882 = vmatprep.mubr.f32.mxu0 0.0
        %3883 = vmatmul.mubr.f32.gmra.mrb[0].mxu0 %v3803
        %v3884 = vpop.f32.mrb[0].mxu0
        %v3885 = vadd.f32 %v3794, %v3884
        %v3886 = vpop.f32.mrb[0].mxu0
        %3887 = vmatprep.mubr.f32.mxu0 0.0
        %3888 = vmatmul.mubr.f32.gmra.mrb[0].mxu0 %v3806
        %v3889 = vpop.f32.mrb[0].mxu0
        %v3890 = vadd.f32 %v3795, %v3889
        %v3891 = vpop.f32.mrb[0].mxu0
        %3892 = vdwg.mxu0
        %v3893 = vmax.f32 %v3875, 0.0
        %v3894 = vmax.f32 %v3880, 0.0
        %v3895 = vmax.f32 %v3885, 0.0
        %v3896 = vmax.f32 %v3890, 0.0
        %v3897 = vld [vmem:[#allocation12] sm:$0x3f]
        %v3898 = vld [vmem:[%s12] sm:$0x3f]
        %v3900 = vsel %vm932, %v3897, 0
        %3902 = vmatprep.subr.mxu0 0.0
        %3903 = vmatpush1.msra.mxu0 %v3893
        %3904 = vmatprep.subr.mxu0 0.0
        %3905 = vmatpush1.msra.mxu0 %v3894
        %3906 = vmatprep.subr.mxu0 0.0
        %3907 = vmatpush1.msra.mxu0 %v3895
        %3908 = vmatprep.subr.mxu0 0.0
        %3909 = vmatpush1.msra.mxu0 %v3896
        %3910 = vmatprep.subr.mxu0 0.0
        %3911 = vmatpush1.msra.mxu0 0.0
        %3912 = vmatprep.subr.mxu0 0.0
        %3913 = vmatpush1.msra.mxu0 0.0
        %3914 = vmatprep.subr.mxu0 0.0
        %3915 = vmatpush1.msra.mxu0 0.0
        %3916 = vmatprep.subr.mxu0 0.0
        %3917 = vmatpush1.msra.mxu0 0.0
        %3918 = vmatprep.subr.mxu0 0.0
        %3919 = vmatpush1.msra.mxu0 0.0
        %3920 = vmatprep.subr.mxu0 0.0
        %3921 = vmatpush1.msra.mxu0 0.0
        %3922 = vmatprep.subr.mxu0 0.0
        %3923 = vmatpush1.msra.mxu0 0.0
        %3924 = vmatprep.subr.mxu0 0.0
        %3925 = vmatpush1.msra.mxu0 0.0
        %3926 = vmatprep.subr.mxu0 0.0
        %3927 = vmatpush1.msra.mxu0 0.0
        %3928 = vmatprep.subr.mxu0 0.0
        %3929 = vmatpush1.msra.mxu0 0.0
        %3930 = vmatprep.subr.mxu0 0.0
        %3931 = vmatpush1.msra.mxu0 0.0
        %3932 = vmatprep.subr.mxu0 0.0
        %3933 = vmatpush1.msra.mxu0 0.0
        %3934 = vmatprep.subr.mxu0 0.0
        %3935 = vmatpush1.msra.mxu0 0.0
        %3936 = vmatprep.subr.mxu0 0.0
        %3937 = vmatpush1.msra.mxu0 0.0
        %3938 = vmatprep.subr.mxu0 0.0
        %3939 = vmatpush1.msra.mxu0 0.0
        %3940 = vmatprep.subr.mxu0 0.0
        %3941 = vmatpush1.msra.mxu0 0.0
        %3942 = vmatprep.subr.mxu0 0.0
        %3943 = vmatpush1.msra.mxu0 0.0
        %3944 = vmatprep.subr.mxu0 0.0
        %3945 = vmatpush1.msra.mxu0 0.0
        %3946 = vmatprep.subr.mxu0 0.0
        %3947 = vmatpush1.msra.mxu0 0.0
        %3948 = vmatprep.subr.mxu0 0.0
        %3949 = vmatpush1.msra.mxu0 0.0
        %3950 = vmatprep.subr.mxu0 0.0
        %3951 = vmatpush1.msra.mxu0 0.0
        %3952 = vmatprep.subr.mxu0 0.0
        %3953 = vmatpush1.msra.mxu0 0.0
        %3954 = vmatprep.subr.mxu0 0.0
        %3955 = vmatpush1.msra.mxu0 0.0
        %3956 = vmatprep.subr.mxu0 0.0
        %3957 = vmatpush1.msra.mxu0 0.0
        %3958 = vmatprep.subr.mxu0 0.0
        %3959 = vmatpush1.msra.mxu0 0.0
        %3960 = vmatprep.subr.mxu0 0.0
        %3961 = vmatpush1.msra.mxu0 0.0
        %3962 = vmatprep.subr.mxu0 0.0
        %3963 = vmatpush1.msra.mxu0 0.0
        %3964 = vmatprep.subr.mxu0 0.0
        %3965 = vmatpush1.msra.mxu0 0.0
        %3966 = vmatprep.mubr.f32.mxu0 0.0
        %3967 = vmatmul.mubr.f32.gmra.mrb[0].mxu0 %v3900
        %v3968 = vpop.f32.mrb[0].mxu0
        %v3969 = vadd.f32 %v3898, %v3968
        %v3970 = vpop.f32.mrb[0].mxu0
        %3971 = vdwg.mxu0
        %vm3972 = vcmask 5120
        %3973 = vst.msk [vmem:[%s529] sm:$0x3f] %vm3972, %v3969
        %p3974 = scmp.lt.s32.totalorder %s30, 1
        %s3975 = scalar_select %p3974, %s30, 1
        %s3976 = smul.addr %s3975, 8
        %s3977 = scalar_lea.vmem %s13, %s3976
        // Predicated region
        $region97: #{qnet_duel_forward.1} parent=71 // pred_check
          %p3978 = pneg %p326
        $region98: #{qnet_duel_forward.1} parent=71 // pred_check_branch
          %3980 = sbr.rel (%p3978) target = $region100
        $region99: #{qnet_duel_forward.1} parent=71 // pred_region
          _
        $region100: #{qnet_duel_forward.1} parent=71 // pred_fallthru
          _
      $region72: #{qnet_duel_forward.1} parent=5 // pred_fallthru
        _
      %p3981 = scmp.le.s32.totalorder 2, %s25
      // Predicated region
      $region101: #{qnet_duel_forward.1} parent=5 // pred_check
        %p3982 = pneg %p3981
      $region102: #{qnet_duel_forward.1} parent=5 // pred_check_branch
        %3984 = sbr.rel (%p3982) target = $region104
      $region103: #{qnet_duel_forward.1} parent=5 // pred_region
        %s3985 = ssub.s32 %s25, 2
        // Predicated region
        $region105: #{qnet_duel_forward.1} parent=103 // pred_check
          %p3986 = pneg %p332
        $region106: #{qnet_duel_forward.1} parent=103 // pred_check_branch
          %3988 = sbr.rel (%p3986) target = $region108
        $region107: #{qnet_duel_forward.1} parent=103 // pred_region
          %p3989 = scmp.lt.s32.totalorder %s31, 1
          %s3990 = scalar_select %p3989, %s31, 1
          %s3991 = smul.addr %s3990, 8
          %s3992 = scalar_lea.vmem %s13, %s3991
        $region108: #{qnet_duel_forward.1} parent=103 // pred_fallthru
          _
      $region104: #{qnet_duel_forward.1} parent=5 // pred_fallthru
        _
    $region6: #{qnet_duel_forward.1} parent=1 // loop_footer
      %s29 = sadd.s32 1, %s25
    $region7: #{qnet_duel_forward.1} parent=1 // loop_footer_branch
      %24 = sbr.rel target = $region3
    $region8: #{qnet_duel_forward.1} parent=1 // loop_exit
      _
    %3993 = vsyncpa [#allocation5], 1
    %s3994 = scalar_lea.sflag [#allocation5], 1
    %3995 = vsyncpa %s3994, 1
    %3996 = vsyncpa [#allocation7], 1
    %3997 = vsyncpa [#allocation10], 1
    %3998 = vsyncpa [#allocation13], 1

</llo_original>
